<compile_context>
chip_gen: v5e
topology: v5e:2x2
jax: 0.10.0
libtpu: 0.0.40
codegen_flags: <defaults>
</compile_context>

<pallas_src>
import functools

import jax
import jax.numpy as jnp
from jax.experimental import pallas as pl
from jax.experimental.pallas import tpu as pltpu


# Explicit scoped-VMEM limit: above the 16/32 MiB defaults, with headroom on
# v7x's 64 MiB physical VMEM.  Actual usage at these tile sizes is far below.
_VMEM_LIMIT = 48 * 1024 * 1024


# ---------------------------------------------------------------------------
# Pass 1: 3x3 conv (pad=1) as a single im2col matmul per (batch, row-tile)
#         grid step + per-tile BatchNorm partial statistics.
# ---------------------------------------------------------------------------
def _conv_stats_kernel(x_ref, w_ref, y_ref, st_ref):
    # x_ref : (1, H+2, W+2, Cin)  bf16 zero-padded plane of batch n; its
    #         index_map ignores the row-tile axis so it is DMA'd once per n.
    # w_ref : (9*Cin, Cout)       bf16 conv taps folded into the K dim.
    # y_ref : (1, TH*W, Cout)     f32 pre-BN conv output for this row tile.
    # st_ref: (1, 1, 2, Cout)     f32 [sum, sum_sq] over this tile (for BN).
    W = x_ref.shape[2] - 2
    TH = y_ref.shape[1] // W
    r = pl.program_id(1)
    base = pl.multiple_of(r * TH, TH)

    # im2col: nine shifted (TH, W, Cin) windows concatenated along K.
    cols = []
    for ky in range(3):
        rows = x_ref[0, pl.ds(base + ky, TH), :, :]          # (TH, W+2, Cin)
        for kx in range(3):
            cols.append(rows[:, kx:kx + W, :].reshape(TH * W, -1))
    patch = jnp.concatenate(cols, axis=-1)                   # (TH*W, 9*Cin) bf16

    # One deep-K matmul on the MXU, f32 accumulate.
    acc = jnp.dot(patch, w_ref[...], preferred_element_type=jnp.float32)

    y_ref[0, :, :] = acc
    s = jnp.sum(acc, axis=0, keepdims=True)                  # (1, Cout)
    ss = jnp.sum(acc * acc, axis=0, keepdims=True)           # (1, Cout)
    st_ref[0, 0, :, :] = jnp.concatenate([s, ss], axis=0)    # (2, Cout)


# ---------------------------------------------------------------------------
# Pass 2: BatchNorm (precomputed scale/shift) + PReLU, fully element-wise on a
#         lane-dense (last dim = W*Cout) layout.
# ---------------------------------------------------------------------------
def _bn_prelu_kernel(y_ref, scale_ref, shift_ref, alpha_ref, o_ref):
    # y_ref / o_ref        : (1, TH, W*Cout) f32
    # scale/shift/alpha    : (1, W*Cout)     f32 (per-channel, tiled across W)
    z = y_ref[...] * scale_ref[...] + shift_ref[...]
    o_ref[...] = jnp.where(z >= 0, z, alpha_ref[...] * z)


def _pick_row_tile(H, W, Cout, budget_bytes=2 << 20):
    """Row-tile height: a multiple-of-8 divisor of H, leaving >=2 tiles when
    possible (so the output pipeline can double-buffer) and keeping one f32
    output tile under `budget_bytes` of VMEM."""
    if H % 8 != 0 or H < 16:
        return H
    th = 8
    for cand in range(16, H // 2 + 1, 8):
        if H % cand == 0 and cand * W * Cout * 4 <= budget_bytes:
            th = cand
    return th


def _layer(x_nhwc, w_oihw, gamma, beta, alpha, eps=1e-5):
    """One Conv3x3(pad=1) -> BatchNorm2d(training stats) -> PReLU. NHWC in/out."""
    N, H, W, Cin = x_nhwc.shape
    Cout = w_oihw.shape[0]
    TH = _pick_row_tile(H, W, Cout)
    R = H // TH

    # Conv taps folded into the contraction dim: (ky, kx, cin) -> K = 9*Cin.
    w_flat = (jnp.transpose(w_oihw, (2, 3, 1, 0))
              .reshape(9 * Cin, Cout).astype(jnp.bfloat16))
    # bf16 activations halve input DMA bytes; accumulation stays f32.
    # TODO(synk): fuse the pad=1 halo into the kernel (masked edges / halo DMA)
    # to avoid one extra HBM round-trip of the activation per layer.
    xp = jnp.pad(x_nhwc.astype(jnp.bfloat16), ((0, 0), (1, 1), (1, 1), (0, 0)))

    y, stats = pl.pallas_call(
        _conv_stats_kernel,
        grid=(N, R),
        in_specs=[
            pl.BlockSpec((1, H + 2, W + 2, Cin), lambda n, r: (n, 0, 0, 0)),
            pl.BlockSpec((9 * Cin, Cout), lambda n, r: (0, 0)),
        ],
        out_specs=(
            pl.BlockSpec((1, TH * W, Cout), lambda n, r: (n, r, 0)),
            pl.BlockSpec((1, 1, 2, Cout), lambda n, r: (n, r, 0, 0)),
        ),
        out_shape=(
            jax.ShapeDtypeStruct((N, H * W, Cout), jnp.float32),
            jax.ShapeDtypeStruct((N, R, 2, Cout), jnp.float32),
        ),
        compiler_params=pltpu.CompilerParams(
            dimension_semantics=("parallel", "arbitrary"),
            vmem_limit_bytes=_VMEM_LIMIT),
    )(xp, w_flat)

    # Finalize the BatchNorm batch statistics (tiny O(Cout) work, plain JAX).
    cnt = float(N * H * W)
    mean = jnp.sum(stats[:, :, 0, :], axis=(0, 1)) / cnt
    var = jnp.maximum(jnp.sum(stats[:, :, 1, :], axis=(0, 1)) / cnt - mean * mean, 0.0)
    scale = gamma * jax.lax.rsqrt(var + eps)
    shift = beta - mean * scale
    # The conv bias cancels exactly under training-mode BN (it only shifts the
    # per-channel mean), so it is intentionally absent from the kernels.

    # Lane-dense layout for the element-wise pass: fold (W, Cout) onto lanes.
    wc = W * Cout
    y2 = y.reshape(N, H, wc)
    sc = jnp.tile(scale, (W,)).reshape(1, wc)
    sh = jnp.tile(shift, (W,)).reshape(1, wc)
    al = jnp.tile(alpha, (W,)).reshape(1, wc)

    out = pl.pallas_call(
        _bn_prelu_kernel,
        grid=(N, R),
        in_specs=[
            pl.BlockSpec((1, TH, wc), lambda n, r: (n, r, 0)),
            pl.BlockSpec((1, wc), lambda n, r: (0, 0)),
            pl.BlockSpec((1, wc), lambda n, r: (0, 0)),
            pl.BlockSpec((1, wc), lambda n, r: (0, 0)),
        ],
        out_specs=pl.BlockSpec((1, TH, wc), lambda n, r: (n, r, 0)),
        out_shape=jax.ShapeDtypeStruct((N, H, wc), jnp.float32),
        compiler_params=pltpu.CompilerParams(
            dimension_semantics=("parallel", "parallel"),
            vmem_limit_bytes=_VMEM_LIMIT),
    )(y2, sc, sh, al)
    return out.reshape(N, H, W, Cout)


def init_params(key, in_channels, out_channels, layers=2):
    """Deterministic init mirroring the PyTorch __init__ (shapes & defaults)."""
    params = []
    cin = in_channels
    for _ in range(layers):
        key, k1, k2 = jax.random.split(key, 3)
        fan_in = cin * 3 * 3
        bound = 1.0 / float(fan_in) ** 0.5
        params.append(dict(
            w=jax.random.uniform(k1, (out_channels, cin, 3, 3),
                                 jnp.float32, -bound, bound),   # OIHW (PyTorch)
            b=jax.random.uniform(k2, (out_channels,),
                                 jnp.float32, -bound, bound),
            gamma=jnp.ones((out_channels,), jnp.float32),        # BN default
            beta=jnp.zeros((out_channels,), jnp.float32),        # BN default
            alpha=jnp.full((out_channels,), 0.25, jnp.float32),  # PReLU default
        ))
        cin = out_channels
    return params


def vnet_conv_block(x_nchw, params):
    """Forward pass. Input/output are NCHW like the PyTorch module."""
    out = jnp.transpose(x_nchw, (0, 2, 3, 1))                    # -> NHWC (once)
    for p in params:
        # p["b"] is not passed: the conv bias cancels through training-mode BN.
        out = _layer(out, p["w"], p["gamma"], p["beta"], p["alpha"])
    return jnp.transpose(out, (0, 3, 1, 2))                      # -> NCHW


def reference(x_nchw, params, eps=1e-5):
    """Pure-JAX f32 reference of the PyTorch forward (training-mode BN)."""
    out = x_nchw
    for p in params:
        out = jax.lax.conv_general_dilated(
            out, p["w"], (1, 1), ((1, 1), (1, 1)),
            dimension_numbers=("NCHW", "OIHW", "NCHW"))
        out = out + p["b"][None, :, None, None]
        mean = jnp.mean(out, axis=(0, 2, 3), keepdims=True)
        var = jnp.mean((out - mean) ** 2, axis=(0, 2, 3), keepdims=True)
        out = (out - mean) * jax.lax.rsqrt(var + eps)
        out = out * p["gamma"][None, :, None, None] + p["beta"][None, :, None, None]
        out = jnp.where(out >= 0, out, p["alpha"][None, :, None, None] * out)
    return out


if __name__ == "__main__":
    key = jax.random.PRNGKey(0)
    k_x, k_p = jax.random.split(key)

    N, Cin, Cout, S = 2, 4, 8, 16
    x = jax.random.normal(k_x, (N, Cin, S, S), jnp.float32)
    params = init_params(k_p, Cin, Cout, layers=2)

    out = jax.block_until_ready(jax.jit(vnet_conv_block)(x, params))
    assert out.shape == (N, Cout, S, S), out.shape

    ref = reference(x, params)
    # bf16 matmul operands (f32 accumulate) -> slightly relaxed tolerance.
    if not jnp.allclose(out, ref, atol=5e-2, rtol=5e-2):
        raise AssertionError(
            f"kernel/reference mismatch, max abs err = {jnp.max(jnp.abs(out - ref))}")

    print("KERNEL_OK")
</pallas_src>

<mosaic_0001>
module attributes {stable_mosaic.version = 11 : i64} {
  func.func @_conv_stats_kernel(%arg0: i32, %arg1: i32, %arg2: memref<1x18x18x4xbf16, #tpu.memory_space<vmem>>, %arg3: memref<36x8xbf16, #tpu.memory_space<vmem>>, %arg4: memref<1x128x8xf32, #tpu.memory_space<vmem>>, %arg5: memref<1x1x2x8xf32, #tpu.memory_space<vmem>>) attributes {dimension_semantics = [#tpu.dimension_semantics<parallel>, #tpu.dimension_semantics<arbitrary>], iteration_bounds = array<i64: 2, 2>, scalar_prefetch = 0 : i64, scratch_operands = 0 : i64, tpu.core_type = #tpu.core_type<tc>, window_params = [{transform_indices = @transform_0, window_bounds = array<i64: 1, 18, 18, 4>}, {pipeline_mode = #tpu.pipeline_mode<synchronous>, transform_indices = @transform_1, window_bounds = array<i64: 36, 8>}, {transform_indices = @transform_2, window_bounds = array<i64: 1, 128, 8>}, {transform_indices = @transform_3, window_bounds = array<i64: 1, 1, 2, 8>}]} {
    %c8_i32 = arith.constant 8 : i32
    %0 = arith.muli %arg1, %c8_i32 : i32
    %1 = tpu.assume_multiple %0, 8 : i32
    %c0_i32 = arith.constant 0 : i32
    %2 = arith.addi %1, %c0_i32 : i32
    %c0 = arith.constant 0 : index
    %3 = arith.index_cast %2 : i32 to index
    %c0_0 = arith.constant 0 : index
    %c0_1 = arith.constant 0 : index
    %4 = vector.load %arg2[%c0, %3, %c0_0, %c0_1] : memref<1x18x18x4xbf16, #tpu.memory_space<vmem>>, vector<1x8x18x4xbf16>
    %5 = vector.shape_cast %4 : vector<1x8x18x4xbf16> to vector<8x18x4xbf16>
    %6 = vector.extract_strided_slice %5 {offsets = [0, 0, 0], sizes = [8, 16, 4], strides = [1, 1, 1]} : vector<8x18x4xbf16> to vector<8x16x4xbf16>
    %7 = vector.shape_cast %6 : vector<8x16x4xbf16> to vector<128x4xbf16>
    %8 = vector.extract_strided_slice %5 {offsets = [0, 1, 0], sizes = [8, 16, 4], strides = [1, 1, 1]} : vector<8x18x4xbf16> to vector<8x16x4xbf16>
    %9 = vector.shape_cast %8 : vector<8x16x4xbf16> to vector<128x4xbf16>
    %10 = vector.extract_strided_slice %5 {offsets = [0, 2, 0], sizes = [8, 16, 4], strides = [1, 1, 1]} : vector<8x18x4xbf16> to vector<8x16x4xbf16>
    %11 = vector.shape_cast %10 : vector<8x16x4xbf16> to vector<128x4xbf16>
    %c1_i32 = arith.constant 1 : i32
    %12 = arith.addi %1, %c1_i32 : i32
    %c0_2 = arith.constant 0 : index
    %13 = arith.index_cast %12 : i32 to index
    %c0_3 = arith.constant 0 : index
    %c0_4 = arith.constant 0 : index
    %14 = vector.load %arg2[%c0_2, %13, %c0_3, %c0_4] : memref<1x18x18x4xbf16, #tpu.memory_space<vmem>>, vector<1x8x18x4xbf16>
    %15 = vector.shape_cast %14 : vector<1x8x18x4xbf16> to vector<8x18x4xbf16>
    %16 = vector.extract_strided_slice %15 {offsets = [0, 0, 0], sizes = [8, 16, 4], strides = [1, 1, 1]} : vector<8x18x4xbf16> to vector<8x16x4xbf16>
    %17 = vector.shape_cast %16 : vector<8x16x4xbf16> to vector<128x4xbf16>
    %18 = vector.extract_strided_slice %15 {offsets = [0, 1, 0], sizes = [8, 16, 4], strides = [1, 1, 1]} : vector<8x18x4xbf16> to vector<8x16x4xbf16>
    %19 = vector.shape_cast %18 : vector<8x16x4xbf16> to vector<128x4xbf16>
    %20 = vector.extract_strided_slice %15 {offsets = [0, 2, 0], sizes = [8, 16, 4], strides = [1, 1, 1]} : vector<8x18x4xbf16> to vector<8x16x4xbf16>
    %21 = vector.shape_cast %20 : vector<8x16x4xbf16> to vector<128x4xbf16>
    %c2_i32 = arith.constant 2 : i32
    %22 = arith.addi %1, %c2_i32 : i32
    %c0_5 = arith.constant 0 : index
    %23 = arith.index_cast %22 : i32 to index
    %c0_6 = arith.constant 0 : index
    %c0_7 = arith.constant 0 : index
    %24 = vector.load %arg2[%c0_5, %23, %c0_6, %c0_7] : memref<1x18x18x4xbf16, #tpu.memory_space<vmem>>, vector<1x8x18x4xbf16>
    %25 = vector.shape_cast %24 : vector<1x8x18x4xbf16> to vector<8x18x4xbf16>
    %26 = vector.extract_strided_slice %25 {offsets = [0, 0, 0], sizes = [8, 16, 4], strides = [1, 1, 1]} : vector<8x18x4xbf16> to vector<8x16x4xbf16>
    %27 = vector.shape_cast %26 : vector<8x16x4xbf16> to vector<128x4xbf16>
    %28 = vector.extract_strided_slice %25 {offsets = [0, 1, 0], sizes = [8, 16, 4], strides = [1, 1, 1]} : vector<8x18x4xbf16> to vector<8x16x4xbf16>
    %29 = vector.shape_cast %28 : vector<8x16x4xbf16> to vector<128x4xbf16>
    %30 = vector.extract_strided_slice %25 {offsets = [0, 2, 0], sizes = [8, 16, 4], strides = [1, 1, 1]} : vector<8x18x4xbf16> to vector<8x16x4xbf16>
    %31 = vector.shape_cast %30 : vector<8x16x4xbf16> to vector<128x4xbf16>
    %32 = tpu.concatenate %7, %9, %11, %17, %19, %21, %27, %29, %31 in 1 : vector<128x4xbf16>, vector<128x4xbf16>, vector<128x4xbf16>, vector<128x4xbf16>, vector<128x4xbf16>, vector<128x4xbf16>, vector<128x4xbf16>, vector<128x4xbf16>, vector<128x4xbf16> -> vector<128x36xbf16>
    %c0_8 = arith.constant 0 : index
    %c0_9 = arith.constant 0 : index
    %33 = vector.load %arg3[%c0_8, %c0_9] : memref<36x8xbf16, #tpu.memory_space<vmem>>, vector<36x8xbf16>
    %cst = arith.constant dense<0.000000e+00> : vector<128x8xf32>
    %34 = tpu.matmul %32, %33, %cst {dimension_numbers = #tpu.dot_dimension_numbers<[1], [0], [0], [1], [0, 0, 1, 1], [], []>} : vector<128x36xbf16>, vector<36x8xbf16>, vector<128x8xf32> -> vector<128x8xf32>
    %c0_10 = arith.constant 0 : index
    %c0_11 = arith.constant 0 : index
    %c0_12 = arith.constant 0 : index
    %35 = vector.load %arg4[%c0_10, %c0_11, %c0_12] : memref<1x128x8xf32, #tpu.memory_space<vmem>>, vector<1x128x8xf32>
    %36 = vector.shape_cast %35 : vector<1x128x8xf32> to vector<128x8xf32>
    %37 = vector.shape_cast %34 : vector<128x8xf32> to vector<1x128x8xf32>
    tpu.vector_store %arg4[%c0_10, %c0_11, %c0_12], %37 {strides = array<i32>} : memref<1x128x8xf32, #tpu.memory_space<vmem>>, vector<1x128x8xf32>,
    %cst_13 = arith.constant dense<0.000000e+00> : vector<8xf32>
    %38 = vector.multi_reduction <add>, %34, %cst_13 [0] : vector<128x8xf32> to vector<8xf32>
    %39 = vector.shape_cast %38 : vector<8xf32> to vector<1x8xf32>
    %40 = arith.mulf %34, %34 : vector<128x8xf32>
    %cst_14 = arith.constant dense<0.000000e+00> : vector<8xf32>
    %41 = vector.multi_reduction <add>, %40, %cst_14 [0] : vector<128x8xf32> to vector<8xf32>
    %42 = vector.shape_cast %41 : vector<8xf32> to vector<1x8xf32>
    %43 = tpu.concatenate %39, %42 in 0 : vector<1x8xf32>, vector<1x8xf32> -> vector<2x8xf32>
    %c0_15 = arith.constant 0 : index
    %c0_16 = arith.constant 0 : index
    %c0_17 = arith.constant 0 : index
    %c0_18 = arith.constant 0 : index
    %44 = vector.load %arg5[%c0_15, %c0_16, %c0_17, %c0_18] : memref<1x1x2x8xf32, #tpu.memory_space<vmem>>, vector<1x1x2x8xf32>
    %45 = vector.shape_cast %44 : vector<1x1x2x8xf32> to vector<2x8xf32>
    %46 = vector.shape_cast %43 : vector<2x8xf32> to vector<1x1x2x8xf32>
    tpu.vector_store %arg5[%c0_15, %c0_16, %c0_17, %c0_18], %46 {strides = array<i32>} : memref<1x1x2x8xf32, #tpu.memory_space<vmem>>, vector<1x1x2x8xf32>,
    return
  }
  func.func @transform_0(%arg0: i32, %arg1: i32) -> (i32, i32, i32, i32) {
    %c0_i32 = arith.constant 0 : i32
    %c0_i32_0 = arith.constant 0 : i32
    %c0_i32_1 = arith.constant 0 : i32
    %c0_i32_2 = arith.constant 0 : i32
    return %arg0, %c0_i32, %c0_i32_0, %c0_i32_1 : i32, i32, i32, i32
  }
  func.func @transform_1(%arg0: i32, %arg1: i32) -> (i32, i32) {
    %c0_i32 = arith.constant 0 : i32
    %c0_i32_0 = arith.constant 0 : i32
    %c0_i32_1 = arith.constant 0 : i32
    return %c0_i32, %c0_i32_0 : i32, i32
  }
  func.func @transform_2(%arg0: i32, %arg1: i32) -> (i32, i32, i32) {
    %c0_i32 = arith.constant 0 : i32
    %c0_i32_0 = arith.constant 0 : i32
    return %arg0, %arg1, %c0_i32 : i32, i32, i32
  }
  func.func @transform_3(%arg0: i32, %arg1: i32) -> (i32, i32, i32, i32) {
    %c0_i32 = arith.constant 0 : i32
    %c0_i32_0 = arith.constant 0 : i32
    %c0_i32_1 = arith.constant 0 : i32
    return %arg0, %arg1, %c0_i32, %c0_i32_0 : i32, i32, i32, i32
  }
}

module attributes {stable_mosaic.version = 11 : i64} {
  func.func @_bn_prelu_kernel(%arg0: i32, %arg1: i32, %arg2: memref<1x8x128xf32, #tpu.memory_space<vmem>>, %arg3: memref<1x128xf32, #tpu.memory_space<vmem>>, %arg4: memref<1x128xf32, #tpu.memory_space<vmem>>, %arg5: memref<1x128xf32, #tpu.memory_space<vmem>>, %arg6: memref<1x8x128xf32, #tpu.memory_space<vmem>>) attributes {dimension_semantics = [#tpu.dimension_semantics<parallel>, #tpu.dimension_semantics<parallel>], iteration_bounds = array<i64: 2, 2>, scalar_prefetch = 0 : i64, scratch_operands = 0 : i64, tpu.core_type = #tpu.core_type<tc>, window_params = [{transform_indices = @transform_0, window_bounds = array<i64: 1, 8, 128>}, {pipeline_mode = #tpu.pipeline_mode<synchronous>, transform_indices = @transform_1, window_bounds = array<i64: 1, 128>}, {pipeline_mode = #tpu.pipeline_mode<synchronous>, transform_indices = @transform_2, window_bounds = array<i64: 1, 128>}, {pipeline_mode = #tpu.pipeline_mode<synchronous>, transform_indices = @transform_3, window_bounds = array<i64: 1, 128>}, {transform_indices = @transform_4, window_bounds = array<i64: 1, 8, 128>}]} {
    %c0 = arith.constant 0 : index
    %c0_0 = arith.constant 0 : index
    %c0_1 = arith.constant 0 : index
    %0 = vector.load %arg2[%c0, %c0_0, %c0_1] : memref<1x8x128xf32, #tpu.memory_space<vmem>>, vector<1x8x128xf32>
    %c0_2 = arith.constant 0 : index
    %c0_3 = arith.constant 0 : index
    %1 = vector.load %arg3[%c0_2, %c0_3] : memref<1x128xf32, #tpu.memory_space<vmem>>, vector<1x128xf32>
    %2 = vector.shape_cast %1 : vector<1x128xf32> to vector<1x1x128xf32>
    %3 = vector.broadcast %2 : vector<1x1x128xf32> to vector<1x8x128xf32>
    %4 = arith.mulf %0, %3 : vector<1x8x128xf32>
    %c0_4 = arith.constant 0 : index
    %c0_5 = arith.constant 0 : index
    %5 = vector.load %arg4[%c0_4, %c0_5] : memref<1x128xf32, #tpu.memory_space<vmem>>, vector<1x128xf32>
    %6 = vector.shape_cast %5 : vector<1x128xf32> to vector<1x1x128xf32>
    %7 = vector.broadcast %6 : vector<1x1x128xf32> to vector<1x8x128xf32>
    %8 = arith.addf %4, %7 : vector<1x8x128xf32>
    %cst = arith.constant 0.000000e+00 : f32
    %9 = vector.broadcast %cst : f32 to vector<1x8x128xf32>
    %10 = arith.cmpf oge, %8, %9 : vector<1x8x128xf32>
    %c0_6 = arith.constant 0 : index
    %c0_7 = arith.constant 0 : index
    %11 = vector.load %arg5[%c0_6, %c0_7] : memref<1x128xf32, #tpu.memory_space<vmem>>, vector<1x128xf32>
    %12 = vector.shape_cast %11 : vector<1x128xf32> to vector<1x1x128xf32>
    %13 = vector.broadcast %12 : vector<1x1x128xf32> to vector<1x8x128xf32>
    %14 = arith.mulf %13, %8 : vector<1x8x128xf32>
    %15 = arith.select %10, %8, %14 : vector<1x8x128xi1>, vector<1x8x128xf32>
    %c0_8 = arith.constant 0 : index
    %c0_9 = arith.constant 0 : index
    %c0_10 = arith.constant 0 : index
    %16 = vector.load %arg6[%c0_8, %c0_9, %c0_10] : memref<1x8x128xf32, #tpu.memory_space<vmem>>, vector<1x8x128xf32>
    tpu.vector_store %arg6[%c0_8, %c0_9, %c0_10], %15 {strides = array<i32>} : memref<1x8x128xf32, #tpu.memory_space<vmem>>, vector<1x8x128xf32>,
    return
  }
  func.func @transform_0(%arg0: i32, %arg1: i32) -> (i32, i32, i32) {
    %c0_i32 = arith.constant 0 : i32
    %c0_i32_0 = arith.constant 0 : i32
    return %arg0, %arg1, %c0_i32 : i32, i32, i32
  }
  func.func @transform_1(%arg0: i32, %arg1: i32) -> (i32, i32) {
    %c0_i32 = arith.constant 0 : i32
    %c0_i32_0 = arith.constant 0 : i32
    %c0_i32_1 = arith.constant 0 : i32
    return %c0_i32, %c0_i32_0 : i32, i32
  }
  func.func @transform_2(%arg0: i32, %arg1: i32) -> (i32, i32) {
    %c0_i32 = arith.constant 0 : i32
    %c0_i32_0 = arith.constant 0 : i32
    %c0_i32_1 = arith.constant 0 : i32
    return %c0_i32, %c0_i32_0 : i32, i32
  }
  func.func @transform_3(%arg0: i32, %arg1: i32) -> (i32, i32) {
    %c0_i32 = arith.constant 0 : i32
    %c0_i32_0 = arith.constant 0 : i32
    %c0_i32_1 = arith.constant 0 : i32
    return %c0_i32, %c0_i32_0 : i32, i32
  }
  func.func @transform_4(%arg0: i32, %arg1: i32) -> (i32, i32, i32) {
    %c0_i32 = arith.constant 0 : i32
    %c0_i32_0 = arith.constant 0 : i32
    return %arg0, %arg1, %c0_i32 : i32, i32, i32
  }
}

module attributes {stable_mosaic.version = 11 : i64} {
  func.func @_conv_stats_kernel(%arg0: i32, %arg1: i32, %arg2: memref<1x18x18x8xbf16, #tpu.memory_space<vmem>>, %arg3: memref<72x8xbf16, #tpu.memory_space<vmem>>, %arg4: memref<1x128x8xf32, #tpu.memory_space<vmem>>, %arg5: memref<1x1x2x8xf32, #tpu.memory_space<vmem>>) attributes {dimension_semantics = [#tpu.dimension_semantics<parallel>, #tpu.dimension_semantics<arbitrary>], iteration_bounds = array<i64: 2, 2>, scalar_prefetch = 0 : i64, scratch_operands = 0 : i64, tpu.core_type = #tpu.core_type<tc>, window_params = [{transform_indices = @transform_0, window_bounds = array<i64: 1, 18, 18, 8>}, {pipeline_mode = #tpu.pipeline_mode<synchronous>, transform_indices = @transform_1, window_bounds = array<i64: 72, 8>}, {transform_indices = @transform_2, window_bounds = array<i64: 1, 128, 8>}, {transform_indices = @transform_3, window_bounds = array<i64: 1, 1, 2, 8>}]} {
    %c8_i32 = arith.constant 8 : i32
    %0 = arith.muli %arg1, %c8_i32 : i32
    %1 = tpu.assume_multiple %0, 8 : i32
    %c0_i32 = arith.constant 0 : i32
    %2 = arith.addi %1, %c0_i32 : i32
    %c0 = arith.constant 0 : index
    %3 = arith.index_cast %2 : i32 to index
    %c0_0 = arith.constant 0 : index
    %c0_1 = arith.constant 0 : index
    %4 = vector.load %arg2[%c0, %3, %c0_0, %c0_1] : memref<1x18x18x8xbf16, #tpu.memory_space<vmem>>, vector<1x8x18x8xbf16>
    %5 = vector.shape_cast %4 : vector<1x8x18x8xbf16> to vector<8x18x8xbf16>
    %6 = vector.extract_strided_slice %5 {offsets = [0, 0, 0], sizes = [8, 16, 8], strides = [1, 1, 1]} : vector<8x18x8xbf16> to vector<8x16x8xbf16>
    %7 = vector.shape_cast %6 : vector<8x16x8xbf16> to vector<128x8xbf16>
    %8 = vector.extract_strided_slice %5 {offsets = [0, 1, 0], sizes = [8, 16, 8], strides = [1, 1, 1]} : vector<8x18x8xbf16> to vector<8x16x8xbf16>
    %9 = vector.shape_cast %8 : vector<8x16x8xbf16> to vector<128x8xbf16>
    %10 = vector.extract_strided_slice %5 {offsets = [0, 2, 0], sizes = [8, 16, 8], strides = [1, 1, 1]} : vector<8x18x8xbf16> to vector<8x16x8xbf16>
    %11 = vector.shape_cast %10 : vector<8x16x8xbf16> to vector<128x8xbf16>
    %c1_i32 = arith.constant 1 : i32
    %12 = arith.addi %1, %c1_i32 : i32
    %c0_2 = arith.constant 0 : index
    %13 = arith.index_cast %12 : i32 to index
    %c0_3 = arith.constant 0 : index
    %c0_4 = arith.constant 0 : index
    %14 = vector.load %arg2[%c0_2, %13, %c0_3, %c0_4] : memref<1x18x18x8xbf16, #tpu.memory_space<vmem>>, vector<1x8x18x8xbf16>
    %15 = vector.shape_cast %14 : vector<1x8x18x8xbf16> to vector<8x18x8xbf16>
    %16 = vector.extract_strided_slice %15 {offsets = [0, 0, 0], sizes = [8, 16, 8], strides = [1, 1, 1]} : vector<8x18x8xbf16> to vector<8x16x8xbf16>
    %17 = vector.shape_cast %16 : vector<8x16x8xbf16> to vector<128x8xbf16>
    %18 = vector.extract_strided_slice %15 {offsets = [0, 1, 0], sizes = [8, 16, 8], strides = [1, 1, 1]} : vector<8x18x8xbf16> to vector<8x16x8xbf16>
    %19 = vector.shape_cast %18 : vector<8x16x8xbf16> to vector<128x8xbf16>
    %20 = vector.extract_strided_slice %15 {offsets = [0, 2, 0], sizes = [8, 16, 8], strides = [1, 1, 1]} : vector<8x18x8xbf16> to vector<8x16x8xbf16>
    %21 = vector.shape_cast %20 : vector<8x16x8xbf16> to vector<128x8xbf16>
    %c2_i32 = arith.constant 2 : i32
    %22 = arith.addi %1, %c2_i32 : i32
    %c0_5 = arith.constant 0 : index
    %23 = arith.index_cast %22 : i32 to index
    %c0_6 = arith.constant 0 : index
    %c0_7 = arith.constant 0 : index
    %24 = vector.load %arg2[%c0_5, %23, %c0_6, %c0_7] : memref<1x18x18x8xbf16, #tpu.memory_space<vmem>>, vector<1x8x18x8xbf16>
    %25 = vector.shape_cast %24 : vector<1x8x18x8xbf16> to vector<8x18x8xbf16>
    %26 = vector.extract_strided_slice %25 {offsets = [0, 0, 0], sizes = [8, 16, 8], strides = [1, 1, 1]} : vector<8x18x8xbf16> to vector<8x16x8xbf16>
    %27 = vector.shape_cast %26 : vector<8x16x8xbf16> to vector<128x8xbf16>
    %28 = vector.extract_strided_slice %25 {offsets = [0, 1, 0], sizes = [8, 16, 8], strides = [1, 1, 1]} : vector<8x18x8xbf16> to vector<8x16x8xbf16>
    %29 = vector.shape_cast %28 : vector<8x16x8xbf16> to vector<128x8xbf16>
    %30 = vector.extract_strided_slice %25 {offsets = [0, 2, 0], sizes = [8, 16, 8], strides = [1, 1, 1]} : vector<8x18x8xbf16> to vector<8x16x8xbf16>
    %31 = vector.shape_cast %30 : vector<8x16x8xbf16> to vector<128x8xbf16>
    %32 = tpu.concatenate %7, %9, %11, %17, %19, %21, %27, %29, %31 in 1 : vector<128x8xbf16>, vector<128x8xbf16>, vector<128x8xbf16>, vector<128x8xbf16>, vector<128x8xbf16>, vector<128x8xbf16>, vector<128x8xbf16>, vector<128x8xbf16>, vector<128x8xbf16> -> vector<128x72xbf16>
    %c0_8 = arith.constant 0 : index
    %c0_9 = arith.constant 0 : index
    %33 = vector.load %arg3[%c0_8, %c0_9] : memref<72x8xbf16, #tpu.memory_space<vmem>>, vector<72x8xbf16>
    %cst = arith.constant dense<0.000000e+00> : vector<128x8xf32>
    %34 = tpu.matmul %32, %33, %cst {dimension_numbers = #tpu.dot_dimension_numbers<[1], [0], [0], [1], [0, 0, 1, 1], [], []>} : vector<128x72xbf16>, vector<72x8xbf16>, vector<128x8xf32> -> vector<128x8xf32>
    %c0_10 = arith.constant 0 : index
    %c0_11 = arith.constant 0 : index
    %c0_12 = arith.constant 0 : index
    %35 = vector.load %arg4[%c0_10, %c0_11, %c0_12] : memref<1x128x8xf32, #tpu.memory_space<vmem>>, vector<1x128x8xf32>
    %36 = vector.shape_cast %35 : vector<1x128x8xf32> to vector<128x8xf32>
    %37 = vector.shape_cast %34 : vector<128x8xf32> to vector<1x128x8xf32>
    tpu.vector_store %arg4[%c0_10, %c0_11, %c0_12], %37 {strides = array<i32>} : memref<1x128x8xf32, #tpu.memory_space<vmem>>, vector<1x128x8xf32>,
    %cst_13 = arith.constant dense<0.000000e+00> : vector<8xf32>
    %38 = vector.multi_reduction <add>, %34, %cst_13 [0] : vector<128x8xf32> to vector<8xf32>
    %39 = vector.shape_cast %38 : vector<8xf32> to vector<1x8xf32>
    %40 = arith.mulf %34, %34 : vector<128x8xf32>
    %cst_14 = arith.constant dense<0.000000e+00> : vector<8xf32>
    %41 = vector.multi_reduction <add>, %40, %cst_14 [0] : vector<128x8xf32> to vector<8xf32>
    %42 = vector.shape_cast %41 : vector<8xf32> to vector<1x8xf32>
    %43 = tpu.concatenate %39, %42 in 0 : vector<1x8xf32>, vector<1x8xf32> -> vector<2x8xf32>
    %c0_15 = arith.constant 0 : index
    %c0_16 = arith.constant 0 : index
    %c0_17 = arith.constant 0 : index
    %c0_18 = arith.constant 0 : index
    %44 = vector.load %arg5[%c0_15, %c0_16, %c0_17, %c0_18] : memref<1x1x2x8xf32, #tpu.memory_space<vmem>>, vector<1x1x2x8xf32>
    %45 = vector.shape_cast %44 : vector<1x1x2x8xf32> to vector<2x8xf32>
    %46 = vector.shape_cast %43 : vector<2x8xf32> to vector<1x1x2x8xf32>
    tpu.vector_store %arg5[%c0_15, %c0_16, %c0_17, %c0_18], %46 {strides = array<i32>} : memref<1x1x2x8xf32, #tpu.memory_space<vmem>>, vector<1x1x2x8xf32>,
    return
  }
  func.func @transform_0(%arg0: i32, %arg1: i32) -> (i32, i32, i32, i32) {
    %c0_i32 = arith.constant 0 : i32
    %c0_i32_0 = arith.constant 0 : i32
    %c0_i32_1 = arith.constant 0 : i32
    %c0_i32_2 = arith.constant 0 : i32
    return %arg0, %c0_i32, %c0_i32_0, %c0_i32_1 : i32, i32, i32, i32
  }
  func.func @transform_1(%arg0: i32, %arg1: i32) -> (i32, i32) {
    %c0_i32 = arith.constant 0 : i32
    %c0_i32_0 = arith.constant 0 : i32
    %c0_i32_1 = arith.constant 0 : i32
    return %c0_i32, %c0_i32_0 : i32, i32
  }
  func.func @transform_2(%arg0: i32, %arg1: i32) -> (i32, i32, i32) {
    %c0_i32 = arith.constant 0 : i32
    %c0_i32_0 = arith.constant 0 : i32
    return %arg0, %arg1, %c0_i32 : i32, i32, i32
  }
  func.func @transform_3(%arg0: i32, %arg1: i32) -> (i32, i32, i32, i32) {
    %c0_i32 = arith.constant 0 : i32
    %c0_i32_0 = arith.constant 0 : i32
    %c0_i32_1 = arith.constant 0 : i32
    return %arg0, %arg1, %c0_i32, %c0_i32_0 : i32, i32, i32, i32
  }
}

</mosaic_0001>

<llo_original>
// kernel: tile.33
$region0: #{tile.33}
  #allocation0 [shape = 's32[1]{0}', space=sflag, size = 0x4, scoped, tag = 'scoped memory for tile.33']
  %s0 = inlined_call_operand.vmem [shape: f32[8], index: 0, kind: input, shape index: {}]
  %s1 = inlined_call_operand.vmem [shape: f32[16,8], index: 1, kind: output, shape index: {}]
  // Predicated region
  $region2: #{tile.33} parent=0 // pred_check
    _
  $region3: #{tile.33} parent=0 // pred_check_branch
    %3 = sbr.rel (0) target = $region5
  $region4: #{tile.33} parent=0 // pred_region
    _
  $region5: #{tile.33} parent=0 // pred_fallthru
    _
  %v4 = vld [vmem:[%s0] ss:$0 sm:$0xff]
  %5 = vst [vmem:[%s1] sm:$0xff] %v4
  %s6 = scalar_lea.vmem %s1, 8
  %7 = vst [vmem:[%s6] sm:$0xff] %v4

// kernel: tile.34
$region0: #{tile.34}
  %s0 = inlined_call_operand.vmem [shape: f32[16,8], index: 0, kind: input, shape index: {}]
  %s1 = inlined_call_operand.vmem [shape: f32[1,128], index: 1, kind: output, shape index: {}]
  $region1: #{tile.34} parent=0
    #allocation0 [shape = 'u8[4096]{0}', space=vmem, size = 0x1000, scoped, tag = 'scoped mem for output reshape']
    %v2 = vld [vmem:[%s0] sm:$0x1]
    %vm3 = vcmask 64512
    %4 = vst.msk [vmem:[#allocation0] sm:$0x1] %vm3, %v2
    %s5 = scalar_lea.vmem %s0, 15
    %v6 = vld [vmem:[%s5] sm:$0x1]
    %7 = vrot.lane.b32.xlu0 %v6, 120
    %v8 = vpop.permute.xlu0 %7
    %vm9 = vcmask 1048512
    %10 = vst.msk [vmem:[#allocation0] sm:$0x1] %vm9, %v8
    %s11 = scalar_lea.vmem %s0, 14
    %v12 = vld [vmem:[%s11] sm:$0x1]
    %13 = vrot.lane.b32.xlu0 %v12, 112
    %v14 = vpop.permute.xlu0 %13
    %vm15 = vcmask 982912
    %16 = vst.msk [vmem:[#allocation0] sm:$0x1] %vm15, %v14
    %s17 = scalar_lea.vmem %s0, 13
    %v18 = vld [vmem:[%s17] sm:$0x1]
    %19 = vrot.lane.b32.xlu0 %v18, 104
    %v20 = vpop.permute.xlu0 %19
    %vm21 = vcmask 917312
    %22 = vst.msk [vmem:[#allocation0] sm:$0x1] %vm21, %v20
    %s23 = scalar_lea.vmem %s0, 12
    %v24 = vld [vmem:[%s23] sm:$0x1]
    %25 = vrot.lane.b32.xlu0 %v24, 96
    %v26 = vpop.permute.xlu0 %25
    %vm27 = vcmask 851712
    %28 = vst.msk [vmem:[#allocation0] sm:$0x1] %vm27, %v26
    %s29 = scalar_lea.vmem %s0, 11
    %v30 = vld [vmem:[%s29] sm:$0x1]
    %31 = vrot.lane.b32.xlu0 %v30, 88
    %v32 = vpop.permute.xlu0 %31
    %vm33 = vcmask 786112
    %34 = vst.msk [vmem:[#allocation0] sm:$0x1] %vm33, %v32
    %s35 = scalar_lea.vmem %s0, 10
    %v36 = vld [vmem:[%s35] sm:$0x1]
    %37 = vrot.lane.b32.xlu0 %v36, 80
    %v38 = vpop.permute.xlu0 %37
    %vm39 = vcmask 720512
    %40 = vst.msk [vmem:[#allocation0] sm:$0x1] %vm39, %v38
    %s41 = scalar_lea.vmem %s0, 9
    %v42 = vld [vmem:[%s41] sm:$0x1]
    %43 = vrot.lane.b32.xlu0 %v42, 72
    %v44 = vpop.permute.xlu0 %43
    %vm45 = vcmask 654912
    %46 = vst.msk [vmem:[#allocation0] sm:$0x1] %vm45, %v44
    %s47 = scalar_lea.vmem %s0, 8
    %v48 = vld [vmem:[%s47] sm:$0x1]
    %49 = vrot.lane.b32.xlu0 %v48, 64
    %v50 = vpop.permute.xlu0 %49
    %vm51 = vcmask 589312
    %52 = vst.msk [vmem:[#allocation0] sm:$0x1] %vm51, %v50
    %s53 = scalar_lea.vmem %s0, 7
    %v54 = vld [vmem:[%s53] sm:$0x1]
    %55 = vrot.lane.b32.xlu0 %v54, 56
    %v56 = vpop.permute.xlu0 %55
    %vm57 = vcmask 523712
    %58 = vst.msk [vmem:[#allocation0] sm:$0x1] %vm57, %v56
    %s59 = scalar_lea.vmem %s0, 6
    %v60 = vld [vmem:[%s59] sm:$0x1]
    %61 = vrot.lane.b32.xlu0 %v60, 48
    %v62 = vpop.permute.xlu0 %61
    %vm63 = vcmask 458112
    %64 = vst.msk [vmem:[#allocation0] sm:$0x1] %vm63, %v62
    %s65 = scalar_lea.vmem %s0, 5
    %v66 = vld [vmem:[%s65] sm:$0x1]
    %67 = vrot.lane.b32.xlu0 %v66, 40
    %v68 = vpop.permute.xlu0 %67
    %vm69 = vcmask 392512
    %70 = vst.msk [vmem:[#allocation0] sm:$0x1] %vm69, %v68
    %s71 = scalar_lea.vmem %s0, 4
    %v72 = vld [vmem:[%s71] sm:$0x1]
    %73 = vrot.lane.b32.xlu0 %v72, 32
    %v74 = vpop.permute.xlu0 %73
    %vm75 = vcmask 326912
    %76 = vst.msk [vmem:[#allocation0] sm:$0x1] %vm75, %v74
    %s77 = scalar_lea.vmem %s0, 3
    %v78 = vld [vmem:[%s77] sm:$0x1]
    %79 = vrot.lane.b32.xlu0 %v78, 24
    %v80 = vpop.permute.xlu0 %79
    %vm81 = vcmask 261312
    %82 = vst.msk [vmem:[#allocation0] sm:$0x1] %vm81, %v80
    %s83 = scalar_lea.vmem %s0, 2
    %v84 = vld [vmem:[%s83] sm:$0x1]
    %85 = vrot.lane.b32.xlu0 %v84, 16
    %v86 = vpop.permute.xlu0 %85
    %vm87 = vcmask 195712
    %88 = vst.msk [vmem:[#allocation0] sm:$0x1] %vm87, %v86
    %s89 = scalar_lea.vmem %s0, 1
    %v90 = vld [vmem:[%s89] sm:$0x1]
    %91 = vrot.lane.b32.xlu0 %v90, 8
    %v92 = vpop.permute.xlu0 %91
    %vm93 = vcmask 130112
    %94 = vst.msk [vmem:[#allocation0] sm:$0x1] %vm93, %v92
    %s96 = ssub.s32 2, 1
    %v97 = vld [vmem:[#allocation0] sm:%s96]
    %s99 = ssub.s32 2, 1
    %100 = vst [vmem:[%s1] sm:%s99] %v97

// kernel: vnet_conv_block.5
$region0: #{vnet_conv_block.5}
  #allocation0 [shape = 'u32[]', space=smem, size = 0x4, offset = 0x4, fixed_abs, tag = 'smem constant byte address 0x4 - core index']
  #allocation1 [shape = 'u32[72,128]{1,0:T(1,128)}', space=vmem, size = 0x9000, scoped, tag = 'internal scratch']
  %s0 = inlined_call_operand.vmem [shape: f32[2,16,128], index: 0, kind: input, shape index: {}]
  %s1 = inlined_call_operand.vmem [shape: f32[1,128], index: 1, kind: input, shape index: {}]
  %s2 = inlined_call_operand.vmem [shape: f32[1,128], index: 2, kind: input, shape index: {}]
  %s3 = inlined_call_operand.vmem [shape: f32[1,128], index: 3, kind: input, shape index: {}]
  %s4 = inlined_call_operand.vmem [shape: f32[2,16,128], index: 4, kind: output, shape index: {}]
  %s5 = sld [smem:[#allocation0]]
  $region49: #{vnet_conv_block.5} parent=0
    _
  %s7 = ssub.s32 1, %s5
  %s8 = scalar_select 0, %s7, %s5
  loop: start=0, step=1, limit=6
  $region2: #{vnet_conv_block.5} parent=0 // loop_pre_header
    _
  $region3: #{vnet_conv_block.5} parent=0 // loop_header
    %s10 = sphi 0, %s14
    %p11 = scmp.ge.s32.totalorder %s10, 6
    %s17 = sphi 0, %s29
    %s18 = sphi 0, %s25
    %s19 = sphi 0, %s17
    %s20 = sphi 0, %s18
    %s21 = sphi 0, %s19
    %s22 = sphi 0, %s20
    %s34 = sphi 0, %s36
    %s37 = sphi 0, %s34
    %s38 = sphi 0, %s37
    %s54 = sphi 0, %s38
    %s58 = sphi 0, %s58
    %s60 = sphi 0, %s58
    %s61 = sphi 0, %s60
    %s75 = sphi 0, %s61
    %s79 = sphi 0, %s79
    %s81 = sphi 0, %s79
    %s82 = sphi 0, %s81
    %s96 = sphi 0, %s82
    %s100 = sphi 0, %s100
    %s102 = sphi 0, %s100
    %s103 = sphi 0, %s102
    %s117 = sphi 0, %s103
    %s125 = sphi 0, %s127
    %s128 = sphi 0, %s125
    %s129 = sphi 0, %s128
    %s145 = sphi 0, %s129
  $region4: #{vnet_conv_block.5} parent=0 // loop_header_branch
    %13 = sbr.rel (%p11) target = $region8
  $region5: #{vnet_conv_block.5} parent=0 // loop_body
    %s15 = ssub.s32 %s10, 1
    %s16 = ssub.s32 %s10, 2
    %s23 = sadd.s32 1, %s18
    %p24 = scmp.ge.s32.totalorder %s23, 2
    %s25 = scalar_select %p24, 0, %s23
    %s26 = sadd.s32 1, %s17
    %s27 = scalar_select %p24, %s26, %s17
    %p28 = scmp.ge.s32.totalorder %s27, 2
    %s29 = scalar_select %p28, 0, %s27
    %s30 = ssub.s32 %s17, %s29
    %s31 = ssub.s32 %s18, %s25
    %s32 = sor.u32 %s30, %s31
    %p33 = scmp.eq.s32.totalorder %s32, 0
    %s35 = sadd.s32 %s34, 1
    %s36 = scalar_select %p33, %s34, %s35
    %p39 = pneg %p33
    %p40 = scmp.eq.s32.totalorder %s10, 3
    %p41 = por %p39, %p40
    %p42 = scmp.ne.s32.totalorder %s34, %s37
    %p43 = scmp.eq.s32.totalorder %s10, 0
    %p44 = por %p42, %p43
    %p45 = scmp.ne.s32.totalorder %s34, %s37
    %p46 = scmp.eq.s32.totalorder %s15, 3
    %p47 = por %p45, %p46
    %p48 = scmp.ne.s32.totalorder %s37, %s38
    %p49 = scmp.eq.s32.totalorder %s15, 0
    %p50 = por %p48, %p49
    %p51 = scmp.ne.s32.totalorder %s37, %s38
    %p52 = scmp.eq.s32.totalorder %s16, 3
    %p53 = por %p51, %p52
    %p55 = scmp.ne.s32.totalorder %s38, %s54
    %p56 = scmp.eq.s32.totalorder %s16, 0
    %p57 = por %p55, %p56
    %s59 = sadd.s32 %s58, 1
    %p62 = scmp.eq.s32.totalorder %s10, 3
    %p63 = scmp.ne.s32.totalorder %s58, %s60
    %p64 = scmp.eq.s32.totalorder %s10, 0
    %p65 = por %p63, %p64
    %p66 = scmp.ne.s32.totalorder %s58, %s60
    %p67 = scmp.eq.s32.totalorder %s15, 3
    %p68 = por %p66, %p67
    %p69 = scmp.ne.s32.totalorder %s60, %s61
    %p70 = scmp.eq.s32.totalorder %s15, 0
    %p71 = por %p69, %p70
    %p72 = scmp.ne.s32.totalorder %s60, %s61
    %p73 = scmp.eq.s32.totalorder %s16, 3
    %p74 = por %p72, %p73
    %p76 = scmp.ne.s32.totalorder %s61, %s75
    %p77 = scmp.eq.s32.totalorder %s16, 0
    %p78 = por %p76, %p77
    %s80 = sadd.s32 %s79, 1
    %p83 = scmp.eq.s32.totalorder %s10, 3
    %p84 = scmp.ne.s32.totalorder %s79, %s81
    %p85 = scmp.eq.s32.totalorder %s10, 0
    %p86 = por %p84, %p85
    %p87 = scmp.ne.s32.totalorder %s79, %s81
    %p88 = scmp.eq.s32.totalorder %s15, 3
    %p89 = por %p87, %p88
    %p90 = scmp.ne.s32.totalorder %s81, %s82
    %p91 = scmp.eq.s32.totalorder %s15, 0
    %p92 = por %p90, %p91
    %p93 = scmp.ne.s32.totalorder %s81, %s82
    %p94 = scmp.eq.s32.totalorder %s16, 3
    %p95 = por %p93, %p94
    %p97 = scmp.ne.s32.totalorder %s82, %s96
    %p98 = scmp.eq.s32.totalorder %s16, 0
    %p99 = por %p97, %p98
    %s101 = sadd.s32 %s100, 1
    %p104 = scmp.eq.s32.totalorder %s10, 3
    %p105 = scmp.ne.s32.totalorder %s100, %s102
    %p106 = scmp.eq.s32.totalorder %s10, 0
    %p107 = por %p105, %p106
    %p108 = scmp.ne.s32.totalorder %s100, %s102
    %p109 = scmp.eq.s32.totalorder %s15, 3
    %p110 = por %p108, %p109
    %p111 = scmp.ne.s32.totalorder %s102, %s103
    %p112 = scmp.eq.s32.totalorder %s15, 0
    %p113 = por %p111, %p112
    %p114 = scmp.ne.s32.totalorder %s102, %s103
    %p115 = scmp.eq.s32.totalorder %s16, 3
    %p116 = por %p114, %p115
    %p118 = scmp.ne.s32.totalorder %s103, %s117
    %p119 = scmp.eq.s32.totalorder %s16, 0
    %p120 = por %p118, %p119
    %s121 = ssub.s32 %s17, %s29
    %s122 = ssub.s32 %s18, %s25
    %s123 = sor.u32 %s121, %s122
    %p124 = scmp.eq.s32.totalorder %s123, 0
    %s126 = sadd.s32 %s125, 1
    %s127 = scalar_select %p124, %s125, %s126
    %p130 = pneg %p124
    %p131 = scmp.eq.s32.totalorder %s10, 3
    %p132 = por %p130, %p131
    %p133 = scmp.ne.s32.totalorder %s125, %s128
    %p134 = scmp.eq.s32.totalorder %s10, 0
    %p135 = por %p133, %p134
    %p136 = scmp.ne.s32.totalorder %s125, %s128
    %p137 = scmp.eq.s32.totalorder %s15, 3
    %p138 = por %p136, %p137
    %p139 = scmp.ne.s32.totalorder %s128, %s129
    %p140 = scmp.eq.s32.totalorder %s15, 0
    %p141 = por %p139, %p140
    %p142 = scmp.ne.s32.totalorder %s128, %s129
    %p143 = scmp.eq.s32.totalorder %s16, 3
    %p144 = por %p142, %p143
    %p146 = scmp.ne.s32.totalorder %s129, %s145
    %p147 = scmp.eq.s32.totalorder %s16, 0
    %p148 = por %p146, %p147
    %p149 = scmp.le.s32.totalorder 1, %s10
    %p150 = scmp.lt.s32.totalorder %s10, 5
    %p151 = pnand %p149, %p150
    %p152 = pneg %p151
    // Predicated region
    $region9: #{vnet_conv_block.5} parent=5 // pred_check
      _
    $region10: #{vnet_conv_block.5} parent=5 // pred_check_branch
      %154 = sbr.rel (%p151) target = $region12
    $region11: #{vnet_conv_block.5} parent=5 // pred_region
      %s155 = ssub.s32 %s10, 1
      // Predicated region
      $region13: #{vnet_conv_block.5} parent=11 // pred_check
        %p156 = pneg %p71
      $region14: #{vnet_conv_block.5} parent=11 // pred_check_branch
        %158 = sbr.rel (%p156) target = $region16
      $region15: #{vnet_conv_block.5} parent=11 // pred_region
        _
      $region16: #{vnet_conv_block.5} parent=11 // pred_fallthru
        _
      // Predicated region
      $region17: #{vnet_conv_block.5} parent=11 // pred_check
        %p159 = pneg %p92
      $region18: #{vnet_conv_block.5} parent=11 // pred_check_branch
        %161 = sbr.rel (%p159) target = $region20
      $region19: #{vnet_conv_block.5} parent=11 // pred_region
        _
      $region20: #{vnet_conv_block.5} parent=11 // pred_fallthru
        _
      // Predicated region
      $region21: #{vnet_conv_block.5} parent=11 // pred_check
        %p162 = pneg %p113
      $region22: #{vnet_conv_block.5} parent=11 // pred_check_branch
        %164 = sbr.rel (%p162) target = $region24
      $region23: #{vnet_conv_block.5} parent=11 // pred_region
        _
      $region24: #{vnet_conv_block.5} parent=11 // pred_fallthru
        _
    $region12: #{vnet_conv_block.5} parent=5 // pred_fallthru
      _
    %p165 = scmp.lt.s32.totalorder %s10, 4
    // Predicated region
    $region25: #{vnet_conv_block.5} parent=5 // pred_check
      %p166 = pneg %p165
    $region26: #{vnet_conv_block.5} parent=5 // pred_check_branch
      %168 = sbr.rel (%p166) target = $region28
    $region27: #{vnet_conv_block.5} parent=5 // pred_region
      // Predicated region
      $region29: #{vnet_conv_block.5} parent=27 // pred_check
        %p169 = pneg %p44
      $region30: #{vnet_conv_block.5} parent=27 // pred_check_branch
        %171 = sbr.rel (%p169) target = $region32
      $region31: #{vnet_conv_block.5} parent=27 // pred_region
        %p172 = scmp.lt.s32.totalorder %s17, 1
        %s173 = scalar_select %p172, %s17, 1
        %p174 = scmp.lt.s32.totalorder %s18, 1
        %s175 = scalar_select %p174, %s18, 1
        %s176 = smul.addr %s173, 2
        %s177 = sadd.s32 %s175, %s176
        %s178 = smul.addr %s177, 8
        %s179 = scalar_lea.vmem %s0, %s178
      $region32: #{vnet_conv_block.5} parent=27 // pred_fallthru
        _
    $region28: #{vnet_conv_block.5} parent=5 // pred_fallthru
      _
    %p180 = scmp.le.s32.totalorder 1, %s10
    %p181 = scmp.lt.s32.totalorder %s10, 5
    %p182 = pnand %p180, %p181
    %p183 = pneg %p182
    // Predicated region
    $region33: #{vnet_conv_block.5} parent=5 // pred_check
      _
    $region34: #{vnet_conv_block.5} parent=5 // pred_check_branch
      %185 = sbr.rel (%p182) target = $region36
    $region35: #{vnet_conv_block.5} parent=5 // pred_region
      %s186 = ssub.s32 %s10, 1
      %p187 = scmp.lt.s32.totalorder %s19, 1
      %s188 = scalar_select %p187, %s19, 1
      %p189 = scmp.lt.s32.totalorder %s20, 1
      %s190 = scalar_select %p189, %s20, 1
      %s191 = smul.addr %s188, 2
      %s192 = sadd.s32 %s190, %s191
      %s193 = smul.addr %s192, 8
      %s194 = scalar_lea.vmem %s0, %s193
      %p195 = pneg %p50
      %p196 = pneg %p47
      %p197 = pneg %p71
      %p198 = pneg %p68
      %p199 = pneg %p92
      %p200 = pneg %p89
      %p201 = pneg %p113
      %p202 = pneg %p110
      %p203 = pneg %p141
      %p204 = pneg %p138
      %p205 = scmp.lt.s32.totalorder %s19, 1
      %s206 = scalar_select %p205, %s19, 1
      %p207 = scmp.lt.s32.totalorder %s20, 1
      %s208 = scalar_select %p207, %s20, 1
      %s209 = smul.addr %s206, 2
      %s210 = sadd.s32 %s208, %s209
      %s211 = smul.addr %s210, 8
      %s212 = scalar_lea.vmem %s4, %s211
      %p213 = scmp.lt.s32.totalorder %s19, 1
      %s214 = scalar_select %p213, %s19, 1
      %p215 = scmp.lt.s32.totalorder %s20, 1
      %s216 = scalar_select %p215, %s20, 1
      %s217 = smul.addr %s214, 2
      %s218 = sadd.s32 %s216, %s217
      %s219 = smul.addr %s218, 8
      %s220 = scalar_lea.vmem %s0, %s219
      %p221 = scmp.lt.s32.totalorder %s19, 1
      %s222 = scalar_select %p221, %s19, 1
      %p223 = scmp.lt.s32.totalorder %s20, 1
      %s224 = scalar_select %p223, %s20, 1
      %s225 = smul.addr %s222, 2
      %s226 = sadd.s32 %s224, %s225
      %s227 = smul.addr %s226, 8
      %s228 = scalar_lea.vmem %s4, %s227
      %v229 = vld [vmem:[%s220] sm:$0xff]
      %v230 = vld [vmem:[%s1] sm:$0x1]
      %v232 = vperm.slane %v230, 0
      %v234 = vmul.f32 %v229, %v232
      %v235 = vld [vmem:[%s2] sm:$0x1]
      %v237 = vperm.slane %v235, 0
      %v239 = vadd.f32 %v234, %v237
      %vm240 = vcmp.ge.f32.partialorder %v239, 0.0
      %v241 = vld [vmem:[%s3] sm:$0x1]
      %v243 = vperm.slane %v241, 0
      %v245 = vmul.f32 %v243, %v239
      %v246 = vsel %vm240, %v239, %v245
      %247 = vst [vmem:[%s228] sm:$0xff] %v246
      %p248 = scmp.lt.s32.totalorder %s19, 1
      %s249 = scalar_select %p248, %s19, 1
      %p250 = scmp.lt.s32.totalorder %s20, 1
      %s251 = scalar_select %p250, %s20, 1
      %s252 = smul.addr %s249, 2
      %s253 = sadd.s32 %s251, %s252
      %s254 = smul.addr %s253, 8
      %s255 = scalar_lea.vmem %s4, %s254
      // Predicated region
      $region37: #{vnet_conv_block.5} parent=35 // pred_check
        %p256 = pneg %p138
      $region38: #{vnet_conv_block.5} parent=35 // pred_check_branch
        %258 = sbr.rel (%p256) target = $region40
      $region39: #{vnet_conv_block.5} parent=35 // pred_region
        _
      $region40: #{vnet_conv_block.5} parent=35 // pred_fallthru
        _
    $region36: #{vnet_conv_block.5} parent=5 // pred_fallthru
      _
    %p259 = scmp.le.s32.totalorder 2, %s10
    // Predicated region
    $region41: #{vnet_conv_block.5} parent=5 // pred_check
      %p260 = pneg %p259
    $region42: #{vnet_conv_block.5} parent=5 // pred_check_branch
      %262 = sbr.rel (%p260) target = $region44
    $region43: #{vnet_conv_block.5} parent=5 // pred_region
      %s263 = ssub.s32 %s10, 2
      // Predicated region
      $region45: #{vnet_conv_block.5} parent=43 // pred_check
        %p264 = pneg %p144
      $region46: #{vnet_conv_block.5} parent=43 // pred_check_branch
        %266 = sbr.rel (%p264) target = $region48
      $region47: #{vnet_conv_block.5} parent=43 // pred_region
        %p267 = scmp.lt.s32.totalorder %s21, 1
        %s268 = scalar_select %p267, %s21, 1
        %p269 = scmp.lt.s32.totalorder %s22, 1
        %s270 = scalar_select %p269, %s22, 1
        %s271 = smul.addr %s268, 2
        %s272 = sadd.s32 %s270, %s271
        %s273 = smul.addr %s272, 8
        %s274 = scalar_lea.vmem %s4, %s273
      $region48: #{vnet_conv_block.5} parent=43 // pred_fallthru
        _
    $region44: #{vnet_conv_block.5} parent=5 // pred_fallthru
      _
  $region6: #{vnet_conv_block.5} parent=0 // loop_footer
    %s14 = sadd.s32 1, %s10
  $region7: #{vnet_conv_block.5} parent=0 // loop_footer_branch
    %9 = sbr.rel target = $region3
  $region8: #{vnet_conv_block.5} parent=0 // loop_exit
    _

// kernel: vnet_conv_block.4
$region0: #{vnet_conv_block.4}
  #allocation0 [shape = 'u32[]', space=smem, size = 0x4, offset = 0x4, fixed_abs, tag = 'smem constant byte address 0x4 - core index']
  #allocation1 [shape = 'u32[72,128]{1,0:T(1,128)}', space=vmem, size = 0x9000, scoped, tag = 'internal scratch']
  %s0 = inlined_call_operand.vmem [shape: bf16[2,18,18,4], index: 0, kind: input, shape index: {}]
  %s1 = inlined_call_operand.vmem [shape: bf16[36,8], index: 1, kind: input, shape index: {}]
  %s2 = inlined_call_operand.vmem [shape: f32[2,256,8], index: 2, kind: output, shape index: {0}]
  %s3 = inlined_call_operand.vmem [shape: f32[2,2,2,8], index: 3, kind: output, shape index: {1}]
  %4 = xla_tuple %s2, %s3
  %s5 = sld [smem:[#allocation0]]
  $region49: #{vnet_conv_block.4} parent=0
    _
  %s7 = ssub.s32 1, %s5
  %s8 = scalar_select 0, %s7, %s5
  loop: start=0, step=1, limit=6
  $region2: #{vnet_conv_block.4} parent=0 // loop_pre_header
    _
  $region3: #{vnet_conv_block.4} parent=0 // loop_header
    %s10 = sphi 0, %s14
    %p11 = scmp.ge.s32.totalorder %s10, 6
    %s17 = sphi 0, %s29
    %s18 = sphi 0, %s25
    %s19 = sphi 0, %s17
    %s20 = sphi 0, %s18
    %s21 = sphi 0, %s19
    %s22 = sphi 0, %s20
    %s32 = sphi 0, %s34
    %s35 = sphi 0, %s32
    %s36 = sphi 0, %s35
    %s52 = sphi 0, %s36
    %s56 = sphi 0, %s56
    %s58 = sphi 0, %s56
    %s59 = sphi 0, %s58
    %s73 = sphi 0, %s59
    %s81 = sphi 0, %s83
    %s84 = sphi 0, %s81
    %s85 = sphi 0, %s84
    %s101 = sphi 0, %s85
    %s109 = sphi 0, %s111
    %s112 = sphi 0, %s109
    %s113 = sphi 0, %s112
    %s129 = sphi 0, %s113
  $region4: #{vnet_conv_block.4} parent=0 // loop_header_branch
    %13 = sbr.rel (%p11) target = $region8
  $region5: #{vnet_conv_block.4} parent=0 // loop_body
    %s15 = ssub.s32 %s10, 1
    %s16 = ssub.s32 %s10, 2
    %s23 = sadd.s32 1, %s18
    %p24 = scmp.ge.s32.totalorder %s23, 2
    %s25 = scalar_select %p24, 0, %s23
    %s26 = sadd.s32 1, %s17
    %s27 = scalar_select %p24, %s26, %s17
    %p28 = scmp.ge.s32.totalorder %s27, 2
    %s29 = scalar_select %p28, 0, %s27
    %s30 = ssub.s32 %s17, %s29
    %p31 = scmp.eq.s32.totalorder %s30, 0
    %s33 = sadd.s32 %s32, 1
    %s34 = scalar_select %p31, %s32, %s33
    %p37 = pneg %p31
    %p38 = scmp.eq.s32.totalorder %s10, 3
    %p39 = por %p37, %p38
    %p40 = scmp.ne.s32.totalorder %s32, %s35
    %p41 = scmp.eq.s32.totalorder %s10, 0
    %p42 = por %p40, %p41
    %p43 = scmp.ne.s32.totalorder %s32, %s35
    %p44 = scmp.eq.s32.totalorder %s15, 3
    %p45 = por %p43, %p44
    %p46 = scmp.ne.s32.totalorder %s35, %s36
    %p47 = scmp.eq.s32.totalorder %s15, 0
    %p48 = por %p46, %p47
    %p49 = scmp.ne.s32.totalorder %s35, %s36
    %p50 = scmp.eq.s32.totalorder %s16, 3
    %p51 = por %p49, %p50
    %p53 = scmp.ne.s32.totalorder %s36, %s52
    %p54 = scmp.eq.s32.totalorder %s16, 0
    %p55 = por %p53, %p54
    %s57 = sadd.s32 %s56, 1
    %p60 = scmp.eq.s32.totalorder %s10, 3
    %p61 = scmp.ne.s32.totalorder %s56, %s58
    %p62 = scmp.eq.s32.totalorder %s10, 0
    %p63 = por %p61, %p62
    %p64 = scmp.ne.s32.totalorder %s56, %s58
    %p65 = scmp.eq.s32.totalorder %s15, 3
    %p66 = por %p64, %p65
    %p67 = scmp.ne.s32.totalorder %s58, %s59
    %p68 = scmp.eq.s32.totalorder %s15, 0
    %p69 = por %p67, %p68
    %p70 = scmp.ne.s32.totalorder %s58, %s59
    %p71 = scmp.eq.s32.totalorder %s16, 3
    %p72 = por %p70, %p71
    %p74 = scmp.ne.s32.totalorder %s59, %s73
    %p75 = scmp.eq.s32.totalorder %s16, 0
    %p76 = por %p74, %p75
    %s77 = ssub.s32 %s17, %s29
    %s78 = ssub.s32 %s18, %s25
    %s79 = sor.u32 %s77, %s78
    %p80 = scmp.eq.s32.totalorder %s79, 0
    %s82 = sadd.s32 %s81, 1
    %s83 = scalar_select %p80, %s81, %s82
    %p86 = pneg %p80
    %p87 = scmp.eq.s32.totalorder %s10, 3
    %p88 = por %p86, %p87
    %p89 = scmp.ne.s32.totalorder %s81, %s84
    %p90 = scmp.eq.s32.totalorder %s10, 0
    %p91 = por %p89, %p90
    %p92 = scmp.ne.s32.totalorder %s81, %s84
    %p93 = scmp.eq.s32.totalorder %s15, 3
    %p94 = por %p92, %p93
    %p95 = scmp.ne.s32.totalorder %s84, %s85
    %p96 = scmp.eq.s32.totalorder %s15, 0
    %p97 = por %p95, %p96
    %p98 = scmp.ne.s32.totalorder %s84, %s85
    %p99 = scmp.eq.s32.totalorder %s16, 3
    %p100 = por %p98, %p99
    %p102 = scmp.ne.s32.totalorder %s85, %s101
    %p103 = scmp.eq.s32.totalorder %s16, 0
    %p104 = por %p102, %p103
    %s105 = ssub.s32 %s17, %s29
    %s106 = ssub.s32 %s18, %s25
    %s107 = sor.u32 %s105, %s106
    %p108 = scmp.eq.s32.totalorder %s107, 0
    %s110 = sadd.s32 %s109, 1
    %s111 = scalar_select %p108, %s109, %s110
    %p114 = pneg %p108
    %p115 = scmp.eq.s32.totalorder %s10, 3
    %p116 = por %p114, %p115
    %p117 = scmp.ne.s32.totalorder %s109, %s112
    %p118 = scmp.eq.s32.totalorder %s10, 0
    %p119 = por %p117, %p118
    %p120 = scmp.ne.s32.totalorder %s109, %s112
    %p121 = scmp.eq.s32.totalorder %s15, 3
    %p122 = por %p120, %p121
    %p123 = scmp.ne.s32.totalorder %s112, %s113
    %p124 = scmp.eq.s32.totalorder %s15, 0
    %p125 = por %p123, %p124
    %p126 = scmp.ne.s32.totalorder %s112, %s113
    %p127 = scmp.eq.s32.totalorder %s16, 3
    %p128 = por %p126, %p127
    %p130 = scmp.ne.s32.totalorder %s113, %s129
    %p131 = scmp.eq.s32.totalorder %s16, 0
    %p132 = por %p130, %p131
    %p133 = scmp.le.s32.totalorder 1, %s10
    %p134 = scmp.lt.s32.totalorder %s10, 5
    %p135 = pnand %p133, %p134
    %p136 = pneg %p135
    // Predicated region
    $region9: #{vnet_conv_block.4} parent=5 // pred_check
      _
    $region10: #{vnet_conv_block.4} parent=5 // pred_check_branch
      %138 = sbr.rel (%p135) target = $region12
    $region11: #{vnet_conv_block.4} parent=5 // pred_region
      %s139 = ssub.s32 %s10, 1
      // Predicated region
      $region13: #{vnet_conv_block.4} parent=11 // pred_check
        %p140 = pneg %p69
      $region14: #{vnet_conv_block.4} parent=11 // pred_check_branch
        %142 = sbr.rel (%p140) target = $region16
      $region15: #{vnet_conv_block.4} parent=11 // pred_region
        _
      $region16: #{vnet_conv_block.4} parent=11 // pred_fallthru
        _
    $region12: #{vnet_conv_block.4} parent=5 // pred_fallthru
      _
    %p143 = scmp.lt.s32.totalorder %s10, 4
    // Predicated region
    $region17: #{vnet_conv_block.4} parent=5 // pred_check
      %p144 = pneg %p143
    $region18: #{vnet_conv_block.4} parent=5 // pred_check_branch
      %146 = sbr.rel (%p144) target = $region20
    $region19: #{vnet_conv_block.4} parent=5 // pred_region
      // Predicated region
      $region21: #{vnet_conv_block.4} parent=19 // pred_check
        %p147 = pneg %p42
      $region22: #{vnet_conv_block.4} parent=19 // pred_check_branch
        %149 = sbr.rel (%p147) target = $region24
      $region23: #{vnet_conv_block.4} parent=19 // pred_region
        %p150 = scmp.lt.s32.totalorder %s17, 1
        %s151 = scalar_select %p150, %s17, 1
        %s152 = smul.addr %s151, 54
        %s153 = smul.addr %s152, 4
        %s154 = scalar_lea.vmem %s0, %s153
      $region24: #{vnet_conv_block.4} parent=19 // pred_fallthru
        _
    $region20: #{vnet_conv_block.4} parent=5 // pred_fallthru
      _
    %p155 = scmp.le.s32.totalorder 1, %s10
    %p156 = scmp.lt.s32.totalorder %s10, 5
    %p157 = pnand %p155, %p156
    %p158 = pneg %p157
    // Predicated region
    $region25: #{vnet_conv_block.4} parent=5 // pred_check
      _
    $region26: #{vnet_conv_block.4} parent=5 // pred_check_branch
      %160 = sbr.rel (%p157) target = $region28
    $region27: #{vnet_conv_block.4} parent=5 // pred_region
      %s161 = ssub.s32 %s10, 1
      %p162 = scmp.lt.s32.totalorder %s19, 1
      %s163 = scalar_select %p162, %s19, 1
      %s164 = smul.addr %s163, 54
      %s165 = smul.addr %s164, 4
      %s166 = scalar_lea.vmem %s0, %s165
      %p167 = pneg %p48
      %p168 = pneg %p45
      %p169 = pneg %p69
      %p170 = pneg %p66
      %p171 = pneg %p97
      %p172 = pneg %p94
      %s173 = smul.u32 16, %s20
      %p174 = scmp.lt.s32.totalorder %s19, 1
      %s175 = scalar_select %p174, %s19, 1
      %p176 = scmp.lt.s32.totalorder %s173, 31
      %s177 = scalar_select %p176, %s173, 31
      %s178 = smul.addr %s175, 32
      %s179 = sadd.s32 %s177, %s178
      %s180 = smul.addr %s179, 8
      %s181 = scalar_lea.vmem %s2, %s180
      %p182 = pneg %p125
      %p183 = pneg %p122
      %p184 = scmp.lt.s32.totalorder %s19, 1
      %s185 = scalar_select %p184, %s19, 1
      %p186 = scmp.lt.s32.totalorder %s20, 1
      %s187 = scalar_select %p186, %s20, 1
      %s188 = smul.addr %s185, 2
      %s189 = sadd.s32 %s187, %s188
      %s190 = smul.addr %s189, 2
      %s191 = scalar_lea.vmem %s3, %s190
      %p192 = scmp.lt.s32.totalorder %s19, 1
      %s193 = scalar_select %p192, %s19, 1
      %s194 = smul.addr %s193, 54
      %s195 = smul.addr %s194, 4
      %s196 = scalar_lea.vmem %s0, %s195
      %s197 = smul.u32 16, %s20
      %p198 = scmp.lt.s32.totalorder %s19, 1
      %s199 = scalar_select %p198, %s19, 1
      %p200 = scmp.lt.s32.totalorder %s197, 31
      %s201 = scalar_select %p200, %s197, 31
      %s202 = smul.addr %s199, 32
      %s203 = sadd.s32 %s201, %s202
      %s204 = smul.addr %s203, 8
      %s205 = scalar_lea.vmem %s2, %s204
      %s206 = smul.u32 16, %s20
      %p207 = scmp.lt.s32.totalorder %s19, 1
      %s208 = scalar_select %p207, %s19, 1
      %p209 = scmp.lt.s32.totalorder %s20, 1
      %s210 = scalar_select %p209, %s20, 1
      %s211 = smul.addr %s208, 2
      %s212 = sadd.s32 %s210, %s211
      %s213 = smul.addr %s212, 2
      %s214 = scalar_lea.vmem %s3, %s213
      %s216 = smul.u32 %s20, 8
      %s217 = smul.u32 %s216, 3
      %s218 = smul.addr %s217, 4
      %s219 = scalar_lea.vmem %s196, %s218
      %v220 = vld [vmem:[%s219] sm:$0xf]
      %v221 = vld [vmem:[%s219 + $0x4] sm:$0xf]
      %v222 = vld [vmem:[%s219 + $0x8] sm:$0x1]
      %v223 = vld [vmem:[%s219 + $0xc] sm:$0xf]
      %v224 = vld [vmem:[%s219 + $0x10] sm:$0xf]
      %v225 = vld [vmem:[%s219 + $0x14] sm:$0x1]
      %v226 = vld [vmem:[%s219 + $0x18] sm:$0xf]
      %v227 = vld [vmem:[%s219 + $0x1c] sm:$0xf]
      %v228 = vld [vmem:[%s219 + $0x20] sm:$0x1]
      %v229 = vld [vmem:[%s219 + $0x24] sm:$0xf]
      %v230 = vld [vmem:[%s219 + $0x28] sm:$0xf]
      %v231 = vld [vmem:[%s219 + $0x2c] sm:$0x1]
      %v232 = vld [vmem:[%s219 + $0x30] sm:$0xf]
      %v233 = vld [vmem:[%s219 + $0x34] sm:$0xf]
      %v234 = vld [vmem:[%s219 + $0x38] sm:$0x1]
      %v235 = vld [vmem:[%s219 + $0x3c] sm:$0xf]
      %v236 = vld [vmem:[%s219 + $0x40] sm:$0xf]
      %v237 = vld [vmem:[%s219 + $0x44] sm:$0x1]
      %v238 = vld [vmem:[%s219 + $0x48] sm:$0xf]
      %v239 = vld [vmem:[%s219 + $0x4c] sm:$0xf]
      %v240 = vld [vmem:[%s219 + $0x50] sm:$0x1]
      %v241 = vld [vmem:[%s219 + $0x54] sm:$0xf]
      %v242 = vld [vmem:[%s219 + $0x58] sm:$0xf]
      %v243 = vld [vmem:[%s219 + $0x5c] sm:$0x1]
      %vm244 = vsmask.f32 3328
      %vm245 = vsmask.f32 7440
      %vm246 = vmor %vm244, %vm245
      %v248 = vshrl.u32 %v220, 16
      %v250 = vrot.slane %v248, 4
      %v251 = vshll.u32 %v220, 16
      %v253 = vrot.slane %v251, 5
      %v254 = vor.u32 %v250, %v253
      %v255 = vrot.slane %v254, 4
      %v257 = vshll.u32 %v221, 16
      %v259 = vrot.slane %v257, 5
      %v260 = vsel %vm246, %v255, %v259
      %v261 = vshrl.u32 %v221, 16
      %v263 = vrot.slane %v261, 4
      %v264 = vor.u32 %v263, %v259
      %v265 = vrot.slane %v264, 4
      %v267 = vshll.u32 %v222, 16
      %v269 = vrot.slane %v267, 5
      %v270 = vsel %vm246, %v265, %v269
      %v272 = vshrl.u32 %v223, 16
      %v274 = vrot.slane %v272, 4
      %v275 = vshll.u32 %v223, 16
      %v277 = vrot.slane %v275, 5
      %v278 = vor.u32 %v274, %v277
      %v279 = vrot.slane %v278, 4
      %v281 = vshll.u32 %v224, 16
      %v283 = vrot.slane %v281, 5
      %v284 = vsel %vm246, %v279, %v283
      %v285 = vshrl.u32 %v224, 16
      %v287 = vrot.slane %v285, 4
      %v288 = vor.u32 %v287, %v283
      %v289 = vrot.slane %v288, 4
      %v291 = vshll.u32 %v225, 16
      %v293 = vrot.slane %v291, 5
      %v294 = vsel %vm246, %v289, %v293
      %v296 = vshrl.u32 %v226, 16
      %v298 = vrot.slane %v296, 4
      %v299 = vshll.u32 %v226, 16
      %v301 = vrot.slane %v299, 5
      %v302 = vor.u32 %v298, %v301
      %v303 = vrot.slane %v302, 4
      %v305 = vshll.u32 %v227, 16
      %v307 = vrot.slane %v305, 5
      %v308 = vsel %vm246, %v303, %v307
      %v309 = vshrl.u32 %v227, 16
      %v311 = vrot.slane %v309, 4
      %v312 = vor.u32 %v311, %v307
      %v313 = vrot.slane %v312, 4
      %v315 = vshll.u32 %v228, 16
      %v317 = vrot.slane %v315, 5
      %v318 = vsel %vm246, %v313, %v317
      %v320 = vshrl.u32 %v229, 16
      %v322 = vrot.slane %v320, 4
      %v323 = vshll.u32 %v229, 16
      %v325 = vrot.slane %v323, 5
      %v326 = vor.u32 %v322, %v325
      %v327 = vrot.slane %v326, 4
      %v329 = vshll.u32 %v230, 16
      %v331 = vrot.slane %v329, 5
      %v332 = vsel %vm246, %v327, %v331
      %v333 = vshrl.u32 %v230, 16
      %v335 = vrot.slane %v333, 4
      %v336 = vor.u32 %v335, %v331
      %v337 = vrot.slane %v336, 4
      %v339 = vshll.u32 %v231, 16
      %v341 = vrot.slane %v339, 5
      %v342 = vsel %vm246, %v337, %v341
      %v344 = vshrl.u32 %v232, 16
      %v346 = vrot.slane %v344, 4
      %v347 = vshll.u32 %v232, 16
      %v349 = vrot.slane %v347, 5
      %v350 = vor.u32 %v346, %v349
      %v351 = vrot.slane %v350, 4
      %v353 = vshll.u32 %v233, 16
      %v355 = vrot.slane %v353, 5
      %v356 = vsel %vm246, %v351, %v355
      %v357 = vshrl.u32 %v233, 16
      %v359 = vrot.slane %v357, 4
      %v360 = vor.u32 %v359, %v355
      %v361 = vrot.slane %v360, 4
      %v363 = vshll.u32 %v234, 16
      %v365 = vrot.slane %v363, 5
      %v366 = vsel %vm246, %v361, %v365
      %v368 = vshrl.u32 %v235, 16
      %v370 = vrot.slane %v368, 4
      %v371 = vshll.u32 %v235, 16
      %v373 = vrot.slane %v371, 5
      %v374 = vor.u32 %v370, %v373
      %v375 = vrot.slane %v374, 4
      %v377 = vshll.u32 %v236, 16
      %v379 = vrot.slane %v377, 5
      %v380 = vsel %vm246, %v375, %v379
      %v381 = vshrl.u32 %v236, 16
      %v383 = vrot.slane %v381, 4
      %v384 = vor.u32 %v383, %v379
      %v385 = vrot.slane %v384, 4
      %v387 = vshll.u32 %v237, 16
      %v389 = vrot.slane %v387, 5
      %v390 = vsel %vm246, %v385, %v389
      %v392 = vshrl.u32 %v238, 16
      %v394 = vrot.slane %v392, 4
      %v395 = vshll.u32 %v238, 16
      %v397 = vrot.slane %v395, 5
      %v398 = vor.u32 %v394, %v397
      %v399 = vrot.slane %v398, 4
      %v401 = vshll.u32 %v239, 16
      %v403 = vrot.slane %v401, 5
      %v404 = vsel %vm246, %v399, %v403
      %v405 = vshrl.u32 %v239, 16
      %v407 = vrot.slane %v405, 4
      %v408 = vor.u32 %v407, %v403
      %v409 = vrot.slane %v408, 4
      %v411 = vshll.u32 %v240, 16
      %v413 = vrot.slane %v411, 5
      %v414 = vsel %vm246, %v409, %v413
      %v416 = vshrl.u32 %v241, 16
      %v418 = vrot.slane %v416, 4
      %v419 = vshll.u32 %v241, 16
      %v421 = vrot.slane %v419, 5
      %v422 = vor.u32 %v418, %v421
      %v423 = vrot.slane %v422, 4
      %v425 = vshll.u32 %v242, 16
      %v427 = vrot.slane %v425, 5
      %v428 = vsel %vm246, %v423, %v427
      %v429 = vshrl.u32 %v242, 16
      %v431 = vrot.slane %v429, 4
      %v432 = vor.u32 %v431, %v427
      %v433 = vrot.slane %v432, 4
      %v435 = vshll.u32 %v243, 16
      %v437 = vrot.slane %v435, 5
      %v438 = vsel %vm246, %v433, %v437
      %vm463 = vcmask 1042432
      %vm464 = vcmask 1046532
      %vm465 = vmor %vm463, %vm464
      %v466 = vrot.slane %v220, 5
      %v467 = vrot.slane %v466, 4
      %v468 = vrot.slane %v221, 5
      %v469 = vsel %vm465, %v467, %v468
      %v470 = vrot.slane %v468, 4
      %v471 = vrot.slane %v222, 5
      %v472 = vsel %vm465, %v470, %v471
      %v473 = vrot.slane %v223, 5
      %v474 = vrot.slane %v473, 4
      %v475 = vrot.slane %v224, 5
      %v476 = vsel %vm465, %v474, %v475
      %v477 = vrot.slane %v475, 4
      %v478 = vrot.slane %v225, 5
      %v479 = vsel %vm465, %v477, %v478
      %v480 = vrot.slane %v226, 5
      %v481 = vrot.slane %v480, 4
      %v482 = vrot.slane %v227, 5
      %v483 = vsel %vm465, %v481, %v482
      %v484 = vrot.slane %v482, 4
      %v485 = vrot.slane %v228, 5
      %v486 = vsel %vm465, %v484, %v485
      %v487 = vrot.slane %v229, 5
      %v488 = vrot.slane %v487, 4
      %v489 = vrot.slane %v230, 5
      %v490 = vsel %vm465, %v488, %v489
      %v491 = vrot.slane %v489, 4
      %v492 = vrot.slane %v231, 5
      %v493 = vsel %vm465, %v491, %v492
      %v494 = vrot.slane %v232, 5
      %v495 = vrot.slane %v494, 4
      %v496 = vrot.slane %v233, 5
      %v497 = vsel %vm465, %v495, %v496
      %v498 = vrot.slane %v496, 4
      %v499 = vrot.slane %v234, 5
      %v500 = vsel %vm465, %v498, %v499
      %v501 = vrot.slane %v235, 5
      %v502 = vrot.slane %v501, 4
      %v503 = vrot.slane %v236, 5
      %v504 = vsel %vm465, %v502, %v503
      %v505 = vrot.slane %v503, 4
      %v506 = vrot.slane %v237, 5
      %v507 = vsel %vm465, %v505, %v506
      %v508 = vrot.slane %v238, 5
      %v509 = vrot.slane %v508, 4
      %v510 = vrot.slane %v239, 5
      %v511 = vsel %vm465, %v509, %v510
      %v512 = vrot.slane %v510, 4
      %v513 = vrot.slane %v240, 5
      %v514 = vsel %vm465, %v512, %v513
      %v515 = vrot.slane %v241, 5
      %v516 = vrot.slane %v515, 4
      %v517 = vrot.slane %v242, 5
      %v518 = vsel %vm465, %v516, %v517
      %v519 = vrot.slane %v517, 4
      %v520 = vrot.slane %v243, 5
      %v521 = vsel %vm465, %v519, %v520
      %s522 = sadd.s32 %s216, 1
      %s523 = smul.u32 %s522, 3
      %s524 = smul.addr %s523, 4
      %s525 = scalar_lea.vmem %s196, %s524
      %v526 = vld [vmem:[%s525] sm:$0xf]
      %v527 = vld [vmem:[%s525 + $0x4] sm:$0xf]
      %v528 = vld [vmem:[%s525 + $0x8] sm:$0x1]
      %v529 = vld [vmem:[%s525 + $0xc] sm:$0xf]
      %v530 = vld [vmem:[%s525 + $0x10] sm:$0xf]
      %v531 = vld [vmem:[%s525 + $0x14] sm:$0x1]
      %v532 = vld [vmem:[%s525 + $0x18] sm:$0xf]
      %v533 = vld [vmem:[%s525 + $0x1c] sm:$0xf]
      %v534 = vld [vmem:[%s525 + $0x20] sm:$0x1]
      %v535 = vld [vmem:[%s525 + $0x24] sm:$0xf]
      %v536 = vld [vmem:[%s525 + $0x28] sm:$0xf]
      %v537 = vld [vmem:[%s525 + $0x2c] sm:$0x1]
      %v538 = vld [vmem:[%s525 + $0x30] sm:$0xf]
      %v539 = vld [vmem:[%s525 + $0x34] sm:$0xf]
      %v540 = vld [vmem:[%s525 + $0x38] sm:$0x1]
      %v541 = vld [vmem:[%s525 + $0x3c] sm:$0xf]
      %v542 = vld [vmem:[%s525 + $0x40] sm:$0xf]
      %v543 = vld [vmem:[%s525 + $0x44] sm:$0x1]
      %v544 = vld [vmem:[%s525 + $0x48] sm:$0xf]
      %v545 = vld [vmem:[%s525 + $0x4c] sm:$0xf]
      %v546 = vld [vmem:[%s525 + $0x50] sm:$0x1]
      %v547 = vld [vmem:[%s525 + $0x54] sm:$0xf]
      %v548 = vld [vmem:[%s525 + $0x58] sm:$0xf]
      %v549 = vld [vmem:[%s525 + $0x5c] sm:$0x1]
      %v551 = vshrl.u32 %v526, 16
      %v553 = vrot.slane %v551, 4
      %v554 = vshll.u32 %v526, 16
      %v556 = vrot.slane %v554, 5
      %v557 = vor.u32 %v553, %v556
      %v558 = vrot.slane %v557, 4
      %v560 = vshll.u32 %v527, 16
      %v562 = vrot.slane %v560, 5
      %v563 = vsel %vm246, %v558, %v562
      %v564 = vshrl.u32 %v527, 16
      %v566 = vrot.slane %v564, 4
      %v567 = vor.u32 %v566, %v562
      %v568 = vrot.slane %v567, 4
      %v570 = vshll.u32 %v528, 16
      %v572 = vrot.slane %v570, 5
      %v573 = vsel %vm246, %v568, %v572
      %v575 = vshrl.u32 %v529, 16
      %v577 = vrot.slane %v575, 4
      %v578 = vshll.u32 %v529, 16
      %v580 = vrot.slane %v578, 5
      %v581 = vor.u32 %v577, %v580
      %v582 = vrot.slane %v581, 4
      %v584 = vshll.u32 %v530, 16
      %v586 = vrot.slane %v584, 5
      %v587 = vsel %vm246, %v582, %v586
      %v588 = vshrl.u32 %v530, 16
      %v590 = vrot.slane %v588, 4
      %v591 = vor.u32 %v590, %v586
      %v592 = vrot.slane %v591, 4
      %v594 = vshll.u32 %v531, 16
      %v596 = vrot.slane %v594, 5
      %v597 = vsel %vm246, %v592, %v596
      %v599 = vshrl.u32 %v532, 16
      %v601 = vrot.slane %v599, 4
      %v602 = vshll.u32 %v532, 16
      %v604 = vrot.slane %v602, 5
      %v605 = vor.u32 %v601, %v604
      %v606 = vrot.slane %v605, 4
      %v608 = vshll.u32 %v533, 16
      %v610 = vrot.slane %v608, 5
      %v611 = vsel %vm246, %v606, %v610
      %v612 = vshrl.u32 %v533, 16
      %v614 = vrot.slane %v612, 4
      %v615 = vor.u32 %v614, %v610
      %v616 = vrot.slane %v615, 4
      %v618 = vshll.u32 %v534, 16
      %v620 = vrot.slane %v618, 5
      %v621 = vsel %vm246, %v616, %v620
      %v623 = vshrl.u32 %v535, 16
      %v625 = vrot.slane %v623, 4
      %v626 = vshll.u32 %v535, 16
      %v628 = vrot.slane %v626, 5
      %v629 = vor.u32 %v625, %v628
      %v630 = vrot.slane %v629, 4
      %v632 = vshll.u32 %v536, 16
      %v634 = vrot.slane %v632, 5
      %v635 = vsel %vm246, %v630, %v634
      %v636 = vshrl.u32 %v536, 16
      %v638 = vrot.slane %v636, 4
      %v639 = vor.u32 %v638, %v634
      %v640 = vrot.slane %v639, 4
      %v642 = vshll.u32 %v537, 16
      %v644 = vrot.slane %v642, 5
      %v645 = vsel %vm246, %v640, %v644
      %v647 = vshrl.u32 %v538, 16
      %v649 = vrot.slane %v647, 4
      %v650 = vshll.u32 %v538, 16
      %v652 = vrot.slane %v650, 5
      %v653 = vor.u32 %v649, %v652
      %v654 = vrot.slane %v653, 4
      %v656 = vshll.u32 %v539, 16
      %v658 = vrot.slane %v656, 5
      %v659 = vsel %vm246, %v654, %v658
      %v660 = vshrl.u32 %v539, 16
      %v662 = vrot.slane %v660, 4
      %v663 = vor.u32 %v662, %v658
      %v664 = vrot.slane %v663, 4
      %v666 = vshll.u32 %v540, 16
      %v668 = vrot.slane %v666, 5
      %v669 = vsel %vm246, %v664, %v668
      %v671 = vshrl.u32 %v541, 16
      %v673 = vrot.slane %v671, 4
      %v674 = vshll.u32 %v541, 16
      %v676 = vrot.slane %v674, 5
      %v677 = vor.u32 %v673, %v676
      %v678 = vrot.slane %v677, 4
      %v680 = vshll.u32 %v542, 16
      %v682 = vrot.slane %v680, 5
      %v683 = vsel %vm246, %v678, %v682
      %v684 = vshrl.u32 %v542, 16
      %v686 = vrot.slane %v684, 4
      %v687 = vor.u32 %v686, %v682
      %v688 = vrot.slane %v687, 4
      %v690 = vshll.u32 %v543, 16
      %v692 = vrot.slane %v690, 5
      %v693 = vsel %vm246, %v688, %v692
      %v695 = vshrl.u32 %v544, 16
      %v697 = vrot.slane %v695, 4
      %v698 = vshll.u32 %v544, 16
      %v700 = vrot.slane %v698, 5
      %v701 = vor.u32 %v697, %v700
      %v702 = vrot.slane %v701, 4
      %v704 = vshll.u32 %v545, 16
      %v706 = vrot.slane %v704, 5
      %v707 = vsel %vm246, %v702, %v706
      %v708 = vshrl.u32 %v545, 16
      %v710 = vrot.slane %v708, 4
      %v711 = vor.u32 %v710, %v706
      %v712 = vrot.slane %v711, 4
      %v714 = vshll.u32 %v546, 16
      %v716 = vrot.slane %v714, 5
      %v717 = vsel %vm246, %v712, %v716
      %v719 = vshrl.u32 %v547, 16
      %v721 = vrot.slane %v719, 4
      %v722 = vshll.u32 %v547, 16
      %v724 = vrot.slane %v722, 5
      %v725 = vor.u32 %v721, %v724
      %v726 = vrot.slane %v725, 4
      %v728 = vshll.u32 %v548, 16
      %v730 = vrot.slane %v728, 5
      %v731 = vsel %vm246, %v726, %v730
      %v732 = vshrl.u32 %v548, 16
      %v734 = vrot.slane %v732, 4
      %v735 = vor.u32 %v734, %v730
      %v736 = vrot.slane %v735, 4
      %v738 = vshll.u32 %v549, 16
      %v740 = vrot.slane %v738, 5
      %v741 = vsel %vm246, %v736, %v740
      %v766 = vrot.slane %v526, 5
      %v767 = vrot.slane %v766, 4
      %v768 = vrot.slane %v527, 5
      %v769 = vsel %vm465, %v767, %v768
      %v770 = vrot.slane %v768, 4
      %v771 = vrot.slane %v528, 5
      %v772 = vsel %vm465, %v770, %v771
      %v773 = vrot.slane %v529, 5
      %v774 = vrot.slane %v773, 4
      %v775 = vrot.slane %v530, 5
      %v776 = vsel %vm465, %v774, %v775
      %v777 = vrot.slane %v775, 4
      %v778 = vrot.slane %v531, 5
      %v779 = vsel %vm465, %v777, %v778
      %v780 = vrot.slane %v532, 5
      %v781 = vrot.slane %v780, 4
      %v782 = vrot.slane %v533, 5
      %v783 = vsel %vm465, %v781, %v782
      %v784 = vrot.slane %v782, 4
      %v785 = vrot.slane %v534, 5
      %v786 = vsel %vm465, %v784, %v785
      %v787 = vrot.slane %v535, 5
      %v788 = vrot.slane %v787, 4
      %v789 = vrot.slane %v536, 5
      %v790 = vsel %vm465, %v788, %v789
      %v791 = vrot.slane %v789, 4
      %v792 = vrot.slane %v537, 5
      %v793 = vsel %vm465, %v791, %v792
      %v794 = vrot.slane %v538, 5
      %v795 = vrot.slane %v794, 4
      %v796 = vrot.slane %v539, 5
      %v797 = vsel %vm465, %v795, %v796
      %v798 = vrot.slane %v796, 4
      %v799 = vrot.slane %v540, 5
      %v800 = vsel %vm465, %v798, %v799
      %v801 = vrot.slane %v541, 5
      %v802 = vrot.slane %v801, 4
      %v803 = vrot.slane %v542, 5
      %v804 = vsel %vm465, %v802, %v803
      %v805 = vrot.slane %v803, 4
      %v806 = vrot.slane %v543, 5
      %v807 = vsel %vm465, %v805, %v806
      %v808 = vrot.slane %v544, 5
      %v809 = vrot.slane %v808, 4
      %v810 = vrot.slane %v545, 5
      %v811 = vsel %vm465, %v809, %v810
      %v812 = vrot.slane %v810, 4
      %v813 = vrot.slane %v546, 5
      %v814 = vsel %vm465, %v812, %v813
      %v815 = vrot.slane %v547, 5
      %v816 = vrot.slane %v815, 4
      %v817 = vrot.slane %v548, 5
      %v818 = vsel %vm465, %v816, %v817
      %v819 = vrot.slane %v817, 4
      %v820 = vrot.slane %v549, 5
      %v821 = vsel %vm465, %v819, %v820
      %s822 = sadd.s32 %s216, 2
      %s823 = smul.u32 %s822, 3
      %s824 = smul.addr %s823, 4
      %s825 = scalar_lea.vmem %s196, %s824
      %v826 = vld [vmem:[%s825] sm:$0xf]
      %v827 = vld [vmem:[%s825 + $0x4] sm:$0xf]
      %v828 = vld [vmem:[%s825 + $0x8] sm:$0x1]
      %v829 = vld [vmem:[%s825 + $0xc] sm:$0xf]
      %v830 = vld [vmem:[%s825 + $0x10] sm:$0xf]
      %v831 = vld [vmem:[%s825 + $0x14] sm:$0x1]
      %v832 = vld [vmem:[%s825 + $0x18] sm:$0xf]
      %v833 = vld [vmem:[%s825 + $0x1c] sm:$0xf]
      %v834 = vld [vmem:[%s825 + $0x20] sm:$0x1]
      %v835 = vld [vmem:[%s825 + $0x24] sm:$0xf]
      %v836 = vld [vmem:[%s825 + $0x28] sm:$0xf]
      %v837 = vld [vmem:[%s825 + $0x2c] sm:$0x1]
      %v838 = vld [vmem:[%s825 + $0x30] sm:$0xf]
      %v839 = vld [vmem:[%s825 + $0x34] sm:$0xf]
      %v840 = vld [vmem:[%s825 + $0x38] sm:$0x1]
      %v841 = vld [vmem:[%s825 + $0x3c] sm:$0xf]
      %v842 = vld [vmem:[%s825 + $0x40] sm:$0xf]
      %v843 = vld [vmem:[%s825 + $0x44] sm:$0x1]
      %v844 = vld [vmem:[%s825 + $0x48] sm:$0xf]
      %v845 = vld [vmem:[%s825 + $0x4c] sm:$0xf]
      %v846 = vld [vmem:[%s825 + $0x50] sm:$0x1]
      %v847 = vld [vmem:[%s825 + $0x54] sm:$0xf]
      %v848 = vld [vmem:[%s825 + $0x58] sm:$0xf]
      %v849 = vld [vmem:[%s825 + $0x5c] sm:$0x1]
      %v851 = vshrl.u32 %v826, 16
      %v853 = vrot.slane %v851, 4
      %v854 = vshll.u32 %v826, 16
      %v856 = vrot.slane %v854, 5
      %v857 = vor.u32 %v853, %v856
      %v858 = vrot.slane %v857, 4
      %v860 = vshll.u32 %v827, 16
      %v862 = vrot.slane %v860, 5
      %v863 = vsel %vm246, %v858, %v862
      %v864 = vshrl.u32 %v827, 16
      %v866 = vrot.slane %v864, 4
      %v867 = vor.u32 %v866, %v862
      %v868 = vrot.slane %v867, 4
      %v870 = vshll.u32 %v828, 16
      %v872 = vrot.slane %v870, 5
      %v873 = vsel %vm246, %v868, %v872
      %v875 = vshrl.u32 %v829, 16
      %v877 = vrot.slane %v875, 4
      %v878 = vshll.u32 %v829, 16
      %v880 = vrot.slane %v878, 5
      %v881 = vor.u32 %v877, %v880
      %v882 = vrot.slane %v881, 4
      %v884 = vshll.u32 %v830, 16
      %v886 = vrot.slane %v884, 5
      %v887 = vsel %vm246, %v882, %v886
      %v888 = vshrl.u32 %v830, 16
      %v890 = vrot.slane %v888, 4
      %v891 = vor.u32 %v890, %v886
      %v892 = vrot.slane %v891, 4
      %v894 = vshll.u32 %v831, 16
      %v896 = vrot.slane %v894, 5
      %v897 = vsel %vm246, %v892, %v896
      %v899 = vshrl.u32 %v832, 16
      %v901 = vrot.slane %v899, 4
      %v902 = vshll.u32 %v832, 16
      %v904 = vrot.slane %v902, 5
      %v905 = vor.u32 %v901, %v904
      %v906 = vrot.slane %v905, 4
      %v908 = vshll.u32 %v833, 16
      %v910 = vrot.slane %v908, 5
      %v911 = vsel %vm246, %v906, %v910
      %v912 = vshrl.u32 %v833, 16
      %v914 = vrot.slane %v912, 4
      %v915 = vor.u32 %v914, %v910
      %v916 = vrot.slane %v915, 4
      %v918 = vshll.u32 %v834, 16
      %v920 = vrot.slane %v918, 5
      %v921 = vsel %vm246, %v916, %v920
      %v923 = vshrl.u32 %v835, 16
      %v925 = vrot.slane %v923, 4
      %v926 = vshll.u32 %v835, 16
      %v928 = vrot.slane %v926, 5
      %v929 = vor.u32 %v925, %v928
      %v930 = vrot.slane %v929, 4
      %v932 = vshll.u32 %v836, 16
      %v934 = vrot.slane %v932, 5
      %v935 = vsel %vm246, %v930, %v934
      %v936 = vshrl.u32 %v836, 16
      %v938 = vrot.slane %v936, 4
      %v939 = vor.u32 %v938, %v934
      %v940 = vrot.slane %v939, 4
      %v942 = vshll.u32 %v837, 16
      %v944 = vrot.slane %v942, 5
      %v945 = vsel %vm246, %v940, %v944
      %v947 = vshrl.u32 %v838, 16
      %v949 = vrot.slane %v947, 4
      %v950 = vshll.u32 %v838, 16
      %v952 = vrot.slane %v950, 5
      %v953 = vor.u32 %v949, %v952
      %v954 = vrot.slane %v953, 4
      %v956 = vshll.u32 %v839, 16
      %v958 = vrot.slane %v956, 5
      %v959 = vsel %vm246, %v954, %v958
      %v960 = vshrl.u32 %v839, 16
      %v962 = vrot.slane %v960, 4
      %v963 = vor.u32 %v962, %v958
      %v964 = vrot.slane %v963, 4
      %v966 = vshll.u32 %v840, 16
      %v968 = vrot.slane %v966, 5
      %v969 = vsel %vm246, %v964, %v968
      %v971 = vshrl.u32 %v841, 16
      %v973 = vrot.slane %v971, 4
      %v974 = vshll.u32 %v841, 16
      %v976 = vrot.slane %v974, 5
      %v977 = vor.u32 %v973, %v976
      %v978 = vrot.slane %v977, 4
      %v980 = vshll.u32 %v842, 16
      %v982 = vrot.slane %v980, 5
      %v983 = vsel %vm246, %v978, %v982
      %v984 = vshrl.u32 %v842, 16
      %v986 = vrot.slane %v984, 4
      %v987 = vor.u32 %v986, %v982
      %v988 = vrot.slane %v987, 4
      %v990 = vshll.u32 %v843, 16
      %v992 = vrot.slane %v990, 5
      %v993 = vsel %vm246, %v988, %v992
      %v995 = vshrl.u32 %v844, 16
      %v997 = vrot.slane %v995, 4
      %v998 = vshll.u32 %v844, 16
      %v1000 = vrot.slane %v998, 5
      %v1001 = vor.u32 %v997, %v1000
      %v1002 = vrot.slane %v1001, 4
      %v1004 = vshll.u32 %v845, 16
      %v1006 = vrot.slane %v1004, 5
      %v1007 = vsel %vm246, %v1002, %v1006
      %v1008 = vshrl.u32 %v845, 16
      %v1010 = vrot.slane %v1008, 4
      %v1011 = vor.u32 %v1010, %v1006
      %v1012 = vrot.slane %v1011, 4
      %v1014 = vshll.u32 %v846, 16
      %v1016 = vrot.slane %v1014, 5
      %v1017 = vsel %vm246, %v1012, %v1016
      %v1019 = vshrl.u32 %v847, 16
      %v1021 = vrot.slane %v1019, 4
      %v1022 = vshll.u32 %v847, 16
      %v1024 = vrot.slane %v1022, 5
      %v1025 = vor.u32 %v1021, %v1024
      %v1026 = vrot.slane %v1025, 4
      %v1028 = vshll.u32 %v848, 16
      %v1030 = vrot.slane %v1028, 5
      %v1031 = vsel %vm246, %v1026, %v1030
      %v1032 = vshrl.u32 %v848, 16
      %v1034 = vrot.slane %v1032, 4
      %v1035 = vor.u32 %v1034, %v1030
      %v1036 = vrot.slane %v1035, 4
      %v1038 = vshll.u32 %v849, 16
      %v1040 = vrot.slane %v1038, 5
      %v1041 = vsel %vm246, %v1036, %v1040
      %v1066 = vrot.slane %v826, 5
      %v1067 = vrot.slane %v1066, 4
      %v1068 = vrot.slane %v827, 5
      %v1069 = vsel %vm465, %v1067, %v1068
      %v1070 = vrot.slane %v1068, 4
      %v1071 = vrot.slane %v828, 5
      %v1072 = vsel %vm465, %v1070, %v1071
      %v1073 = vrot.slane %v829, 5
      %v1074 = vrot.slane %v1073, 4
      %v1075 = vrot.slane %v830, 5
      %v1076 = vsel %vm465, %v1074, %v1075
      %v1077 = vrot.slane %v1075, 4
      %v1078 = vrot.slane %v831, 5
      %v1079 = vsel %vm465, %v1077, %v1078
      %v1080 = vrot.slane %v832, 5
      %v1081 = vrot.slane %v1080, 4
      %v1082 = vrot.slane %v833, 5
      %v1083 = vsel %vm465, %v1081, %v1082
      %v1084 = vrot.slane %v1082, 4
      %v1085 = vrot.slane %v834, 5
      %v1086 = vsel %vm465, %v1084, %v1085
      %v1087 = vrot.slane %v835, 5
      %v1088 = vrot.slane %v1087, 4
      %v1089 = vrot.slane %v836, 5
      %v1090 = vsel %vm465, %v1088, %v1089
      %v1091 = vrot.slane %v1089, 4
      %v1092 = vrot.slane %v837, 5
      %v1093 = vsel %vm465, %v1091, %v1092
      %v1094 = vrot.slane %v838, 5
      %v1095 = vrot.slane %v1094, 4
      %v1096 = vrot.slane %v839, 5
      %v1097 = vsel %vm465, %v1095, %v1096
      %v1098 = vrot.slane %v1096, 4
      %v1099 = vrot.slane %v840, 5
      %v1100 = vsel %vm465, %v1098, %v1099
      %v1101 = vrot.slane %v841, 5
      %v1102 = vrot.slane %v1101, 4
      %v1103 = vrot.slane %v842, 5
      %v1104 = vsel %vm465, %v1102, %v1103
      %v1105 = vrot.slane %v1103, 4
      %v1106 = vrot.slane %v843, 5
      %v1107 = vsel %vm465, %v1105, %v1106
      %v1108 = vrot.slane %v844, 5
      %v1109 = vrot.slane %v1108, 4
      %v1110 = vrot.slane %v845, 5
      %v1111 = vsel %vm465, %v1109, %v1110
      %v1112 = vrot.slane %v1110, 4
      %v1113 = vrot.slane %v846, 5
      %v1114 = vsel %vm465, %v1112, %v1113
      %v1115 = vrot.slane %v847, 5
      %v1116 = vrot.slane %v1115, 4
      %v1117 = vrot.slane %v848, 5
      %v1118 = vsel %vm465, %v1116, %v1117
      %v1119 = vrot.slane %v1117, 4
      %v1120 = vrot.slane %v849, 5
      %v1121 = vsel %vm465, %v1119, %v1120
      %v1122 = vunpack.c.l.b16 %v220
      %v1123 = vunpack.c.l.b16 %v221
      %v1124 = vunpack.c.l.b16 %v223
      %v1125 = vunpack.c.l.b16 %v224
      %v1126 = vunpack.c.l.b16 %v226
      %v1127 = vunpack.c.l.b16 %v227
      %v1128 = vunpack.c.l.b16 %v229
      %v1129 = vunpack.c.l.b16 %v230
      %v1130 = vunpack.c.l.b16 %v232
      %v1131 = vunpack.c.l.b16 %v233
      %v1132 = vunpack.c.l.b16 %v235
      %v1133 = vunpack.c.l.b16 %v236
      %v1134 = vunpack.c.l.b16 %v238
      %v1135 = vunpack.c.l.b16 %v239
      %v1136 = vunpack.c.l.b16 %v241
      %v1137 = vunpack.c.l.b16 %v242
      %v1138 = vpack.c.b16 %v1123, %v1122
      %v1139 = vpack.c.b16 %v1125, %v1124
      %v1140 = vpack.c.b16 %v1127, %v1126
      %v1141 = vpack.c.b16 %v1129, %v1128
      %v1142 = vpack.c.b16 %v1131, %v1130
      %v1143 = vpack.c.b16 %v1133, %v1132
      %v1144 = vpack.c.b16 %v1135, %v1134
      %v1145 = vpack.c.b16 %v1137, %v1136
      %v1146 = vunpack.c.l.b16 %v260
      %v1147 = vunpack.c.l.b16 %v270
      %v1148 = vunpack.c.l.b16 %v284
      %v1149 = vunpack.c.l.b16 %v294
      %v1150 = vunpack.c.l.b16 %v308
      %v1151 = vunpack.c.l.b16 %v318
      %v1152 = vunpack.c.l.b16 %v332
      %v1153 = vunpack.c.l.b16 %v342
      %v1154 = vunpack.c.l.b16 %v356
      %v1155 = vunpack.c.l.b16 %v366
      %v1156 = vunpack.c.l.b16 %v380
      %v1157 = vunpack.c.l.b16 %v390
      %v1158 = vunpack.c.l.b16 %v404
      %v1159 = vunpack.c.l.b16 %v414
      %v1160 = vunpack.c.l.b16 %v428
      %v1161 = vunpack.c.l.b16 %v438
      %v1162 = vpack.c.b16 %v1147, %v1146
      %v1163 = vpack.c.b16 %v1149, %v1148
      %v1164 = vpack.c.b16 %v1151, %v1150
      %v1165 = vpack.c.b16 %v1153, %v1152
      %v1166 = vpack.c.b16 %v1155, %v1154
      %v1167 = vpack.c.b16 %v1157, %v1156
      %v1168 = vpack.c.b16 %v1159, %v1158
      %v1169 = vpack.c.b16 %v1161, %v1160
      %1170 = vrot.lane.b32.xlu0 %v1162, 4
      %v1171 = vpop.permute.xlu0 %1170
      %1172 = vrot.lane.b32.xlu0 %v1163, 4
      %v1173 = vpop.permute.xlu0 %1172
      %1174 = vrot.lane.b32.xlu0 %v1164, 4
      %v1175 = vpop.permute.xlu0 %1174
      %1176 = vrot.lane.b32.xlu0 %v1165, 4
      %v1177 = vpop.permute.xlu0 %1176
      %1178 = vrot.lane.b32.xlu0 %v1166, 4
      %v1179 = vpop.permute.xlu0 %1178
      %1180 = vrot.lane.b32.xlu0 %v1167, 4
      %v1181 = vpop.permute.xlu0 %1180
      %1182 = vrot.lane.b32.xlu0 %v1168, 4
      %v1183 = vpop.permute.xlu0 %1182
      %1184 = vrot.lane.b32.xlu0 %v1169, 4
      %v1185 = vpop.permute.xlu0 %1184
      %v1186 = vunpack.c.l.b16 %v469
      %v1187 = vunpack.c.l.b16 %v472
      %v1188 = vunpack.c.l.b16 %v476
      %v1189 = vunpack.c.l.b16 %v479
      %v1190 = vunpack.c.l.b16 %v483
      %v1191 = vunpack.c.l.b16 %v486
      %v1192 = vunpack.c.l.b16 %v490
      %v1193 = vunpack.c.l.b16 %v493
      %v1194 = vunpack.c.l.b16 %v497
      %v1195 = vunpack.c.l.b16 %v500
      %v1196 = vunpack.c.l.b16 %v504
      %v1197 = vunpack.c.l.b16 %v507
      %v1198 = vunpack.c.l.b16 %v511
      %v1199 = vunpack.c.l.b16 %v514
      %v1200 = vunpack.c.l.b16 %v518
      %v1201 = vunpack.c.l.b16 %v521
      %v1202 = vpack.c.b16 %v1187, %v1186
      %v1203 = vpack.c.b16 %v1189, %v1188
      %v1204 = vpack.c.b16 %v1191, %v1190
      %v1205 = vpack.c.b16 %v1193, %v1192
      %v1206 = vpack.c.b16 %v1195, %v1194
      %v1207 = vpack.c.b16 %v1197, %v1196
      %v1208 = vpack.c.b16 %v1199, %v1198
      %v1209 = vpack.c.b16 %v1201, %v1200
      %1210 = vrot.lane.b32.xlu0 %v1202, 8
      %v1211 = vpop.permute.xlu0 %1210
      %1212 = vrot.lane.b32.xlu0 %v1203, 8
      %v1213 = vpop.permute.xlu0 %1212
      %1214 = vrot.lane.b32.xlu0 %v1204, 8
      %v1215 = vpop.permute.xlu0 %1214
      %1216 = vrot.lane.b32.xlu0 %v1205, 8
      %v1217 = vpop.permute.xlu0 %1216
      %1218 = vrot.lane.b32.xlu0 %v1206, 8
      %v1219 = vpop.permute.xlu0 %1218
      %1220 = vrot.lane.b32.xlu0 %v1207, 8
      %v1221 = vpop.permute.xlu0 %1220
      %1222 = vrot.lane.b32.xlu0 %v1208, 8
      %v1223 = vpop.permute.xlu0 %1222
      %1224 = vrot.lane.b32.xlu0 %v1209, 8
      %v1225 = vpop.permute.xlu0 %1224
      %v1226 = vunpack.c.l.b16 %v526
      %v1227 = vunpack.c.l.b16 %v527
      %v1228 = vunpack.c.l.b16 %v529
      %v1229 = vunpack.c.l.b16 %v530
      %v1230 = vunpack.c.l.b16 %v532
      %v1231 = vunpack.c.l.b16 %v533
      %v1232 = vunpack.c.l.b16 %v535
      %v1233 = vunpack.c.l.b16 %v536
      %v1234 = vunpack.c.l.b16 %v538
      %v1235 = vunpack.c.l.b16 %v539
      %v1236 = vunpack.c.l.b16 %v541
      %v1237 = vunpack.c.l.b16 %v542
      %v1238 = vunpack.c.l.b16 %v544
      %v1239 = vunpack.c.l.b16 %v545
      %v1240 = vunpack.c.l.b16 %v547
      %v1241 = vunpack.c.l.b16 %v548
      %v1242 = vpack.c.b16 %v1227, %v1226
      %v1243 = vpack.c.b16 %v1229, %v1228
      %v1244 = vpack.c.b16 %v1231, %v1230
      %v1245 = vpack.c.b16 %v1233, %v1232
      %v1246 = vpack.c.b16 %v1235, %v1234
      %v1247 = vpack.c.b16 %v1237, %v1236
      %v1248 = vpack.c.b16 %v1239, %v1238
      %v1249 = vpack.c.b16 %v1241, %v1240
      %1250 = vrot.lane.b32.xlu0 %v1242, 12
      %v1251 = vpop.permute.xlu0 %1250
      %1252 = vrot.lane.b32.xlu0 %v1243, 12
      %v1253 = vpop.permute.xlu0 %1252
      %1254 = vrot.lane.b32.xlu0 %v1244, 12
      %v1255 = vpop.permute.xlu0 %1254
      %1256 = vrot.lane.b32.xlu0 %v1245, 12
      %v1257 = vpop.permute.xlu0 %1256
      %1258 = vrot.lane.b32.xlu0 %v1246, 12
      %v1259 = vpop.permute.xlu0 %1258
      %1260 = vrot.lane.b32.xlu0 %v1247, 12
      %v1261 = vpop.permute.xlu0 %1260
      %1262 = vrot.lane.b32.xlu0 %v1248, 12
      %v1263 = vpop.permute.xlu0 %1262
      %1264 = vrot.lane.b32.xlu0 %v1249, 12
      %v1265 = vpop.permute.xlu0 %1264
      %v1266 = vunpack.c.l.b16 %v563
      %v1267 = vunpack.c.l.b16 %v573
      %v1268 = vunpack.c.l.b16 %v587
      %v1269 = vunpack.c.l.b16 %v597
      %v1270 = vunpack.c.l.b16 %v611
      %v1271 = vunpack.c.l.b16 %v621
      %v1272 = vunpack.c.l.b16 %v635
      %v1273 = vunpack.c.l.b16 %v645
      %v1274 = vunpack.c.l.b16 %v659
      %v1275 = vunpack.c.l.b16 %v669
      %v1276 = vunpack.c.l.b16 %v683
      %v1277 = vunpack.c.l.b16 %v693
      %v1278 = vunpack.c.l.b16 %v707
      %v1279 = vunpack.c.l.b16 %v717
      %v1280 = vunpack.c.l.b16 %v731
      %v1281 = vunpack.c.l.b16 %v741
      %v1282 = vpack.c.b16 %v1267, %v1266
      %v1283 = vpack.c.b16 %v1269, %v1268
      %v1284 = vpack.c.b16 %v1271, %v1270
      %v1285 = vpack.c.b16 %v1273, %v1272
      %v1286 = vpack.c.b16 %v1275, %v1274
      %v1287 = vpack.c.b16 %v1277, %v1276
      %v1288 = vpack.c.b16 %v1279, %v1278
      %v1289 = vpack.c.b16 %v1281, %v1280
      %1290 = vrot.lane.b32.xlu0 %v1282, 16
      %v1291 = vpop.permute.xlu0 %1290
      %1292 = vrot.lane.b32.xlu0 %v1283, 16
      %v1293 = vpop.permute.xlu0 %1292
      %1294 = vrot.lane.b32.xlu0 %v1284, 16
      %v1295 = vpop.permute.xlu0 %1294
      %1296 = vrot.lane.b32.xlu0 %v1285, 16
      %v1297 = vpop.permute.xlu0 %1296
      %1298 = vrot.lane.b32.xlu0 %v1286, 16
      %v1299 = vpop.permute.xlu0 %1298
      %1300 = vrot.lane.b32.xlu0 %v1287, 16
      %v1301 = vpop.permute.xlu0 %1300
      %1302 = vrot.lane.b32.xlu0 %v1288, 16
      %v1303 = vpop.permute.xlu0 %1302
      %1304 = vrot.lane.b32.xlu0 %v1289, 16
      %v1305 = vpop.permute.xlu0 %1304
      %v1306 = vunpack.c.l.b16 %v769
      %v1307 = vunpack.c.l.b16 %v772
      %v1308 = vunpack.c.l.b16 %v776
      %v1309 = vunpack.c.l.b16 %v779
      %v1310 = vunpack.c.l.b16 %v783
      %v1311 = vunpack.c.l.b16 %v786
      %v1312 = vunpack.c.l.b16 %v790
      %v1313 = vunpack.c.l.b16 %v793
      %v1314 = vunpack.c.l.b16 %v797
      %v1315 = vunpack.c.l.b16 %v800
      %v1316 = vunpack.c.l.b16 %v804
      %v1317 = vunpack.c.l.b16 %v807
      %v1318 = vunpack.c.l.b16 %v811
      %v1319 = vunpack.c.l.b16 %v814
      %v1320 = vunpack.c.l.b16 %v818
      %v1321 = vunpack.c.l.b16 %v821
      %v1322 = vpack.c.b16 %v1307, %v1306
      %v1323 = vpack.c.b16 %v1309, %v1308
      %v1324 = vpack.c.b16 %v1311, %v1310
      %v1325 = vpack.c.b16 %v1313, %v1312
      %v1326 = vpack.c.b16 %v1315, %v1314
      %v1327 = vpack.c.b16 %v1317, %v1316
      %v1328 = vpack.c.b16 %v1319, %v1318
      %v1329 = vpack.c.b16 %v1321, %v1320
      %1330 = vrot.lane.b32.xlu0 %v1322, 20
      %v1331 = vpop.permute.xlu0 %1330
      %1332 = vrot.lane.b32.xlu0 %v1323, 20
      %v1333 = vpop.permute.xlu0 %1332
      %1334 = vrot.lane.b32.xlu0 %v1324, 20
      %v1335 = vpop.permute.xlu0 %1334
      %1336 = vrot.lane.b32.xlu0 %v1325, 20
      %v1337 = vpop.permute.xlu0 %1336
      %1338 = vrot.lane.b32.xlu0 %v1326, 20
      %v1339 = vpop.permute.xlu0 %1338
      %1340 = vrot.lane.b32.xlu0 %v1327, 20
      %v1341 = vpop.permute.xlu0 %1340
      %1342 = vrot.lane.b32.xlu0 %v1328, 20
      %v1343 = vpop.permute.xlu0 %1342
      %1344 = vrot.lane.b32.xlu0 %v1329, 20
      %v1345 = vpop.permute.xlu0 %1344
      %v1346 = vunpack.c.l.b16 %v826
      %v1347 = vunpack.c.l.b16 %v827
      %v1348 = vunpack.c.l.b16 %v829
      %v1349 = vunpack.c.l.b16 %v830
      %v1350 = vunpack.c.l.b16 %v832
      %v1351 = vunpack.c.l.b16 %v833
      %v1352 = vunpack.c.l.b16 %v835
      %v1353 = vunpack.c.l.b16 %v836
      %v1354 = vunpack.c.l.b16 %v838
      %v1355 = vunpack.c.l.b16 %v839
      %v1356 = vunpack.c.l.b16 %v841
      %v1357 = vunpack.c.l.b16 %v842
      %v1358 = vunpack.c.l.b16 %v844
      %v1359 = vunpack.c.l.b16 %v845
      %v1360 = vunpack.c.l.b16 %v847
      %v1361 = vunpack.c.l.b16 %v848
      %v1362 = vpack.c.b16 %v1347, %v1346
      %v1363 = vpack.c.b16 %v1349, %v1348
      %v1364 = vpack.c.b16 %v1351, %v1350
      %v1365 = vpack.c.b16 %v1353, %v1352
      %v1366 = vpack.c.b16 %v1355, %v1354
      %v1367 = vpack.c.b16 %v1357, %v1356
      %v1368 = vpack.c.b16 %v1359, %v1358
      %v1369 = vpack.c.b16 %v1361, %v1360
      %1370 = vrot.lane.b32.xlu0 %v1362, 24
      %v1371 = vpop.permute.xlu0 %1370
      %1372 = vrot.lane.b32.xlu0 %v1363, 24
      %v1373 = vpop.permute.xlu0 %1372
      %1374 = vrot.lane.b32.xlu0 %v1364, 24
      %v1375 = vpop.permute.xlu0 %1374
      %1376 = vrot.lane.b32.xlu0 %v1365, 24
      %v1377 = vpop.permute.xlu0 %1376
      %1378 = vrot.lane.b32.xlu0 %v1366, 24
      %v1379 = vpop.permute.xlu0 %1378
      %1380 = vrot.lane.b32.xlu0 %v1367, 24
      %v1381 = vpop.permute.xlu0 %1380
      %1382 = vrot.lane.b32.xlu0 %v1368, 24
      %v1383 = vpop.permute.xlu0 %1382
      %1384 = vrot.lane.b32.xlu0 %v1369, 24
      %v1385 = vpop.permute.xlu0 %1384
      %v1386 = vunpack.c.l.b16 %v863
      %v1387 = vunpack.c.l.b16 %v873
      %v1388 = vunpack.c.l.b16 %v887
      %v1389 = vunpack.c.l.b16 %v897
      %v1390 = vunpack.c.l.b16 %v911
      %v1391 = vunpack.c.l.b16 %v921
      %v1392 = vunpack.c.l.b16 %v935
      %v1393 = vunpack.c.l.b16 %v945
      %v1394 = vunpack.c.l.b16 %v959
      %v1395 = vunpack.c.l.b16 %v969
      %v1396 = vunpack.c.l.b16 %v983
      %v1397 = vunpack.c.l.b16 %v993
      %v1398 = vunpack.c.l.b16 %v1007
      %v1399 = vunpack.c.l.b16 %v1017
      %v1400 = vunpack.c.l.b16 %v1031
      %v1401 = vunpack.c.l.b16 %v1041
      %v1402 = vpack.c.b16 %v1387, %v1386
      %v1403 = vpack.c.b16 %v1389, %v1388
      %v1404 = vpack.c.b16 %v1391, %v1390
      %v1405 = vpack.c.b16 %v1393, %v1392
      %v1406 = vpack.c.b16 %v1395, %v1394
      %v1407 = vpack.c.b16 %v1397, %v1396
      %v1408 = vpack.c.b16 %v1399, %v1398
      %v1409 = vpack.c.b16 %v1401, %v1400
      %1410 = vrot.lane.b32.xlu0 %v1402, 28
      %v1411 = vpop.permute.xlu0 %1410
      %1412 = vrot.lane.b32.xlu0 %v1403, 28
      %v1413 = vpop.permute.xlu0 %1412
      %1414 = vrot.lane.b32.xlu0 %v1404, 28
      %v1415 = vpop.permute.xlu0 %1414
      %1416 = vrot.lane.b32.xlu0 %v1405, 28
      %v1417 = vpop.permute.xlu0 %1416
      %1418 = vrot.lane.b32.xlu0 %v1406, 28
      %v1419 = vpop.permute.xlu0 %1418
      %1420 = vrot.lane.b32.xlu0 %v1407, 28
      %v1421 = vpop.permute.xlu0 %1420
      %1422 = vrot.lane.b32.xlu0 %v1408, 28
      %v1423 = vpop.permute.xlu0 %1422
      %1424 = vrot.lane.b32.xlu0 %v1409, 28
      %v1425 = vpop.permute.xlu0 %1424
      %v1426 = vunpack.c.l.b16 %v1069
      %v1427 = vunpack.c.l.b16 %v1072
      %v1428 = vunpack.c.l.b16 %v1076
      %v1429 = vunpack.c.l.b16 %v1079
      %v1430 = vunpack.c.l.b16 %v1083
      %v1431 = vunpack.c.l.b16 %v1086
      %v1432 = vunpack.c.l.b16 %v1090
      %v1433 = vunpack.c.l.b16 %v1093
      %v1434 = vunpack.c.l.b16 %v1097
      %v1435 = vunpack.c.l.b16 %v1100
      %v1436 = vunpack.c.l.b16 %v1104
      %v1437 = vunpack.c.l.b16 %v1107
      %v1438 = vunpack.c.l.b16 %v1111
      %v1439 = vunpack.c.l.b16 %v1114
      %v1440 = vunpack.c.l.b16 %v1118
      %v1441 = vunpack.c.l.b16 %v1121
      %v1442 = vpack.c.b16 %v1427, %v1426
      %v1443 = vpack.c.b16 %v1429, %v1428
      %v1444 = vpack.c.b16 %v1431, %v1430
      %v1445 = vpack.c.b16 %v1433, %v1432
      %v1446 = vpack.c.b16 %v1435, %v1434
      %v1447 = vpack.c.b16 %v1437, %v1436
      %v1448 = vpack.c.b16 %v1439, %v1438
      %v1449 = vpack.c.b16 %v1441, %v1440
      %1450 = vrot.lane.b32.xlu0 %v1442, 32
      %v1451 = vpop.permute.xlu0 %1450
      %1452 = vrot.lane.b32.xlu0 %v1443, 32
      %v1453 = vpop.permute.xlu0 %1452
      %1454 = vrot.lane.b32.xlu0 %v1444, 32
      %v1455 = vpop.permute.xlu0 %1454
      %1456 = vrot.lane.b32.xlu0 %v1445, 32
      %v1457 = vpop.permute.xlu0 %1456
      %1458 = vrot.lane.b32.xlu0 %v1446, 32
      %v1459 = vpop.permute.xlu0 %1458
      %1460 = vrot.lane.b32.xlu0 %v1447, 32
      %v1461 = vpop.permute.xlu0 %1460
      %1462 = vrot.lane.b32.xlu0 %v1448, 32
      %v1463 = vpop.permute.xlu0 %1462
      %1464 = vrot.lane.b32.xlu0 %v1449, 32
      %v1465 = vpop.permute.xlu0 %1464
      %vm1466 = vcmask 31744
      %v1469 = vsel %vm1466, %v1138, %v1171
      %v1472 = vsel %vm1466, %v1139, %v1173
      %v1475 = vsel %vm1466, %v1140, %v1175
      %v1478 = vsel %vm1466, %v1141, %v1177
      %v1481 = vsel %vm1466, %v1142, %v1179
      %v1484 = vsel %vm1466, %v1143, %v1181
      %v1487 = vsel %vm1466, %v1144, %v1183
      %v1490 = vsel %vm1466, %v1145, %v1185
      %vm1491 = vcmask 64512
      %v1493 = vsel %vm1491, %v1469, %v1211
      %v1495 = vsel %vm1491, %v1472, %v1213
      %v1497 = vsel %vm1491, %v1475, %v1215
      %v1499 = vsel %vm1491, %v1478, %v1217
      %v1501 = vsel %vm1491, %v1481, %v1219
      %v1503 = vsel %vm1491, %v1484, %v1221
      %v1505 = vsel %vm1491, %v1487, %v1223
      %v1507 = vsel %vm1491, %v1490, %v1225
      %vm1508 = vcmask 97280
      %v1510 = vsel %vm1508, %v1493, %v1251
      %v1512 = vsel %vm1508, %v1495, %v1253
      %v1514 = vsel %vm1508, %v1497, %v1255
      %v1516 = vsel %vm1508, %v1499, %v1257
      %v1518 = vsel %vm1508, %v1501, %v1259
      %v1520 = vsel %vm1508, %v1503, %v1261
      %v1522 = vsel %vm1508, %v1505, %v1263
      %v1524 = vsel %vm1508, %v1507, %v1265
      %vm1525 = vcmask 130048
      %v1527 = vsel %vm1525, %v1510, %v1291
      %v1529 = vsel %vm1525, %v1512, %v1293
      %v1531 = vsel %vm1525, %v1514, %v1295
      %v1533 = vsel %vm1525, %v1516, %v1297
      %v1535 = vsel %vm1525, %v1518, %v1299
      %v1537 = vsel %vm1525, %v1520, %v1301
      %v1539 = vsel %vm1525, %v1522, %v1303
      %v1541 = vsel %vm1525, %v1524, %v1305
      %vm1542 = vcmask 162816
      %v1544 = vsel %vm1542, %v1527, %v1331
      %v1546 = vsel %vm1542, %v1529, %v1333
      %v1548 = vsel %vm1542, %v1531, %v1335
      %v1550 = vsel %vm1542, %v1533, %v1337
      %v1552 = vsel %vm1542, %v1535, %v1339
      %v1554 = vsel %vm1542, %v1537, %v1341
      %v1556 = vsel %vm1542, %v1539, %v1343
      %v1558 = vsel %vm1542, %v1541, %v1345
      %vm1559 = vcmask 195584
      %v1561 = vsel %vm1559, %v1544, %v1371
      %v1563 = vsel %vm1559, %v1546, %v1373
      %v1565 = vsel %vm1559, %v1548, %v1375
      %v1567 = vsel %vm1559, %v1550, %v1377
      %v1569 = vsel %vm1559, %v1552, %v1379
      %v1571 = vsel %vm1559, %v1554, %v1381
      %v1573 = vsel %vm1559, %v1556, %v1383
      %v1575 = vsel %vm1559, %v1558, %v1385
      %vm1576 = vcmask 228352
      %v1578 = vsel %vm1576, %v1561, %v1411
      %v1580 = vsel %vm1576, %v1563, %v1413
      %v1582 = vsel %vm1576, %v1565, %v1415
      %v1584 = vsel %vm1576, %v1567, %v1417
      %v1586 = vsel %vm1576, %v1569, %v1419
      %v1588 = vsel %vm1576, %v1571, %v1421
      %v1590 = vsel %vm1576, %v1573, %v1423
      %v1592 = vsel %vm1576, %v1575, %v1425
      %vm1593 = vcmask 261120
      %v1595 = vsel %vm1593, %v1578, %v1451
      %v1597 = vsel %vm1593, %v1580, %v1453
      %v1599 = vsel %vm1593, %v1582, %v1455
      %v1601 = vsel %vm1593, %v1584, %v1457
      %v1603 = vsel %vm1593, %v1586, %v1459
      %v1605 = vsel %vm1593, %v1588, %v1461
      %v1607 = vsel %vm1593, %v1590, %v1463
      %v1609 = vsel %vm1593, %v1592, %v1465
      %v1610 = vld [vmem:[%s1] sm:$0xf]
      %v1611 = vld [vmem:[%s1 + $0x4] sm:$0xf]
      %v1612 = vld [vmem:[%s1 + $0x8] sm:$0xf]
      %v1613 = vld [vmem:[%s1 + $0xc] sm:$0xf]
      %v1614 = vld [vmem:[%s1 + $0x10] sm:$0x3]
      %v1620 = vunpack.c.l.b16 %v1610
      %v1621 = vunpack.c.l.b16 %v1611
      %v1622 = vunpack.c.l.b16 %v1612
      %v1623 = vunpack.c.l.b16 %v1613
      %v1624 = vunpack.c.l.b16 %v1614
      %v1625 = vpack.c.b16 %v1621, %v1620
      %v1626 = vpack.c.b16 %v1623, %v1622
      %v1627 = vpack.c.b16 %v1624, %v1624
      %vm1630 = vcmask 293888
      %v1631 = vsel %vm1630, %v1595, 0
      %v1633 = vsel %vm1630, %v1597, 0
      %v1635 = vsel %vm1630, %v1599, 0
      %v1637 = vsel %vm1630, %v1601, 0
      %v1639 = vsel %vm1630, %v1603, 0
      %v1641 = vsel %vm1630, %v1605, 0
      %v1643 = vsel %vm1630, %v1607, 0
      %v1645 = vsel %vm1630, %v1609, 0
      %vm1647 = vcmask 1041408
      %v1649 = vsel %vm1647, %v1627, 0
      %1651 = vmatpush.bf16.msra.mxu0 0
      %1652 = vmatpush.bf16.msra.mxu0 0
      %1653 = vmatpush.bf16.msra.mxu0 0
      %1654 = vmatpush.bf16.msra.mxu0 0
      %1655 = vmatpush.bf16.msra.mxu0 0
      %1656 = vmatpush.bf16.msra.mxu0 %v1649
      %1657 = vmatpush.bf16.msra.mxu0 %v1626
      %1658 = vmatpush.bf16.msra.mxu0 %v1625
      %1659 = vmatmul.bf16.gmra.mxu0 %v1631
      %v1660 = vpop.f32.mrf.mxu0
      %v1661 = vadd.f32 0.0, %v1660
      %v1662 = vpop.f32.mrf.mxu0
      %v1663 = vadd.f32 0.0, %v1662
      %1664 = vmatmul.bf16.gmra.mxu0 %v1633
      %v1665 = vpop.f32.mrf.mxu0
      %v1666 = vadd.f32 0.0, %v1665
      %v1667 = vpop.f32.mrf.mxu0
      %v1668 = vadd.f32 0.0, %v1667
      %1669 = vmatmul.bf16.gmra.mxu0 %v1635
      %v1670 = vpop.f32.mrf.mxu0
      %v1671 = vadd.f32 0.0, %v1670
      %v1672 = vpop.f32.mrf.mxu0
      %v1673 = vadd.f32 0.0, %v1672
      %1674 = vmatmul.bf16.gmra.mxu0 %v1637
      %v1675 = vpop.f32.mrf.mxu0
      %v1676 = vadd.f32 0.0, %v1675
      %v1677 = vpop.f32.mrf.mxu0
      %v1678 = vadd.f32 0.0, %v1677
      %1679 = vmatmul.bf16.gmra.mxu0 %v1639
      %v1680 = vpop.f32.mrf.mxu0
      %v1681 = vadd.f32 0.0, %v1680
      %v1682 = vpop.f32.mrf.mxu0
      %v1683 = vadd.f32 0.0, %v1682
      %1684 = vmatmul.bf16.gmra.mxu0 %v1641
      %v1685 = vpop.f32.mrf.mxu0
      %v1686 = vadd.f32 0.0, %v1685
      %v1687 = vpop.f32.mrf.mxu0
      %v1688 = vadd.f32 0.0, %v1687
      %1689 = vmatmul.bf16.gmra.mxu0 %v1643
      %v1690 = vpop.f32.mrf.mxu0
      %v1691 = vadd.f32 0.0, %v1690
      %v1692 = vpop.f32.mrf.mxu0
      %v1693 = vadd.f32 0.0, %v1692
      %1694 = vmatmul.bf16.gmra.mxu0 %v1645
      %v1695 = vpop.f32.mrf.mxu0
      %v1696 = vadd.f32 0.0, %v1695
      %v1697 = vpop.f32.mrf.mxu0
      %v1698 = vadd.f32 0.0, %v1697
      %1699 = vdwg.mxu0
      %1700 = vst.msk [vmem:[%s205] sm:$0xff] %vm1491, %v1661
      %1701 = vst.msk [vmem:[%s205 + $0x8] sm:$0xff] %vm1491, %v1663
      %1702 = vst.msk [vmem:[%s205 + $0x10] sm:$0xff] %vm1491, %v1666
      %1703 = vst.msk [vmem:[%s205 + $0x18] sm:$0xff] %vm1491, %v1668
      %1704 = vst.msk [vmem:[%s205 + $0x20] sm:$0xff] %vm1491, %v1671
      %1705 = vst.msk [vmem:[%s205 + $0x28] sm:$0xff] %vm1491, %v1673
      %1706 = vst.msk [vmem:[%s205 + $0x30] sm:$0xff] %vm1491, %v1676
      %1707 = vst.msk [vmem:[%s205 + $0x38] sm:$0xff] %vm1491, %v1678
      %1708 = vst.msk [vmem:[%s205 + $0x40] sm:$0xff] %vm1491, %v1681
      %1709 = vst.msk [vmem:[%s205 + $0x48] sm:$0xff] %vm1491, %v1683
      %1710 = vst.msk [vmem:[%s205 + $0x50] sm:$0xff] %vm1491, %v1686
      %1711 = vst.msk [vmem:[%s205 + $0x58] sm:$0xff] %vm1491, %v1688
      %1712 = vst.msk [vmem:[%s205 + $0x60] sm:$0xff] %vm1491, %v1691
      %1713 = vst.msk [vmem:[%s205 + $0x68] sm:$0xff] %vm1491, %v1693
      %1714 = vst.msk [vmem:[%s205 + $0x70] sm:$0xff] %vm1491, %v1696
      %1715 = vst.msk [vmem:[%s205 + $0x78] sm:$0xff] %vm1491, %v1698
      %v1716 = vsel %vm1491, %v1661, 0.0
      %v1717 = vsel %vm1491, %v1663, 0.0
      %v1718 = vadd.f32 %v1716, %v1717
      %v1719 = vsel %vm1491, %v1666, 0.0
      %v1720 = vadd.f32 %v1718, %v1719
      %v1721 = vsel %vm1491, %v1668, 0.0
      %v1722 = vadd.f32 %v1720, %v1721
      %v1723 = vsel %vm1491, %v1671, 0.0
      %v1724 = vadd.f32 %v1722, %v1723
      %v1725 = vsel %vm1491, %v1673, 0.0
      %v1726 = vadd.f32 %v1724, %v1725
      %v1727 = vsel %vm1491, %v1676, 0.0
      %v1728 = vadd.f32 %v1726, %v1727
      %v1729 = vsel %vm1491, %v1678, 0.0
      %v1730 = vadd.f32 %v1728, %v1729
      %v1731 = vsel %vm1491, %v1681, 0.0
      %v1732 = vadd.f32 %v1730, %v1731
      %v1733 = vsel %vm1491, %v1683, 0.0
      %v1734 = vadd.f32 %v1732, %v1733
      %v1735 = vsel %vm1491, %v1686, 0.0
      %v1736 = vadd.f32 %v1734, %v1735
      %v1737 = vsel %vm1491, %v1688, 0.0
      %v1738 = vadd.f32 %v1736, %v1737
      %v1739 = vsel %vm1491, %v1691, 0.0
      %v1740 = vadd.f32 %v1738, %v1739
      %v1741 = vsel %vm1491, %v1693, 0.0
      %v1742 = vadd.f32 %v1740, %v1741
      %v1743 = vsel %vm1491, %v1696, 0.0
      %v1744 = vadd.f32 %v1742, %v1743
      %v1745 = vsel %vm1491, %v1698, 0.0
      %v1746 = vadd.f32 %v1744, %v1745
      %v1747 = vrot.slane %v1746, 4
      %v1748 = vadd.f32 %v1746, %v1747
      %v1749 = vrot.slane %v1748, 2
      %v1750 = vadd.f32 %v1748, %v1749
      %v1751 = vrot.slane %v1750, 1
      %v1752 = vadd.f32 %v1750, %v1751
      %v1753 = vmul.f32 %v1661, %v1661
      %v1754 = vmul.f32 %v1663, %v1663
      %v1755 = vmul.f32 %v1666, %v1666
      %v1756 = vmul.f32 %v1668, %v1668
      %v1757 = vmul.f32 %v1671, %v1671
      %v1758 = vmul.f32 %v1673, %v1673
      %v1759 = vmul.f32 %v1676, %v1676
      %v1760 = vmul.f32 %v1678, %v1678
      %v1761 = vmul.f32 %v1681, %v1681
      %v1762 = vmul.f32 %v1683, %v1683
      %v1763 = vmul.f32 %v1686, %v1686
      %v1764 = vmul.f32 %v1688, %v1688
      %v1765 = vmul.f32 %v1691, %v1691
      %v1766 = vmul.f32 %v1693, %v1693
      %v1767 = vmul.f32 %v1696, %v1696
      %v1768 = vmul.f32 %v1698, %v1698
      %v1769 = vsel %vm1491, %v1753, 0.0
      %v1770 = vsel %vm1491, %v1754, 0.0
      %v1771 = vadd.f32 %v1769, %v1770
      %v1772 = vsel %vm1491, %v1755, 0.0
      %v1773 = vadd.f32 %v1771, %v1772
      %v1774 = vsel %vm1491, %v1756, 0.0
      %v1775 = vadd.f32 %v1773, %v1774
      %v1776 = vsel %vm1491, %v1757, 0.0
      %v1777 = vadd.f32 %v1775, %v1776
      %v1778 = vsel %vm1491, %v1758, 0.0
      %v1779 = vadd.f32 %v1777, %v1778
      %v1780 = vsel %vm1491, %v1759, 0.0
      %v1781 = vadd.f32 %v1779, %v1780
      %v1782 = vsel %vm1491, %v1760, 0.0
      %v1783 = vadd.f32 %v1781, %v1782
      %v1784 = vsel %vm1491, %v1761, 0.0
      %v1785 = vadd.f32 %v1783, %v1784
      %v1786 = vsel %vm1491, %v1762, 0.0
      %v1787 = vadd.f32 %v1785, %v1786
      %v1788 = vsel %vm1491, %v1763, 0.0
      %v1789 = vadd.f32 %v1787, %v1788
      %v1790 = vsel %vm1491, %v1764, 0.0
      %v1791 = vadd.f32 %v1789, %v1790
      %v1792 = vsel %vm1491, %v1765, 0.0
      %v1793 = vadd.f32 %v1791, %v1792
      %v1794 = vsel %vm1491, %v1766, 0.0
      %v1795 = vadd.f32 %v1793, %v1794
      %v1796 = vsel %vm1491, %v1767, 0.0
      %v1797 = vadd.f32 %v1795, %v1796
      %v1798 = vsel %vm1491, %v1768, 0.0
      %v1799 = vadd.f32 %v1797, %v1798
      %v1800 = vrot.slane %v1799, 4
      %v1801 = vadd.f32 %v1799, %v1800
      %v1802 = vrot.slane %v1801, 2
      %v1803 = vadd.f32 %v1801, %v1802
      %v1804 = vrot.slane %v1803, 1
      %v1805 = vadd.f32 %v1803, %v1804
      %vm1806 = vcmask 1040384
      %v1807 = vsel %vm1806, %v1752, %v1805
      %vm1808 = vcmask 58368
      %1809 = vst.msk [vmem:[%s214] sm:$0x3] %vm1808, %v1807
      %s1810 = smul.u32 16, %s20
      %p1811 = scmp.lt.s32.totalorder %s19, 1
      %s1812 = scalar_select %p1811, %s19, 1
      %p1813 = scmp.lt.s32.totalorder %s1810, 31
      %s1814 = scalar_select %p1813, %s1810, 31
      %s1815 = smul.addr %s1812, 32
      %s1816 = sadd.s32 %s1814, %s1815
      %s1817 = smul.addr %s1816, 8
      %s1818 = scalar_lea.vmem %s2, %s1817
      %p1819 = scmp.lt.s32.totalorder %s19, 1
      %s1820 = scalar_select %p1819, %s19, 1
      %p1821 = scmp.lt.s32.totalorder %s20, 1
      %s1822 = scalar_select %p1821, %s20, 1
      %s1823 = smul.addr %s1820, 2
      %s1824 = sadd.s32 %s1822, %s1823
      %s1825 = smul.addr %s1824, 2
      %s1826 = scalar_lea.vmem %s3, %s1825
      // Predicated region
      $region29: #{vnet_conv_block.4} parent=27 // pred_check
        %p1827 = pneg %p94
      $region30: #{vnet_conv_block.4} parent=27 // pred_check_branch
        %1829 = sbr.rel (%p1827) target = $region32
      $region31: #{vnet_conv_block.4} parent=27 // pred_region
        %s1830 = smul.u32 16, %s20
      $region32: #{vnet_conv_block.4} parent=27 // pred_fallthru
        _
      // Predicated region
      $region33: #{vnet_conv_block.4} parent=27 // pred_check
        %p1831 = pneg %p122
      $region34: #{vnet_conv_block.4} parent=27 // pred_check_branch
        %1833 = sbr.rel (%p1831) target = $region36
      $region35: #{vnet_conv_block.4} parent=27 // pred_region
        _
      $region36: #{vnet_conv_block.4} parent=27 // pred_fallthru
        _
    $region28: #{vnet_conv_block.4} parent=5 // pred_fallthru
      _
    %p1834 = scmp.le.s32.totalorder 2, %s10
    // Predicated region
    $region37: #{vnet_conv_block.4} parent=5 // pred_check
      %p1835 = pneg %p1834
    $region38: #{vnet_conv_block.4} parent=5 // pred_check_branch
      %1837 = sbr.rel (%p1835) target = $region40
    $region39: #{vnet_conv_block.4} parent=5 // pred_region
      %s1838 = ssub.s32 %s10, 2
      // Predicated region
      $region41: #{vnet_conv_block.4} parent=39 // pred_check
        %p1839 = pneg %p100
      $region42: #{vnet_conv_block.4} parent=39 // pred_check_branch
        %1841 = sbr.rel (%p1839) target = $region44
      $region43: #{vnet_conv_block.4} parent=39 // pred_region
        %s1842 = smul.u32 16, %s22
        %p1843 = scmp.lt.s32.totalorder %s21, 1
        %s1844 = scalar_select %p1843, %s21, 1
        %p1845 = scmp.lt.s32.totalorder %s1842, 31
        %s1846 = scalar_select %p1845, %s1842, 31
        %s1847 = smul.addr %s1844, 32
        %s1848 = sadd.s32 %s1846, %s1847
        %s1849 = smul.addr %s1848, 8
        %s1850 = scalar_lea.vmem %s2, %s1849
      $region44: #{vnet_conv_block.4} parent=39 // pred_fallthru
        _
      // Predicated region
      $region45: #{vnet_conv_block.4} parent=39 // pred_check
        %p1851 = pneg %p128
      $region46: #{vnet_conv_block.4} parent=39 // pred_check_branch
        %1853 = sbr.rel (%p1851) target = $region48
      $region47: #{vnet_conv_block.4} parent=39 // pred_region
        %p1854 = scmp.lt.s32.totalorder %s21, 1
        %s1855 = scalar_select %p1854, %s21, 1
        %p1856 = scmp.lt.s32.totalorder %s22, 1
        %s1857 = scalar_select %p1856, %s22, 1
        %s1858 = smul.addr %s1855, 2
        %s1859 = sadd.s32 %s1857, %s1858
        %s1860 = smul.addr %s1859, 2
        %s1861 = scalar_lea.vmem %s3, %s1860
      $region48: #{vnet_conv_block.4} parent=39 // pred_fallthru
        _
    $region40: #{vnet_conv_block.4} parent=5 // pred_fallthru
      _
  $region6: #{vnet_conv_block.4} parent=0 // loop_footer
    %s14 = sadd.s32 1, %s10
  $region7: #{vnet_conv_block.4} parent=0 // loop_footer_branch
    %9 = sbr.rel target = $region3
  $region8: #{vnet_conv_block.4} parent=0 // loop_exit
    _

// kernel: vnet_conv_block.6
$region0: #{vnet_conv_block.6}
  #allocation0 [shape = 'u32[]', space=smem, size = 0x4, offset = 0x4, fixed_abs, tag = 'smem constant byte address 0x4 - core index']
  #allocation1 [shape = 'u32[72,128]{1,0:T(1,128)}', space=vmem, size = 0x9000, scoped, tag = 'internal scratch']
  %s0 = inlined_call_operand.vmem [shape: bf16[2,18,18,8], index: 0, kind: input, shape index: {}]
  %s1 = inlined_call_operand.vmem [shape: bf16[72,8], index: 1, kind: input, shape index: {}]
  %s2 = inlined_call_operand.vmem [shape: f32[2,256,8], index: 2, kind: output, shape index: {0}]
  %s3 = inlined_call_operand.vmem [shape: f32[2,2,2,8], index: 3, kind: output, shape index: {1}]
  %4 = xla_tuple %s2, %s3
  %s5 = sld [smem:[#allocation0]]
  $region49: #{vnet_conv_block.6} parent=0
    _
  %s7 = ssub.s32 1, %s5
  %s8 = scalar_select 0, %s7, %s5
  loop: start=0, step=1, limit=6
  $region2: #{vnet_conv_block.6} parent=0 // loop_pre_header
    _
  $region3: #{vnet_conv_block.6} parent=0 // loop_header
    %s10 = sphi 0, %s14
    %p11 = scmp.ge.s32.totalorder %s10, 6
    %s17 = sphi 0, %s29
    %s18 = sphi 0, %s25
    %s19 = sphi 0, %s17
    %s20 = sphi 0, %s18
    %s21 = sphi 0, %s19
    %s22 = sphi 0, %s20
    %s32 = sphi 0, %s34
    %s35 = sphi 0, %s32
    %s36 = sphi 0, %s35
    %s52 = sphi 0, %s36
    %s56 = sphi 0, %s56
    %s58 = sphi 0, %s56
    %s59 = sphi 0, %s58
    %s73 = sphi 0, %s59
    %s81 = sphi 0, %s83
    %s84 = sphi 0, %s81
    %s85 = sphi 0, %s84
    %s101 = sphi 0, %s85
    %s109 = sphi 0, %s111
    %s112 = sphi 0, %s109
    %s113 = sphi 0, %s112
    %s129 = sphi 0, %s113
  $region4: #{vnet_conv_block.6} parent=0 // loop_header_branch
    %13 = sbr.rel (%p11) target = $region8
  $region5: #{vnet_conv_block.6} parent=0 // loop_body
    %s15 = ssub.s32 %s10, 1
    %s16 = ssub.s32 %s10, 2
    %s23 = sadd.s32 1, %s18
    %p24 = scmp.ge.s32.totalorder %s23, 2
    %s25 = scalar_select %p24, 0, %s23
    %s26 = sadd.s32 1, %s17
    %s27 = scalar_select %p24, %s26, %s17
    %p28 = scmp.ge.s32.totalorder %s27, 2
    %s29 = scalar_select %p28, 0, %s27
    %s30 = ssub.s32 %s17, %s29
    %p31 = scmp.eq.s32.totalorder %s30, 0
    %s33 = sadd.s32 %s32, 1
    %s34 = scalar_select %p31, %s32, %s33
    %p37 = pneg %p31
    %p38 = scmp.eq.s32.totalorder %s10, 3
    %p39 = por %p37, %p38
    %p40 = scmp.ne.s32.totalorder %s32, %s35
    %p41 = scmp.eq.s32.totalorder %s10, 0
    %p42 = por %p40, %p41
    %p43 = scmp.ne.s32.totalorder %s32, %s35
    %p44 = scmp.eq.s32.totalorder %s15, 3
    %p45 = por %p43, %p44
    %p46 = scmp.ne.s32.totalorder %s35, %s36
    %p47 = scmp.eq.s32.totalorder %s15, 0
    %p48 = por %p46, %p47
    %p49 = scmp.ne.s32.totalorder %s35, %s36
    %p50 = scmp.eq.s32.totalorder %s16, 3
    %p51 = por %p49, %p50
    %p53 = scmp.ne.s32.totalorder %s36, %s52
    %p54 = scmp.eq.s32.totalorder %s16, 0
    %p55 = por %p53, %p54
    %s57 = sadd.s32 %s56, 1
    %p60 = scmp.eq.s32.totalorder %s10, 3
    %p61 = scmp.ne.s32.totalorder %s56, %s58
    %p62 = scmp.eq.s32.totalorder %s10, 0
    %p63 = por %p61, %p62
    %p64 = scmp.ne.s32.totalorder %s56, %s58
    %p65 = scmp.eq.s32.totalorder %s15, 3
    %p66 = por %p64, %p65
    %p67 = scmp.ne.s32.totalorder %s58, %s59
    %p68 = scmp.eq.s32.totalorder %s15, 0
    %p69 = por %p67, %p68
    %p70 = scmp.ne.s32.totalorder %s58, %s59
    %p71 = scmp.eq.s32.totalorder %s16, 3
    %p72 = por %p70, %p71
    %p74 = scmp.ne.s32.totalorder %s59, %s73
    %p75 = scmp.eq.s32.totalorder %s16, 0
    %p76 = por %p74, %p75
    %s77 = ssub.s32 %s17, %s29
    %s78 = ssub.s32 %s18, %s25
    %s79 = sor.u32 %s77, %s78
    %p80 = scmp.eq.s32.totalorder %s79, 0
    %s82 = sadd.s32 %s81, 1
    %s83 = scalar_select %p80, %s81, %s82
    %p86 = pneg %p80
    %p87 = scmp.eq.s32.totalorder %s10, 3
    %p88 = por %p86, %p87
    %p89 = scmp.ne.s32.totalorder %s81, %s84
    %p90 = scmp.eq.s32.totalorder %s10, 0
    %p91 = por %p89, %p90
    %p92 = scmp.ne.s32.totalorder %s81, %s84
    %p93 = scmp.eq.s32.totalorder %s15, 3
    %p94 = por %p92, %p93
    %p95 = scmp.ne.s32.totalorder %s84, %s85
    %p96 = scmp.eq.s32.totalorder %s15, 0
    %p97 = por %p95, %p96
    %p98 = scmp.ne.s32.totalorder %s84, %s85
    %p99 = scmp.eq.s32.totalorder %s16, 3
    %p100 = por %p98, %p99
    %p102 = scmp.ne.s32.totalorder %s85, %s101
    %p103 = scmp.eq.s32.totalorder %s16, 0
    %p104 = por %p102, %p103
    %s105 = ssub.s32 %s17, %s29
    %s106 = ssub.s32 %s18, %s25
    %s107 = sor.u32 %s105, %s106
    %p108 = scmp.eq.s32.totalorder %s107, 0
    %s110 = sadd.s32 %s109, 1
    %s111 = scalar_select %p108, %s109, %s110
    %p114 = pneg %p108
    %p115 = scmp.eq.s32.totalorder %s10, 3
    %p116 = por %p114, %p115
    %p117 = scmp.ne.s32.totalorder %s109, %s112
    %p118 = scmp.eq.s32.totalorder %s10, 0
    %p119 = por %p117, %p118
    %p120 = scmp.ne.s32.totalorder %s109, %s112
    %p121 = scmp.eq.s32.totalorder %s15, 3
    %p122 = por %p120, %p121
    %p123 = scmp.ne.s32.totalorder %s112, %s113
    %p124 = scmp.eq.s32.totalorder %s15, 0
    %p125 = por %p123, %p124
    %p126 = scmp.ne.s32.totalorder %s112, %s113
    %p127 = scmp.eq.s32.totalorder %s16, 3
    %p128 = por %p126, %p127
    %p130 = scmp.ne.s32.totalorder %s113, %s129
    %p131 = scmp.eq.s32.totalorder %s16, 0
    %p132 = por %p130, %p131
    %p133 = scmp.le.s32.totalorder 1, %s10
    %p134 = scmp.lt.s32.totalorder %s10, 5
    %p135 = pnand %p133, %p134
    %p136 = pneg %p135
    // Predicated region
    $region9: #{vnet_conv_block.6} parent=5 // pred_check
      _
    $region10: #{vnet_conv_block.6} parent=5 // pred_check_branch
      %138 = sbr.rel (%p135) target = $region12
    $region11: #{vnet_conv_block.6} parent=5 // pred_region
      %s139 = ssub.s32 %s10, 1
      // Predicated region
      $region13: #{vnet_conv_block.6} parent=11 // pred_check
        %p140 = pneg %p69
      $region14: #{vnet_conv_block.6} parent=11 // pred_check_branch
        %142 = sbr.rel (%p140) target = $region16
      $region15: #{vnet_conv_block.6} parent=11 // pred_region
        _
      $region16: #{vnet_conv_block.6} parent=11 // pred_fallthru
        _
    $region12: #{vnet_conv_block.6} parent=5 // pred_fallthru
      _
    %p143 = scmp.lt.s32.totalorder %s10, 4
    // Predicated region
    $region17: #{vnet_conv_block.6} parent=5 // pred_check
      %p144 = pneg %p143
    $region18: #{vnet_conv_block.6} parent=5 // pred_check_branch
      %146 = sbr.rel (%p144) target = $region20
    $region19: #{vnet_conv_block.6} parent=5 // pred_region
      // Predicated region
      $region21: #{vnet_conv_block.6} parent=19 // pred_check
        %p147 = pneg %p42
      $region22: #{vnet_conv_block.6} parent=19 // pred_check_branch
        %149 = sbr.rel (%p147) target = $region24
      $region23: #{vnet_conv_block.6} parent=19 // pred_region
        %p150 = scmp.lt.s32.totalorder %s17, 1
        %s151 = scalar_select %p150, %s17, 1
        %s152 = smul.addr %s151, 54
        %s153 = smul.addr %s152, 4
        %s154 = scalar_lea.vmem %s0, %s153
      $region24: #{vnet_conv_block.6} parent=19 // pred_fallthru
        _
    $region20: #{vnet_conv_block.6} parent=5 // pred_fallthru
      _
    %p155 = scmp.le.s32.totalorder 1, %s10
    %p156 = scmp.lt.s32.totalorder %s10, 5
    %p157 = pnand %p155, %p156
    %p158 = pneg %p157
    // Predicated region
    $region25: #{vnet_conv_block.6} parent=5 // pred_check
      _
    $region26: #{vnet_conv_block.6} parent=5 // pred_check_branch
      %160 = sbr.rel (%p157) target = $region28
    $region27: #{vnet_conv_block.6} parent=5 // pred_region
      %s161 = ssub.s32 %s10, 1
      %p162 = scmp.lt.s32.totalorder %s19, 1
      %s163 = scalar_select %p162, %s19, 1
      %s164 = smul.addr %s163, 54
      %s165 = smul.addr %s164, 4
      %s166 = scalar_lea.vmem %s0, %s165
      %p167 = pneg %p48
      %p168 = pneg %p45
      %p169 = pneg %p69
      %p170 = pneg %p66
      %p171 = pneg %p97
      %p172 = pneg %p94
      %s173 = smul.u32 16, %s20
      %p174 = scmp.lt.s32.totalorder %s19, 1
      %s175 = scalar_select %p174, %s19, 1
      %p176 = scmp.lt.s32.totalorder %s173, 31
      %s177 = scalar_select %p176, %s173, 31
      %s178 = smul.addr %s175, 32
      %s179 = sadd.s32 %s177, %s178
      %s180 = smul.addr %s179, 8
      %s181 = scalar_lea.vmem %s2, %s180
      %p182 = pneg %p125
      %p183 = pneg %p122
      %p184 = scmp.lt.s32.totalorder %s19, 1
      %s185 = scalar_select %p184, %s19, 1
      %p186 = scmp.lt.s32.totalorder %s20, 1
      %s187 = scalar_select %p186, %s20, 1
      %s188 = smul.addr %s185, 2
      %s189 = sadd.s32 %s187, %s188
      %s190 = smul.addr %s189, 2
      %s191 = scalar_lea.vmem %s3, %s190
      %p192 = scmp.lt.s32.totalorder %s19, 1
      %s193 = scalar_select %p192, %s19, 1
      %s194 = smul.addr %s193, 54
      %s195 = smul.addr %s194, 4
      %s196 = scalar_lea.vmem %s0, %s195
      %s197 = smul.u32 16, %s20
      %p198 = scmp.lt.s32.totalorder %s19, 1
      %s199 = scalar_select %p198, %s19, 1
      %p200 = scmp.lt.s32.totalorder %s197, 31
      %s201 = scalar_select %p200, %s197, 31
      %s202 = smul.addr %s199, 32
      %s203 = sadd.s32 %s201, %s202
      %s204 = smul.addr %s203, 8
      %s205 = scalar_lea.vmem %s2, %s204
      %s206 = smul.u32 16, %s20
      %p207 = scmp.lt.s32.totalorder %s19, 1
      %s208 = scalar_select %p207, %s19, 1
      %p209 = scmp.lt.s32.totalorder %s20, 1
      %s210 = scalar_select %p209, %s20, 1
      %s211 = smul.addr %s208, 2
      %s212 = sadd.s32 %s210, %s211
      %s213 = smul.addr %s212, 2
      %s214 = scalar_lea.vmem %s3, %s213
      %s216 = smul.u32 %s20, 8
      %s217 = smul.u32 %s216, 3
      %s218 = smul.addr %s217, 4
      %s219 = scalar_lea.vmem %s196, %s218
      %v220 = vld [vmem:[%s219] sm:$0xf]
      %v221 = vld [vmem:[%s219 + $0x4] sm:$0xf]
      %v222 = vld [vmem:[%s219 + $0x8] sm:$0x1]
      %v223 = vld [vmem:[%s219 + $0xc] sm:$0xf]
      %v224 = vld [vmem:[%s219 + $0x10] sm:$0xf]
      %v225 = vld [vmem:[%s219 + $0x14] sm:$0x1]
      %v226 = vld [vmem:[%s219 + $0x18] sm:$0xf]
      %v227 = vld [vmem:[%s219 + $0x1c] sm:$0xf]
      %v228 = vld [vmem:[%s219 + $0x20] sm:$0x1]
      %v229 = vld [vmem:[%s219 + $0x24] sm:$0xf]
      %v230 = vld [vmem:[%s219 + $0x28] sm:$0xf]
      %v231 = vld [vmem:[%s219 + $0x2c] sm:$0x1]
      %v232 = vld [vmem:[%s219 + $0x30] sm:$0xf]
      %v233 = vld [vmem:[%s219 + $0x34] sm:$0xf]
      %v234 = vld [vmem:[%s219 + $0x38] sm:$0x1]
      %v235 = vld [vmem:[%s219 + $0x3c] sm:$0xf]
      %v236 = vld [vmem:[%s219 + $0x40] sm:$0xf]
      %v237 = vld [vmem:[%s219 + $0x44] sm:$0x1]
      %v238 = vld [vmem:[%s219 + $0x48] sm:$0xf]
      %v239 = vld [vmem:[%s219 + $0x4c] sm:$0xf]
      %v240 = vld [vmem:[%s219 + $0x50] sm:$0x1]
      %v241 = vld [vmem:[%s219 + $0x54] sm:$0xf]
      %v242 = vld [vmem:[%s219 + $0x58] sm:$0xf]
      %v243 = vld [vmem:[%s219 + $0x5c] sm:$0x1]
      %vm244 = vsmask.f32 3328
      %vm245 = vsmask.f32 7440
      %vm246 = vmor %vm244, %vm245
      %v248 = vshrl.u32 %v220, 16
      %v250 = vrot.slane %v248, 4
      %v251 = vshll.u32 %v220, 16
      %v253 = vrot.slane %v251, 5
      %v254 = vor.u32 %v250, %v253
      %v255 = vrot.slane %v254, 4
      %v257 = vshll.u32 %v221, 16
      %v259 = vrot.slane %v257, 5
      %v260 = vsel %vm246, %v255, %v259
      %v261 = vshrl.u32 %v221, 16
      %v263 = vrot.slane %v261, 4
      %v264 = vor.u32 %v263, %v259
      %v265 = vrot.slane %v264, 4
      %v267 = vshll.u32 %v222, 16
      %v269 = vrot.slane %v267, 5
      %v270 = vsel %vm246, %v265, %v269
      %v272 = vshrl.u32 %v223, 16
      %v274 = vrot.slane %v272, 4
      %v275 = vshll.u32 %v223, 16
      %v277 = vrot.slane %v275, 5
      %v278 = vor.u32 %v274, %v277
      %v279 = vrot.slane %v278, 4
      %v281 = vshll.u32 %v224, 16
      %v283 = vrot.slane %v281, 5
      %v284 = vsel %vm246, %v279, %v283
      %v285 = vshrl.u32 %v224, 16
      %v287 = vrot.slane %v285, 4
      %v288 = vor.u32 %v287, %v283
      %v289 = vrot.slane %v288, 4
      %v291 = vshll.u32 %v225, 16
      %v293 = vrot.slane %v291, 5
      %v294 = vsel %vm246, %v289, %v293
      %v296 = vshrl.u32 %v226, 16
      %v298 = vrot.slane %v296, 4
      %v299 = vshll.u32 %v226, 16
      %v301 = vrot.slane %v299, 5
      %v302 = vor.u32 %v298, %v301
      %v303 = vrot.slane %v302, 4
      %v305 = vshll.u32 %v227, 16
      %v307 = vrot.slane %v305, 5
      %v308 = vsel %vm246, %v303, %v307
      %v309 = vshrl.u32 %v227, 16
      %v311 = vrot.slane %v309, 4
      %v312 = vor.u32 %v311, %v307
      %v313 = vrot.slane %v312, 4
      %v315 = vshll.u32 %v228, 16
      %v317 = vrot.slane %v315, 5
      %v318 = vsel %vm246, %v313, %v317
      %v320 = vshrl.u32 %v229, 16
      %v322 = vrot.slane %v320, 4
      %v323 = vshll.u32 %v229, 16
      %v325 = vrot.slane %v323, 5
      %v326 = vor.u32 %v322, %v325
      %v327 = vrot.slane %v326, 4
      %v329 = vshll.u32 %v230, 16
      %v331 = vrot.slane %v329, 5
      %v332 = vsel %vm246, %v327, %v331
      %v333 = vshrl.u32 %v230, 16
      %v335 = vrot.slane %v333, 4
      %v336 = vor.u32 %v335, %v331
      %v337 = vrot.slane %v336, 4
      %v339 = vshll.u32 %v231, 16
      %v341 = vrot.slane %v339, 5
      %v342 = vsel %vm246, %v337, %v341
      %v344 = vshrl.u32 %v232, 16
      %v346 = vrot.slane %v344, 4
      %v347 = vshll.u32 %v232, 16
      %v349 = vrot.slane %v347, 5
      %v350 = vor.u32 %v346, %v349
      %v351 = vrot.slane %v350, 4
      %v353 = vshll.u32 %v233, 16
      %v355 = vrot.slane %v353, 5
      %v356 = vsel %vm246, %v351, %v355
      %v357 = vshrl.u32 %v233, 16
      %v359 = vrot.slane %v357, 4
      %v360 = vor.u32 %v359, %v355
      %v361 = vrot.slane %v360, 4
      %v363 = vshll.u32 %v234, 16
      %v365 = vrot.slane %v363, 5
      %v366 = vsel %vm246, %v361, %v365
      %v368 = vshrl.u32 %v235, 16
      %v370 = vrot.slane %v368, 4
      %v371 = vshll.u32 %v235, 16
      %v373 = vrot.slane %v371, 5
      %v374 = vor.u32 %v370, %v373
      %v375 = vrot.slane %v374, 4
      %v377 = vshll.u32 %v236, 16
      %v379 = vrot.slane %v377, 5
      %v380 = vsel %vm246, %v375, %v379
      %v381 = vshrl.u32 %v236, 16
      %v383 = vrot.slane %v381, 4
      %v384 = vor.u32 %v383, %v379
      %v385 = vrot.slane %v384, 4
      %v387 = vshll.u32 %v237, 16
      %v389 = vrot.slane %v387, 5
      %v390 = vsel %vm246, %v385, %v389
      %v392 = vshrl.u32 %v238, 16
      %v394 = vrot.slane %v392, 4
      %v395 = vshll.u32 %v238, 16
      %v397 = vrot.slane %v395, 5
      %v398 = vor.u32 %v394, %v397
      %v399 = vrot.slane %v398, 4
      %v401 = vshll.u32 %v239, 16
      %v403 = vrot.slane %v401, 5
      %v404 = vsel %vm246, %v399, %v403
      %v405 = vshrl.u32 %v239, 16
      %v407 = vrot.slane %v405, 4
      %v408 = vor.u32 %v407, %v403
      %v409 = vrot.slane %v408, 4
      %v411 = vshll.u32 %v240, 16
      %v413 = vrot.slane %v411, 5
      %v414 = vsel %vm246, %v409, %v413
      %v416 = vshrl.u32 %v241, 16
      %v418 = vrot.slane %v416, 4
      %v419 = vshll.u32 %v241, 16
      %v421 = vrot.slane %v419, 5
      %v422 = vor.u32 %v418, %v421
      %v423 = vrot.slane %v422, 4
      %v425 = vshll.u32 %v242, 16
      %v427 = vrot.slane %v425, 5
      %v428 = vsel %vm246, %v423, %v427
      %v429 = vshrl.u32 %v242, 16
      %v431 = vrot.slane %v429, 4
      %v432 = vor.u32 %v431, %v427
      %v433 = vrot.slane %v432, 4
      %v435 = vshll.u32 %v243, 16
      %v437 = vrot.slane %v435, 5
      %v438 = vsel %vm246, %v433, %v437
      %vm463 = vcmask 1042432
      %vm464 = vcmask 1046532
      %vm465 = vmor %vm463, %vm464
      %v466 = vrot.slane %v220, 5
      %v467 = vrot.slane %v466, 4
      %v468 = vrot.slane %v221, 5
      %v469 = vsel %vm465, %v467, %v468
      %v470 = vrot.slane %v468, 4
      %v471 = vrot.slane %v222, 5
      %v472 = vsel %vm465, %v470, %v471
      %v473 = vrot.slane %v223, 5
      %v474 = vrot.slane %v473, 4
      %v475 = vrot.slane %v224, 5
      %v476 = vsel %vm465, %v474, %v475
      %v477 = vrot.slane %v475, 4
      %v478 = vrot.slane %v225, 5
      %v479 = vsel %vm465, %v477, %v478
      %v480 = vrot.slane %v226, 5
      %v481 = vrot.slane %v480, 4
      %v482 = vrot.slane %v227, 5
      %v483 = vsel %vm465, %v481, %v482
      %v484 = vrot.slane %v482, 4
      %v485 = vrot.slane %v228, 5
      %v486 = vsel %vm465, %v484, %v485
      %v487 = vrot.slane %v229, 5
      %v488 = vrot.slane %v487, 4
      %v489 = vrot.slane %v230, 5
      %v490 = vsel %vm465, %v488, %v489
      %v491 = vrot.slane %v489, 4
      %v492 = vrot.slane %v231, 5
      %v493 = vsel %vm465, %v491, %v492
      %v494 = vrot.slane %v232, 5
      %v495 = vrot.slane %v494, 4
      %v496 = vrot.slane %v233, 5
      %v497 = vsel %vm465, %v495, %v496
      %v498 = vrot.slane %v496, 4
      %v499 = vrot.slane %v234, 5
      %v500 = vsel %vm465, %v498, %v499
      %v501 = vrot.slane %v235, 5
      %v502 = vrot.slane %v501, 4
      %v503 = vrot.slane %v236, 5
      %v504 = vsel %vm465, %v502, %v503
      %v505 = vrot.slane %v503, 4
      %v506 = vrot.slane %v237, 5
      %v507 = vsel %vm465, %v505, %v506
      %v508 = vrot.slane %v238, 5
      %v509 = vrot.slane %v508, 4
      %v510 = vrot.slane %v239, 5
      %v511 = vsel %vm465, %v509, %v510
      %v512 = vrot.slane %v510, 4
      %v513 = vrot.slane %v240, 5
      %v514 = vsel %vm465, %v512, %v513
      %v515 = vrot.slane %v241, 5
      %v516 = vrot.slane %v515, 4
      %v517 = vrot.slane %v242, 5
      %v518 = vsel %vm465, %v516, %v517
      %v519 = vrot.slane %v517, 4
      %v520 = vrot.slane %v243, 5
      %v521 = vsel %vm465, %v519, %v520
      %s522 = sadd.s32 %s216, 1
      %s523 = smul.u32 %s522, 3
      %s524 = smul.addr %s523, 4
      %s525 = scalar_lea.vmem %s196, %s524
      %v526 = vld [vmem:[%s525] sm:$0xf]
      %v527 = vld [vmem:[%s525 + $0x4] sm:$0xf]
      %v528 = vld [vmem:[%s525 + $0x8] sm:$0x1]
      %v529 = vld [vmem:[%s525 + $0xc] sm:$0xf]
      %v530 = vld [vmem:[%s525 + $0x10] sm:$0xf]
      %v531 = vld [vmem:[%s525 + $0x14] sm:$0x1]
      %v532 = vld [vmem:[%s525 + $0x18] sm:$0xf]
      %v533 = vld [vmem:[%s525 + $0x1c] sm:$0xf]
      %v534 = vld [vmem:[%s525 + $0x20] sm:$0x1]
      %v535 = vld [vmem:[%s525 + $0x24] sm:$0xf]
      %v536 = vld [vmem:[%s525 + $0x28] sm:$0xf]
      %v537 = vld [vmem:[%s525 + $0x2c] sm:$0x1]
      %v538 = vld [vmem:[%s525 + $0x30] sm:$0xf]
      %v539 = vld [vmem:[%s525 + $0x34] sm:$0xf]
      %v540 = vld [vmem:[%s525 + $0x38] sm:$0x1]
      %v541 = vld [vmem:[%s525 + $0x3c] sm:$0xf]
      %v542 = vld [vmem:[%s525 + $0x40] sm:$0xf]
      %v543 = vld [vmem:[%s525 + $0x44] sm:$0x1]
      %v544 = vld [vmem:[%s525 + $0x48] sm:$0xf]
      %v545 = vld [vmem:[%s525 + $0x4c] sm:$0xf]
      %v546 = vld [vmem:[%s525 + $0x50] sm:$0x1]
      %v547 = vld [vmem:[%s525 + $0x54] sm:$0xf]
      %v548 = vld [vmem:[%s525 + $0x58] sm:$0xf]
      %v549 = vld [vmem:[%s525 + $0x5c] sm:$0x1]
      %v551 = vshrl.u32 %v526, 16
      %v553 = vrot.slane %v551, 4
      %v554 = vshll.u32 %v526, 16
      %v556 = vrot.slane %v554, 5
      %v557 = vor.u32 %v553, %v556
      %v558 = vrot.slane %v557, 4
      %v560 = vshll.u32 %v527, 16
      %v562 = vrot.slane %v560, 5
      %v563 = vsel %vm246, %v558, %v562
      %v564 = vshrl.u32 %v527, 16
      %v566 = vrot.slane %v564, 4
      %v567 = vor.u32 %v566, %v562
      %v568 = vrot.slane %v567, 4
      %v570 = vshll.u32 %v528, 16
      %v572 = vrot.slane %v570, 5
      %v573 = vsel %vm246, %v568, %v572
      %v575 = vshrl.u32 %v529, 16
      %v577 = vrot.slane %v575, 4
      %v578 = vshll.u32 %v529, 16
      %v580 = vrot.slane %v578, 5
      %v581 = vor.u32 %v577, %v580
      %v582 = vrot.slane %v581, 4
      %v584 = vshll.u32 %v530, 16
      %v586 = vrot.slane %v584, 5
      %v587 = vsel %vm246, %v582, %v586
      %v588 = vshrl.u32 %v530, 16
      %v590 = vrot.slane %v588, 4
      %v591 = vor.u32 %v590, %v586
      %v592 = vrot.slane %v591, 4
      %v594 = vshll.u32 %v531, 16
      %v596 = vrot.slane %v594, 5
      %v597 = vsel %vm246, %v592, %v596
      %v599 = vshrl.u32 %v532, 16
      %v601 = vrot.slane %v599, 4
      %v602 = vshll.u32 %v532, 16
      %v604 = vrot.slane %v602, 5
      %v605 = vor.u32 %v601, %v604
      %v606 = vrot.slane %v605, 4
      %v608 = vshll.u32 %v533, 16
      %v610 = vrot.slane %v608, 5
      %v611 = vsel %vm246, %v606, %v610
      %v612 = vshrl.u32 %v533, 16
      %v614 = vrot.slane %v612, 4
      %v615 = vor.u32 %v614, %v610
      %v616 = vrot.slane %v615, 4
      %v618 = vshll.u32 %v534, 16
      %v620 = vrot.slane %v618, 5
      %v621 = vsel %vm246, %v616, %v620
      %v623 = vshrl.u32 %v535, 16
      %v625 = vrot.slane %v623, 4
      %v626 = vshll.u32 %v535, 16
      %v628 = vrot.slane %v626, 5
      %v629 = vor.u32 %v625, %v628
      %v630 = vrot.slane %v629, 4
      %v632 = vshll.u32 %v536, 16
      %v634 = vrot.slane %v632, 5
      %v635 = vsel %vm246, %v630, %v634
      %v636 = vshrl.u32 %v536, 16
      %v638 = vrot.slane %v636, 4
      %v639 = vor.u32 %v638, %v634
      %v640 = vrot.slane %v639, 4
      %v642 = vshll.u32 %v537, 16
      %v644 = vrot.slane %v642, 5
      %v645 = vsel %vm246, %v640, %v644
      %v647 = vshrl.u32 %v538, 16
      %v649 = vrot.slane %v647, 4
      %v650 = vshll.u32 %v538, 16
      %v652 = vrot.slane %v650, 5
      %v653 = vor.u32 %v649, %v652
      %v654 = vrot.slane %v653, 4
      %v656 = vshll.u32 %v539, 16
      %v658 = vrot.slane %v656, 5
      %v659 = vsel %vm246, %v654, %v658
      %v660 = vshrl.u32 %v539, 16
      %v662 = vrot.slane %v660, 4
      %v663 = vor.u32 %v662, %v658
      %v664 = vrot.slane %v663, 4
      %v666 = vshll.u32 %v540, 16
      %v668 = vrot.slane %v666, 5
      %v669 = vsel %vm246, %v664, %v668
      %v671 = vshrl.u32 %v541, 16
      %v673 = vrot.slane %v671, 4
      %v674 = vshll.u32 %v541, 16
      %v676 = vrot.slane %v674, 5
      %v677 = vor.u32 %v673, %v676
      %v678 = vrot.slane %v677, 4
      %v680 = vshll.u32 %v542, 16
      %v682 = vrot.slane %v680, 5
      %v683 = vsel %vm246, %v678, %v682
      %v684 = vshrl.u32 %v542, 16
      %v686 = vrot.slane %v684, 4
      %v687 = vor.u32 %v686, %v682
      %v688 = vrot.slane %v687, 4
      %v690 = vshll.u32 %v543, 16
      %v692 = vrot.slane %v690, 5
      %v693 = vsel %vm246, %v688, %v692
      %v695 = vshrl.u32 %v544, 16
      %v697 = vrot.slane %v695, 4
      %v698 = vshll.u32 %v544, 16
      %v700 = vrot.slane %v698, 5
      %v701 = vor.u32 %v697, %v700
      %v702 = vrot.slane %v701, 4
      %v704 = vshll.u32 %v545, 16
      %v706 = vrot.slane %v704, 5
      %v707 = vsel %vm246, %v702, %v706
      %v708 = vshrl.u32 %v545, 16
      %v710 = vrot.slane %v708, 4
      %v711 = vor.u32 %v710, %v706
      %v712 = vrot.slane %v711, 4
      %v714 = vshll.u32 %v546, 16
      %v716 = vrot.slane %v714, 5
      %v717 = vsel %vm246, %v712, %v716
      %v719 = vshrl.u32 %v547, 16
      %v721 = vrot.slane %v719, 4
      %v722 = vshll.u32 %v547, 16
      %v724 = vrot.slane %v722, 5
      %v725 = vor.u32 %v721, %v724
      %v726 = vrot.slane %v725, 4
      %v728 = vshll.u32 %v548, 16
      %v730 = vrot.slane %v728, 5
      %v731 = vsel %vm246, %v726, %v730
      %v732 = vshrl.u32 %v548, 16
      %v734 = vrot.slane %v732, 4
      %v735 = vor.u32 %v734, %v730
      %v736 = vrot.slane %v735, 4
      %v738 = vshll.u32 %v549, 16
      %v740 = vrot.slane %v738, 5
      %v741 = vsel %vm246, %v736, %v740
      %v766 = vrot.slane %v526, 5
      %v767 = vrot.slane %v766, 4
      %v768 = vrot.slane %v527, 5
      %v769 = vsel %vm465, %v767, %v768
      %v770 = vrot.slane %v768, 4
      %v771 = vrot.slane %v528, 5
      %v772 = vsel %vm465, %v770, %v771
      %v773 = vrot.slane %v529, 5
      %v774 = vrot.slane %v773, 4
      %v775 = vrot.slane %v530, 5
      %v776 = vsel %vm465, %v774, %v775
      %v777 = vrot.slane %v775, 4
      %v778 = vrot.slane %v531, 5
      %v779 = vsel %vm465, %v777, %v778
      %v780 = vrot.slane %v532, 5
      %v781 = vrot.slane %v780, 4
      %v782 = vrot.slane %v533, 5
      %v783 = vsel %vm465, %v781, %v782
      %v784 = vrot.slane %v782, 4
      %v785 = vrot.slane %v534, 5
      %v786 = vsel %vm465, %v784, %v785
      %v787 = vrot.slane %v535, 5
      %v788 = vrot.slane %v787, 4
      %v789 = vrot.slane %v536, 5
      %v790 = vsel %vm465, %v788, %v789
      %v791 = vrot.slane %v789, 4
      %v792 = vrot.slane %v537, 5
      %v793 = vsel %vm465, %v791, %v792
      %v794 = vrot.slane %v538, 5
      %v795 = vrot.slane %v794, 4
      %v796 = vrot.slane %v539, 5
      %v797 = vsel %vm465, %v795, %v796
      %v798 = vrot.slane %v796, 4
      %v799 = vrot.slane %v540, 5
      %v800 = vsel %vm465, %v798, %v799
      %v801 = vrot.slane %v541, 5
      %v802 = vrot.slane %v801, 4
      %v803 = vrot.slane %v542, 5
      %v804 = vsel %vm465, %v802, %v803
      %v805 = vrot.slane %v803, 4
      %v806 = vrot.slane %v543, 5
      %v807 = vsel %vm465, %v805, %v806
      %v808 = vrot.slane %v544, 5
      %v809 = vrot.slane %v808, 4
      %v810 = vrot.slane %v545, 5
      %v811 = vsel %vm465, %v809, %v810
      %v812 = vrot.slane %v810, 4
      %v813 = vrot.slane %v546, 5
      %v814 = vsel %vm465, %v812, %v813
      %v815 = vrot.slane %v547, 5
      %v816 = vrot.slane %v815, 4
      %v817 = vrot.slane %v548, 5
      %v818 = vsel %vm465, %v816, %v817
      %v819 = vrot.slane %v817, 4
      %v820 = vrot.slane %v549, 5
      %v821 = vsel %vm465, %v819, %v820
      %s822 = sadd.s32 %s216, 2
      %s823 = smul.u32 %s822, 3
      %s824 = smul.addr %s823, 4
      %s825 = scalar_lea.vmem %s196, %s824
      %v826 = vld [vmem:[%s825] sm:$0xf]
      %v827 = vld [vmem:[%s825 + $0x4] sm:$0xf]
      %v828 = vld [vmem:[%s825 + $0x8] sm:$0x1]
      %v829 = vld [vmem:[%s825 + $0xc] sm:$0xf]
      %v830 = vld [vmem:[%s825 + $0x10] sm:$0xf]
      %v831 = vld [vmem:[%s825 + $0x14] sm:$0x1]
      %v832 = vld [vmem:[%s825 + $0x18] sm:$0xf]
      %v833 = vld [vmem:[%s825 + $0x1c] sm:$0xf]
      %v834 = vld [vmem:[%s825 + $0x20] sm:$0x1]
      %v835 = vld [vmem:[%s825 + $0x24] sm:$0xf]
      %v836 = vld [vmem:[%s825 + $0x28] sm:$0xf]
      %v837 = vld [vmem:[%s825 + $0x2c] sm:$0x1]
      %v838 = vld [vmem:[%s825 + $0x30] sm:$0xf]
      %v839 = vld [vmem:[%s825 + $0x34] sm:$0xf]
      %v840 = vld [vmem:[%s825 + $0x38] sm:$0x1]
      %v841 = vld [vmem:[%s825 + $0x3c] sm:$0xf]
      %v842 = vld [vmem:[%s825 + $0x40] sm:$0xf]
      %v843 = vld [vmem:[%s825 + $0x44] sm:$0x1]
      %v844 = vld [vmem:[%s825 + $0x48] sm:$0xf]
      %v845 = vld [vmem:[%s825 + $0x4c] sm:$0xf]
      %v846 = vld [vmem:[%s825 + $0x50] sm:$0x1]
      %v847 = vld [vmem:[%s825 + $0x54] sm:$0xf]
      %v848 = vld [vmem:[%s825 + $0x58] sm:$0xf]
      %v849 = vld [vmem:[%s825 + $0x5c] sm:$0x1]
      %v851 = vshrl.u32 %v826, 16
      %v853 = vrot.slane %v851, 4
      %v854 = vshll.u32 %v826, 16
      %v856 = vrot.slane %v854, 5
      %v857 = vor.u32 %v853, %v856
      %v858 = vrot.slane %v857, 4
      %v860 = vshll.u32 %v827, 16
      %v862 = vrot.slane %v860, 5
      %v863 = vsel %vm246, %v858, %v862
      %v864 = vshrl.u32 %v827, 16
      %v866 = vrot.slane %v864, 4
      %v867 = vor.u32 %v866, %v862
      %v868 = vrot.slane %v867, 4
      %v870 = vshll.u32 %v828, 16
      %v872 = vrot.slane %v870, 5
      %v873 = vsel %vm246, %v868, %v872
      %v875 = vshrl.u32 %v829, 16
      %v877 = vrot.slane %v875, 4
      %v878 = vshll.u32 %v829, 16
      %v880 = vrot.slane %v878, 5
      %v881 = vor.u32 %v877, %v880
      %v882 = vrot.slane %v881, 4
      %v884 = vshll.u32 %v830, 16
      %v886 = vrot.slane %v884, 5
      %v887 = vsel %vm246, %v882, %v886
      %v888 = vshrl.u32 %v830, 16
      %v890 = vrot.slane %v888, 4
      %v891 = vor.u32 %v890, %v886
      %v892 = vrot.slane %v891, 4
      %v894 = vshll.u32 %v831, 16
      %v896 = vrot.slane %v894, 5
      %v897 = vsel %vm246, %v892, %v896
      %v899 = vshrl.u32 %v832, 16
      %v901 = vrot.slane %v899, 4
      %v902 = vshll.u32 %v832, 16
      %v904 = vrot.slane %v902, 5
      %v905 = vor.u32 %v901, %v904
      %v906 = vrot.slane %v905, 4
      %v908 = vshll.u32 %v833, 16
      %v910 = vrot.slane %v908, 5
      %v911 = vsel %vm246, %v906, %v910
      %v912 = vshrl.u32 %v833, 16
      %v914 = vrot.slane %v912, 4
      %v915 = vor.u32 %v914, %v910
      %v916 = vrot.slane %v915, 4
      %v918 = vshll.u32 %v834, 16
      %v920 = vrot.slane %v918, 5
      %v921 = vsel %vm246, %v916, %v920
      %v923 = vshrl.u32 %v835, 16
      %v925 = vrot.slane %v923, 4
      %v926 = vshll.u32 %v835, 16
      %v928 = vrot.slane %v926, 5
      %v929 = vor.u32 %v925, %v928
      %v930 = vrot.slane %v929, 4
      %v932 = vshll.u32 %v836, 16
      %v934 = vrot.slane %v932, 5
      %v935 = vsel %vm246, %v930, %v934
      %v936 = vshrl.u32 %v836, 16
      %v938 = vrot.slane %v936, 4
      %v939 = vor.u32 %v938, %v934
      %v940 = vrot.slane %v939, 4
      %v942 = vshll.u32 %v837, 16
      %v944 = vrot.slane %v942, 5
      %v945 = vsel %vm246, %v940, %v944
      %v947 = vshrl.u32 %v838, 16
      %v949 = vrot.slane %v947, 4
      %v950 = vshll.u32 %v838, 16
      %v952 = vrot.slane %v950, 5
      %v953 = vor.u32 %v949, %v952
      %v954 = vrot.slane %v953, 4
      %v956 = vshll.u32 %v839, 16
      %v958 = vrot.slane %v956, 5
      %v959 = vsel %vm246, %v954, %v958
      %v960 = vshrl.u32 %v839, 16
      %v962 = vrot.slane %v960, 4
      %v963 = vor.u32 %v962, %v958
      %v964 = vrot.slane %v963, 4
      %v966 = vshll.u32 %v840, 16
      %v968 = vrot.slane %v966, 5
      %v969 = vsel %vm246, %v964, %v968
      %v971 = vshrl.u32 %v841, 16
      %v973 = vrot.slane %v971, 4
      %v974 = vshll.u32 %v841, 16
      %v976 = vrot.slane %v974, 5
      %v977 = vor.u32 %v973, %v976
      %v978 = vrot.slane %v977, 4
      %v980 = vshll.u32 %v842, 16
      %v982 = vrot.slane %v980, 5
      %v983 = vsel %vm246, %v978, %v982
      %v984 = vshrl.u32 %v842, 16
      %v986 = vrot.slane %v984, 4
      %v987 = vor.u32 %v986, %v982
      %v988 = vrot.slane %v987, 4
      %v990 = vshll.u32 %v843, 16
      %v992 = vrot.slane %v990, 5
      %v993 = vsel %vm246, %v988, %v992
      %v995 = vshrl.u32 %v844, 16
      %v997 = vrot.slane %v995, 4
      %v998 = vshll.u32 %v844, 16
      %v1000 = vrot.slane %v998, 5
      %v1001 = vor.u32 %v997, %v1000
      %v1002 = vrot.slane %v1001, 4
      %v1004 = vshll.u32 %v845, 16
      %v1006 = vrot.slane %v1004, 5
      %v1007 = vsel %vm246, %v1002, %v1006
      %v1008 = vshrl.u32 %v845, 16
      %v1010 = vrot.slane %v1008, 4
      %v1011 = vor.u32 %v1010, %v1006
      %v1012 = vrot.slane %v1011, 4
      %v1014 = vshll.u32 %v846, 16
      %v1016 = vrot.slane %v1014, 5
      %v1017 = vsel %vm246, %v1012, %v1016
      %v1019 = vshrl.u32 %v847, 16
      %v1021 = vrot.slane %v1019, 4
      %v1022 = vshll.u32 %v847, 16
      %v1024 = vrot.slane %v1022, 5
      %v1025 = vor.u32 %v1021, %v1024
      %v1026 = vrot.slane %v1025, 4
      %v1028 = vshll.u32 %v848, 16
      %v1030 = vrot.slane %v1028, 5
      %v1031 = vsel %vm246, %v1026, %v1030
      %v1032 = vshrl.u32 %v848, 16
      %v1034 = vrot.slane %v1032, 4
      %v1035 = vor.u32 %v1034, %v1030
      %v1036 = vrot.slane %v1035, 4
      %v1038 = vshll.u32 %v849, 16
      %v1040 = vrot.slane %v1038, 5
      %v1041 = vsel %vm246, %v1036, %v1040
      %v1066 = vrot.slane %v826, 5
      %v1067 = vrot.slane %v1066, 4
      %v1068 = vrot.slane %v827, 5
      %v1069 = vsel %vm465, %v1067, %v1068
      %v1070 = vrot.slane %v1068, 4
      %v1071 = vrot.slane %v828, 5
      %v1072 = vsel %vm465, %v1070, %v1071
      %v1073 = vrot.slane %v829, 5
      %v1074 = vrot.slane %v1073, 4
      %v1075 = vrot.slane %v830, 5
      %v1076 = vsel %vm465, %v1074, %v1075
      %v1077 = vrot.slane %v1075, 4
      %v1078 = vrot.slane %v831, 5
      %v1079 = vsel %vm465, %v1077, %v1078
      %v1080 = vrot.slane %v832, 5
      %v1081 = vrot.slane %v1080, 4
      %v1082 = vrot.slane %v833, 5
      %v1083 = vsel %vm465, %v1081, %v1082
      %v1084 = vrot.slane %v1082, 4
      %v1085 = vrot.slane %v834, 5
      %v1086 = vsel %vm465, %v1084, %v1085
      %v1087 = vrot.slane %v835, 5
      %v1088 = vrot.slane %v1087, 4
      %v1089 = vrot.slane %v836, 5
      %v1090 = vsel %vm465, %v1088, %v1089
      %v1091 = vrot.slane %v1089, 4
      %v1092 = vrot.slane %v837, 5
      %v1093 = vsel %vm465, %v1091, %v1092
      %v1094 = vrot.slane %v838, 5
      %v1095 = vrot.slane %v1094, 4
      %v1096 = vrot.slane %v839, 5
      %v1097 = vsel %vm465, %v1095, %v1096
      %v1098 = vrot.slane %v1096, 4
      %v1099 = vrot.slane %v840, 5
      %v1100 = vsel %vm465, %v1098, %v1099
      %v1101 = vrot.slane %v841, 5
      %v1102 = vrot.slane %v1101, 4
      %v1103 = vrot.slane %v842, 5
      %v1104 = vsel %vm465, %v1102, %v1103
      %v1105 = vrot.slane %v1103, 4
      %v1106 = vrot.slane %v843, 5
      %v1107 = vsel %vm465, %v1105, %v1106
      %v1108 = vrot.slane %v844, 5
      %v1109 = vrot.slane %v1108, 4
      %v1110 = vrot.slane %v845, 5
      %v1111 = vsel %vm465, %v1109, %v1110
      %v1112 = vrot.slane %v1110, 4
      %v1113 = vrot.slane %v846, 5
      %v1114 = vsel %vm465, %v1112, %v1113
      %v1115 = vrot.slane %v847, 5
      %v1116 = vrot.slane %v1115, 4
      %v1117 = vrot.slane %v848, 5
      %v1118 = vsel %vm465, %v1116, %v1117
      %v1119 = vrot.slane %v1117, 4
      %v1120 = vrot.slane %v849, 5
      %v1121 = vsel %vm465, %v1119, %v1120
      %v1122 = vunpack.c.l.b16 %v220
      %v1123 = vunpack.c.l.b16 %v221
      %v1124 = vunpack.c.l.b16 %v223
      %v1125 = vunpack.c.l.b16 %v224
      %v1126 = vunpack.c.l.b16 %v226
      %v1127 = vunpack.c.l.b16 %v227
      %v1128 = vunpack.c.l.b16 %v229
      %v1129 = vunpack.c.l.b16 %v230
      %v1130 = vunpack.c.l.b16 %v232
      %v1131 = vunpack.c.l.b16 %v233
      %v1132 = vunpack.c.l.b16 %v235
      %v1133 = vunpack.c.l.b16 %v236
      %v1134 = vunpack.c.l.b16 %v238
      %v1135 = vunpack.c.l.b16 %v239
      %v1136 = vunpack.c.l.b16 %v241
      %v1137 = vunpack.c.l.b16 %v242
      %v1138 = vpack.c.b16 %v1123, %v1122
      %v1139 = vpack.c.b16 %v1125, %v1124
      %v1140 = vpack.c.b16 %v1127, %v1126
      %v1141 = vpack.c.b16 %v1129, %v1128
      %v1142 = vpack.c.b16 %v1131, %v1130
      %v1143 = vpack.c.b16 %v1133, %v1132
      %v1144 = vpack.c.b16 %v1135, %v1134
      %v1145 = vpack.c.b16 %v1137, %v1136
      %v1146 = vunpack.c.l.b16 %v260
      %v1147 = vunpack.c.l.b16 %v270
      %v1148 = vunpack.c.l.b16 %v284
      %v1149 = vunpack.c.l.b16 %v294
      %v1150 = vunpack.c.l.b16 %v308
      %v1151 = vunpack.c.l.b16 %v318
      %v1152 = vunpack.c.l.b16 %v332
      %v1153 = vunpack.c.l.b16 %v342
      %v1154 = vunpack.c.l.b16 %v356
      %v1155 = vunpack.c.l.b16 %v366
      %v1156 = vunpack.c.l.b16 %v380
      %v1157 = vunpack.c.l.b16 %v390
      %v1158 = vunpack.c.l.b16 %v404
      %v1159 = vunpack.c.l.b16 %v414
      %v1160 = vunpack.c.l.b16 %v428
      %v1161 = vunpack.c.l.b16 %v438
      %v1162 = vpack.c.b16 %v1147, %v1146
      %v1163 = vpack.c.b16 %v1149, %v1148
      %v1164 = vpack.c.b16 %v1151, %v1150
      %v1165 = vpack.c.b16 %v1153, %v1152
      %v1166 = vpack.c.b16 %v1155, %v1154
      %v1167 = vpack.c.b16 %v1157, %v1156
      %v1168 = vpack.c.b16 %v1159, %v1158
      %v1169 = vpack.c.b16 %v1161, %v1160
      %1170 = vrot.lane.b32.xlu0 %v1162, 8
      %v1171 = vpop.permute.xlu0 %1170
      %1172 = vrot.lane.b32.xlu0 %v1163, 8
      %v1173 = vpop.permute.xlu0 %1172
      %1174 = vrot.lane.b32.xlu0 %v1164, 8
      %v1175 = vpop.permute.xlu0 %1174
      %1176 = vrot.lane.b32.xlu0 %v1165, 8
      %v1177 = vpop.permute.xlu0 %1176
      %1178 = vrot.lane.b32.xlu0 %v1166, 8
      %v1179 = vpop.permute.xlu0 %1178
      %1180 = vrot.lane.b32.xlu0 %v1167, 8
      %v1181 = vpop.permute.xlu0 %1180
      %1182 = vrot.lane.b32.xlu0 %v1168, 8
      %v1183 = vpop.permute.xlu0 %1182
      %1184 = vrot.lane.b32.xlu0 %v1169, 8
      %v1185 = vpop.permute.xlu0 %1184
      %v1186 = vunpack.c.l.b16 %v469
      %v1187 = vunpack.c.l.b16 %v472
      %v1188 = vunpack.c.l.b16 %v476
      %v1189 = vunpack.c.l.b16 %v479
      %v1190 = vunpack.c.l.b16 %v483
      %v1191 = vunpack.c.l.b16 %v486
      %v1192 = vunpack.c.l.b16 %v490
      %v1193 = vunpack.c.l.b16 %v493
      %v1194 = vunpack.c.l.b16 %v497
      %v1195 = vunpack.c.l.b16 %v500
      %v1196 = vunpack.c.l.b16 %v504
      %v1197 = vunpack.c.l.b16 %v507
      %v1198 = vunpack.c.l.b16 %v511
      %v1199 = vunpack.c.l.b16 %v514
      %v1200 = vunpack.c.l.b16 %v518
      %v1201 = vunpack.c.l.b16 %v521
      %v1202 = vpack.c.b16 %v1187, %v1186
      %v1203 = vpack.c.b16 %v1189, %v1188
      %v1204 = vpack.c.b16 %v1191, %v1190
      %v1205 = vpack.c.b16 %v1193, %v1192
      %v1206 = vpack.c.b16 %v1195, %v1194
      %v1207 = vpack.c.b16 %v1197, %v1196
      %v1208 = vpack.c.b16 %v1199, %v1198
      %v1209 = vpack.c.b16 %v1201, %v1200
      %1210 = vrot.lane.b32.xlu0 %v1202, 16
      %v1211 = vpop.permute.xlu0 %1210
      %1212 = vrot.lane.b32.xlu0 %v1203, 16
      %v1213 = vpop.permute.xlu0 %1212
      %1214 = vrot.lane.b32.xlu0 %v1204, 16
      %v1215 = vpop.permute.xlu0 %1214
      %1216 = vrot.lane.b32.xlu0 %v1205, 16
      %v1217 = vpop.permute.xlu0 %1216
      %1218 = vrot.lane.b32.xlu0 %v1206, 16
      %v1219 = vpop.permute.xlu0 %1218
      %1220 = vrot.lane.b32.xlu0 %v1207, 16
      %v1221 = vpop.permute.xlu0 %1220
      %1222 = vrot.lane.b32.xlu0 %v1208, 16
      %v1223 = vpop.permute.xlu0 %1222
      %1224 = vrot.lane.b32.xlu0 %v1209, 16
      %v1225 = vpop.permute.xlu0 %1224
      %v1226 = vunpack.c.l.b16 %v526
      %v1227 = vunpack.c.l.b16 %v527
      %v1228 = vunpack.c.l.b16 %v529
      %v1229 = vunpack.c.l.b16 %v530
      %v1230 = vunpack.c.l.b16 %v532
      %v1231 = vunpack.c.l.b16 %v533
      %v1232 = vunpack.c.l.b16 %v535
      %v1233 = vunpack.c.l.b16 %v536
      %v1234 = vunpack.c.l.b16 %v538
      %v1235 = vunpack.c.l.b16 %v539
      %v1236 = vunpack.c.l.b16 %v541
      %v1237 = vunpack.c.l.b16 %v542
      %v1238 = vunpack.c.l.b16 %v544
      %v1239 = vunpack.c.l.b16 %v545
      %v1240 = vunpack.c.l.b16 %v547
      %v1241 = vunpack.c.l.b16 %v548
      %v1242 = vpack.c.b16 %v1227, %v1226
      %v1243 = vpack.c.b16 %v1229, %v1228
      %v1244 = vpack.c.b16 %v1231, %v1230
      %v1245 = vpack.c.b16 %v1233, %v1232
      %v1246 = vpack.c.b16 %v1235, %v1234
      %v1247 = vpack.c.b16 %v1237, %v1236
      %v1248 = vpack.c.b16 %v1239, %v1238
      %v1249 = vpack.c.b16 %v1241, %v1240
      %1250 = vrot.lane.b32.xlu0 %v1242, 24
      %v1251 = vpop.permute.xlu0 %1250
      %1252 = vrot.lane.b32.xlu0 %v1243, 24
      %v1253 = vpop.permute.xlu0 %1252
      %1254 = vrot.lane.b32.xlu0 %v1244, 24
      %v1255 = vpop.permute.xlu0 %1254
      %1256 = vrot.lane.b32.xlu0 %v1245, 24
      %v1257 = vpop.permute.xlu0 %1256
      %1258 = vrot.lane.b32.xlu0 %v1246, 24
      %v1259 = vpop.permute.xlu0 %1258
      %1260 = vrot.lane.b32.xlu0 %v1247, 24
      %v1261 = vpop.permute.xlu0 %1260
      %1262 = vrot.lane.b32.xlu0 %v1248, 24
      %v1263 = vpop.permute.xlu0 %1262
      %1264 = vrot.lane.b32.xlu0 %v1249, 24
      %v1265 = vpop.permute.xlu0 %1264
      %v1266 = vunpack.c.l.b16 %v563
      %v1267 = vunpack.c.l.b16 %v573
      %v1268 = vunpack.c.l.b16 %v587
      %v1269 = vunpack.c.l.b16 %v597
      %v1270 = vunpack.c.l.b16 %v611
      %v1271 = vunpack.c.l.b16 %v621
      %v1272 = vunpack.c.l.b16 %v635
      %v1273 = vunpack.c.l.b16 %v645
      %v1274 = vunpack.c.l.b16 %v659
      %v1275 = vunpack.c.l.b16 %v669
      %v1276 = vunpack.c.l.b16 %v683
      %v1277 = vunpack.c.l.b16 %v693
      %v1278 = vunpack.c.l.b16 %v707
      %v1279 = vunpack.c.l.b16 %v717
      %v1280 = vunpack.c.l.b16 %v731
      %v1281 = vunpack.c.l.b16 %v741
      %v1282 = vpack.c.b16 %v1267, %v1266
      %v1283 = vpack.c.b16 %v1269, %v1268
      %v1284 = vpack.c.b16 %v1271, %v1270
      %v1285 = vpack.c.b16 %v1273, %v1272
      %v1286 = vpack.c.b16 %v1275, %v1274
      %v1287 = vpack.c.b16 %v1277, %v1276
      %v1288 = vpack.c.b16 %v1279, %v1278
      %v1289 = vpack.c.b16 %v1281, %v1280
      %1290 = vrot.lane.b32.xlu0 %v1282, 32
      %v1291 = vpop.permute.xlu0 %1290
      %1292 = vrot.lane.b32.xlu0 %v1283, 32
      %v1293 = vpop.permute.xlu0 %1292
      %1294 = vrot.lane.b32.xlu0 %v1284, 32
      %v1295 = vpop.permute.xlu0 %1294
      %1296 = vrot.lane.b32.xlu0 %v1285, 32
      %v1297 = vpop.permute.xlu0 %1296
      %1298 = vrot.lane.b32.xlu0 %v1286, 32
      %v1299 = vpop.permute.xlu0 %1298
      %1300 = vrot.lane.b32.xlu0 %v1287, 32
      %v1301 = vpop.permute.xlu0 %1300
      %1302 = vrot.lane.b32.xlu0 %v1288, 32
      %v1303 = vpop.permute.xlu0 %1302
      %1304 = vrot.lane.b32.xlu0 %v1289, 32
      %v1305 = vpop.permute.xlu0 %1304
      %v1306 = vunpack.c.l.b16 %v769
      %v1307 = vunpack.c.l.b16 %v772
      %v1308 = vunpack.c.l.b16 %v776
      %v1309 = vunpack.c.l.b16 %v779
      %v1310 = vunpack.c.l.b16 %v783
      %v1311 = vunpack.c.l.b16 %v786
      %v1312 = vunpack.c.l.b16 %v790
      %v1313 = vunpack.c.l.b16 %v793
      %v1314 = vunpack.c.l.b16 %v797
      %v1315 = vunpack.c.l.b16 %v800
      %v1316 = vunpack.c.l.b16 %v804
      %v1317 = vunpack.c.l.b16 %v807
      %v1318 = vunpack.c.l.b16 %v811
      %v1319 = vunpack.c.l.b16 %v814
      %v1320 = vunpack.c.l.b16 %v818
      %v1321 = vunpack.c.l.b16 %v821
      %v1322 = vpack.c.b16 %v1307, %v1306
      %v1323 = vpack.c.b16 %v1309, %v1308
      %v1324 = vpack.c.b16 %v1311, %v1310
      %v1325 = vpack.c.b16 %v1313, %v1312
      %v1326 = vpack.c.b16 %v1315, %v1314
      %v1327 = vpack.c.b16 %v1317, %v1316
      %v1328 = vpack.c.b16 %v1319, %v1318
      %v1329 = vpack.c.b16 %v1321, %v1320
      %1330 = vrot.lane.b32.xlu0 %v1322, 40
      %v1331 = vpop.permute.xlu0 %1330
      %1332 = vrot.lane.b32.xlu0 %v1323, 40
      %v1333 = vpop.permute.xlu0 %1332
      %1334 = vrot.lane.b32.xlu0 %v1324, 40
      %v1335 = vpop.permute.xlu0 %1334
      %1336 = vrot.lane.b32.xlu0 %v1325, 40
      %v1337 = vpop.permute.xlu0 %1336
      %1338 = vrot.lane.b32.xlu0 %v1326, 40
      %v1339 = vpop.permute.xlu0 %1338
      %1340 = vrot.lane.b32.xlu0 %v1327, 40
      %v1341 = vpop.permute.xlu0 %1340
      %1342 = vrot.lane.b32.xlu0 %v1328, 40
      %v1343 = vpop.permute.xlu0 %1342
      %1344 = vrot.lane.b32.xlu0 %v1329, 40
      %v1345 = vpop.permute.xlu0 %1344
      %v1346 = vunpack.c.l.b16 %v826
      %v1347 = vunpack.c.l.b16 %v827
      %v1348 = vunpack.c.l.b16 %v829
      %v1349 = vunpack.c.l.b16 %v830
      %v1350 = vunpack.c.l.b16 %v832
      %v1351 = vunpack.c.l.b16 %v833
      %v1352 = vunpack.c.l.b16 %v835
      %v1353 = vunpack.c.l.b16 %v836
      %v1354 = vunpack.c.l.b16 %v838
      %v1355 = vunpack.c.l.b16 %v839
      %v1356 = vunpack.c.l.b16 %v841
      %v1357 = vunpack.c.l.b16 %v842
      %v1358 = vunpack.c.l.b16 %v844
      %v1359 = vunpack.c.l.b16 %v845
      %v1360 = vunpack.c.l.b16 %v847
      %v1361 = vunpack.c.l.b16 %v848
      %v1362 = vpack.c.b16 %v1347, %v1346
      %v1363 = vpack.c.b16 %v1349, %v1348
      %v1364 = vpack.c.b16 %v1351, %v1350
      %v1365 = vpack.c.b16 %v1353, %v1352
      %v1366 = vpack.c.b16 %v1355, %v1354
      %v1367 = vpack.c.b16 %v1357, %v1356
      %v1368 = vpack.c.b16 %v1359, %v1358
      %v1369 = vpack.c.b16 %v1361, %v1360
      %1370 = vrot.lane.b32.xlu0 %v1362, 48
      %v1371 = vpop.permute.xlu0 %1370
      %1372 = vrot.lane.b32.xlu0 %v1363, 48
      %v1373 = vpop.permute.xlu0 %1372
      %1374 = vrot.lane.b32.xlu0 %v1364, 48
      %v1375 = vpop.permute.xlu0 %1374
      %1376 = vrot.lane.b32.xlu0 %v1365, 48
      %v1377 = vpop.permute.xlu0 %1376
      %1378 = vrot.lane.b32.xlu0 %v1366, 48
      %v1379 = vpop.permute.xlu0 %1378
      %1380 = vrot.lane.b32.xlu0 %v1367, 48
      %v1381 = vpop.permute.xlu0 %1380
      %1382 = vrot.lane.b32.xlu0 %v1368, 48
      %v1383 = vpop.permute.xlu0 %1382
      %1384 = vrot.lane.b32.xlu0 %v1369, 48
      %v1385 = vpop.permute.xlu0 %1384
      %v1386 = vunpack.c.l.b16 %v863
      %v1387 = vunpack.c.l.b16 %v873
      %v1388 = vunpack.c.l.b16 %v887
      %v1389 = vunpack.c.l.b16 %v897
      %v1390 = vunpack.c.l.b16 %v911
      %v1391 = vunpack.c.l.b16 %v921
      %v1392 = vunpack.c.l.b16 %v935
      %v1393 = vunpack.c.l.b16 %v945
      %v1394 = vunpack.c.l.b16 %v959
      %v1395 = vunpack.c.l.b16 %v969
      %v1396 = vunpack.c.l.b16 %v983
      %v1397 = vunpack.c.l.b16 %v993
      %v1398 = vunpack.c.l.b16 %v1007
      %v1399 = vunpack.c.l.b16 %v1017
      %v1400 = vunpack.c.l.b16 %v1031
      %v1401 = vunpack.c.l.b16 %v1041
      %v1402 = vpack.c.b16 %v1387, %v1386
      %v1403 = vpack.c.b16 %v1389, %v1388
      %v1404 = vpack.c.b16 %v1391, %v1390
      %v1405 = vpack.c.b16 %v1393, %v1392
      %v1406 = vpack.c.b16 %v1395, %v1394
      %v1407 = vpack.c.b16 %v1397, %v1396
      %v1408 = vpack.c.b16 %v1399, %v1398
      %v1409 = vpack.c.b16 %v1401, %v1400
      %1410 = vrot.lane.b32.xlu0 %v1402, 56
      %v1411 = vpop.permute.xlu0 %1410
      %1412 = vrot.lane.b32.xlu0 %v1403, 56
      %v1413 = vpop.permute.xlu0 %1412
      %1414 = vrot.lane.b32.xlu0 %v1404, 56
      %v1415 = vpop.permute.xlu0 %1414
      %1416 = vrot.lane.b32.xlu0 %v1405, 56
      %v1417 = vpop.permute.xlu0 %1416
      %1418 = vrot.lane.b32.xlu0 %v1406, 56
      %v1419 = vpop.permute.xlu0 %1418
      %1420 = vrot.lane.b32.xlu0 %v1407, 56
      %v1421 = vpop.permute.xlu0 %1420
      %1422 = vrot.lane.b32.xlu0 %v1408, 56
      %v1423 = vpop.permute.xlu0 %1422
      %1424 = vrot.lane.b32.xlu0 %v1409, 56
      %v1425 = vpop.permute.xlu0 %1424
      %v1426 = vunpack.c.l.b16 %v1069
      %v1427 = vunpack.c.l.b16 %v1072
      %v1428 = vunpack.c.l.b16 %v1076
      %v1429 = vunpack.c.l.b16 %v1079
      %v1430 = vunpack.c.l.b16 %v1083
      %v1431 = vunpack.c.l.b16 %v1086
      %v1432 = vunpack.c.l.b16 %v1090
      %v1433 = vunpack.c.l.b16 %v1093
      %v1434 = vunpack.c.l.b16 %v1097
      %v1435 = vunpack.c.l.b16 %v1100
      %v1436 = vunpack.c.l.b16 %v1104
      %v1437 = vunpack.c.l.b16 %v1107
      %v1438 = vunpack.c.l.b16 %v1111
      %v1439 = vunpack.c.l.b16 %v1114
      %v1440 = vunpack.c.l.b16 %v1118
      %v1441 = vunpack.c.l.b16 %v1121
      %v1442 = vpack.c.b16 %v1427, %v1426
      %v1443 = vpack.c.b16 %v1429, %v1428
      %v1444 = vpack.c.b16 %v1431, %v1430
      %v1445 = vpack.c.b16 %v1433, %v1432
      %v1446 = vpack.c.b16 %v1435, %v1434
      %v1447 = vpack.c.b16 %v1437, %v1436
      %v1448 = vpack.c.b16 %v1439, %v1438
      %v1449 = vpack.c.b16 %v1441, %v1440
      %1450 = vrot.lane.b32.xlu0 %v1442, 64
      %v1451 = vpop.permute.xlu0 %1450
      %1452 = vrot.lane.b32.xlu0 %v1443, 64
      %v1453 = vpop.permute.xlu0 %1452
      %1454 = vrot.lane.b32.xlu0 %v1444, 64
      %v1455 = vpop.permute.xlu0 %1454
      %1456 = vrot.lane.b32.xlu0 %v1445, 64
      %v1457 = vpop.permute.xlu0 %1456
      %1458 = vrot.lane.b32.xlu0 %v1446, 64
      %v1459 = vpop.permute.xlu0 %1458
      %1460 = vrot.lane.b32.xlu0 %v1447, 64
      %v1461 = vpop.permute.xlu0 %1460
      %1462 = vrot.lane.b32.xlu0 %v1448, 64
      %v1463 = vpop.permute.xlu0 %1462
      %1464 = vrot.lane.b32.xlu0 %v1449, 64
      %v1465 = vpop.permute.xlu0 %1464
      %vm1466 = vcmask 64512
      %v1469 = vsel %vm1466, %v1138, %v1171
      %v1472 = vsel %vm1466, %v1139, %v1173
      %v1475 = vsel %vm1466, %v1140, %v1175
      %v1478 = vsel %vm1466, %v1141, %v1177
      %v1481 = vsel %vm1466, %v1142, %v1179
      %v1484 = vsel %vm1466, %v1143, %v1181
      %v1487 = vsel %vm1466, %v1144, %v1183
      %v1490 = vsel %vm1466, %v1145, %v1185
      %vm1491 = vcmask 130048
      %v1493 = vsel %vm1491, %v1469, %v1211
      %v1495 = vsel %vm1491, %v1472, %v1213
      %v1497 = vsel %vm1491, %v1475, %v1215
      %v1499 = vsel %vm1491, %v1478, %v1217
      %v1501 = vsel %vm1491, %v1481, %v1219
      %v1503 = vsel %vm1491, %v1484, %v1221
      %v1505 = vsel %vm1491, %v1487, %v1223
      %v1507 = vsel %vm1491, %v1490, %v1225
      %vm1508 = vcmask 195584
      %v1510 = vsel %vm1508, %v1493, %v1251
      %v1512 = vsel %vm1508, %v1495, %v1253
      %v1514 = vsel %vm1508, %v1497, %v1255
      %v1516 = vsel %vm1508, %v1499, %v1257
      %v1518 = vsel %vm1508, %v1501, %v1259
      %v1520 = vsel %vm1508, %v1503, %v1261
      %v1522 = vsel %vm1508, %v1505, %v1263
      %v1524 = vsel %vm1508, %v1507, %v1265
      %vm1525 = vcmask 261120
      %v1527 = vsel %vm1525, %v1510, %v1291
      %v1529 = vsel %vm1525, %v1512, %v1293
      %v1531 = vsel %vm1525, %v1514, %v1295
      %v1533 = vsel %vm1525, %v1516, %v1297
      %v1535 = vsel %vm1525, %v1518, %v1299
      %v1537 = vsel %vm1525, %v1520, %v1301
      %v1539 = vsel %vm1525, %v1522, %v1303
      %v1541 = vsel %vm1525, %v1524, %v1305
      %vm1542 = vcmask 326656
      %v1544 = vsel %vm1542, %v1527, %v1331
      %v1546 = vsel %vm1542, %v1529, %v1333
      %v1548 = vsel %vm1542, %v1531, %v1335
      %v1550 = vsel %vm1542, %v1533, %v1337
      %v1552 = vsel %vm1542, %v1535, %v1339
      %v1554 = vsel %vm1542, %v1537, %v1341
      %v1556 = vsel %vm1542, %v1539, %v1343
      %v1558 = vsel %vm1542, %v1541, %v1345
      %vm1559 = vcmask 392192
      %v1561 = vsel %vm1559, %v1544, %v1371
      %v1563 = vsel %vm1559, %v1546, %v1373
      %v1565 = vsel %vm1559, %v1548, %v1375
      %v1567 = vsel %vm1559, %v1550, %v1377
      %v1569 = vsel %vm1559, %v1552, %v1379
      %v1571 = vsel %vm1559, %v1554, %v1381
      %v1573 = vsel %vm1559, %v1556, %v1383
      %v1575 = vsel %vm1559, %v1558, %v1385
      %vm1576 = vcmask 457728
      %v1578 = vsel %vm1576, %v1561, %v1411
      %v1580 = vsel %vm1576, %v1563, %v1413
      %v1582 = vsel %vm1576, %v1565, %v1415
      %v1584 = vsel %vm1576, %v1567, %v1417
      %v1586 = vsel %vm1576, %v1569, %v1419
      %v1588 = vsel %vm1576, %v1571, %v1421
      %v1590 = vsel %vm1576, %v1573, %v1423
      %v1592 = vsel %vm1576, %v1575, %v1425
      %vm1593 = vcmask 523264
      %v1595 = vsel %vm1593, %v1578, %v1451
      %v1597 = vsel %vm1593, %v1580, %v1453
      %v1599 = vsel %vm1593, %v1582, %v1455
      %v1601 = vsel %vm1593, %v1584, %v1457
      %v1603 = vsel %vm1593, %v1586, %v1459
      %v1605 = vsel %vm1593, %v1588, %v1461
      %v1607 = vsel %vm1593, %v1590, %v1463
      %v1609 = vsel %vm1593, %v1592, %v1465
      %v1610 = vld [vmem:[%s1] sm:$0xf]
      %v1611 = vld [vmem:[%s1 + $0x4] sm:$0xf]
      %v1612 = vld [vmem:[%s1 + $0x8] sm:$0xf]
      %v1613 = vld [vmem:[%s1 + $0xc] sm:$0xf]
      %v1614 = vld [vmem:[%s1 + $0x10] sm:$0xf]
      %v1615 = vld [vmem:[%s1 + $0x14] sm:$0xf]
      %v1616 = vld [vmem:[%s1 + $0x18] sm:$0xf]
      %v1617 = vld [vmem:[%s1 + $0x1c] sm:$0xf]
      %v1618 = vld [vmem:[%s1 + $0x20] sm:$0xf]
      %v1628 = vunpack.c.l.b16 %v1610
      %v1629 = vunpack.c.l.b16 %v1611
      %v1630 = vunpack.c.l.b16 %v1612
      %v1631 = vunpack.c.l.b16 %v1613
      %v1632 = vunpack.c.l.b16 %v1614
      %v1633 = vunpack.c.l.b16 %v1615
      %v1634 = vunpack.c.l.b16 %v1616
      %v1635 = vunpack.c.l.b16 %v1617
      %v1636 = vunpack.c.l.b16 %v1618
      %v1637 = vpack.c.b16 %v1629, %v1628
      %v1638 = vpack.c.b16 %v1631, %v1630
      %v1639 = vpack.c.b16 %v1633, %v1632
      %v1640 = vpack.c.b16 %v1635, %v1634
      %v1641 = vpack.c.b16 %v1636, %v1636
      %vm1646 = vcmask 588800
      %v1647 = vsel %vm1646, %v1595, 0
      %v1649 = vsel %vm1646, %v1597, 0
      %v1651 = vsel %vm1646, %v1599, 0
      %v1653 = vsel %vm1646, %v1601, 0
      %v1655 = vsel %vm1646, %v1603, 0
      %v1657 = vsel %vm1646, %v1605, 0
      %v1659 = vsel %vm1646, %v1607, 0
      %v1661 = vsel %vm1646, %v1609, 0
      %vm1663 = vcmask 1043456
      %v1665 = vsel %vm1663, %v1641, 0
      %1667 = vmatpush.bf16.msra.mxu0 0
      %1668 = vmatpush.bf16.msra.mxu0 0
      %1669 = vmatpush.bf16.msra.mxu0 0
      %1670 = vmatpush.bf16.msra.mxu0 %v1665
      %1671 = vmatpush.bf16.msra.mxu0 %v1640
      %1672 = vmatpush.bf16.msra.mxu0 %v1639
      %1673 = vmatpush.bf16.msra.mxu0 %v1638
      %1674 = vmatpush.bf16.msra.mxu0 %v1637
      %1675 = vmatmul.bf16.gmra.mxu0 %v1647
      %v1676 = vpop.f32.mrf.mxu0
      %v1677 = vadd.f32 0.0, %v1676
      %v1678 = vpop.f32.mrf.mxu0
      %v1679 = vadd.f32 0.0, %v1678
      %1680 = vmatmul.bf16.gmra.mxu0 %v1649
      %v1681 = vpop.f32.mrf.mxu0
      %v1682 = vadd.f32 0.0, %v1681
      %v1683 = vpop.f32.mrf.mxu0
      %v1684 = vadd.f32 0.0, %v1683
      %1685 = vmatmul.bf16.gmra.mxu0 %v1651
      %v1686 = vpop.f32.mrf.mxu0
      %v1687 = vadd.f32 0.0, %v1686
      %v1688 = vpop.f32.mrf.mxu0
      %v1689 = vadd.f32 0.0, %v1688
      %1690 = vmatmul.bf16.gmra.mxu0 %v1653
      %v1691 = vpop.f32.mrf.mxu0
      %v1692 = vadd.f32 0.0, %v1691
      %v1693 = vpop.f32.mrf.mxu0
      %v1694 = vadd.f32 0.0, %v1693
      %1695 = vmatmul.bf16.gmra.mxu0 %v1655
      %v1696 = vpop.f32.mrf.mxu0
      %v1697 = vadd.f32 0.0, %v1696
      %v1698 = vpop.f32.mrf.mxu0
      %v1699 = vadd.f32 0.0, %v1698
      %1700 = vmatmul.bf16.gmra.mxu0 %v1657
      %v1701 = vpop.f32.mrf.mxu0
      %v1702 = vadd.f32 0.0, %v1701
      %v1703 = vpop.f32.mrf.mxu0
      %v1704 = vadd.f32 0.0, %v1703
      %1705 = vmatmul.bf16.gmra.mxu0 %v1659
      %v1706 = vpop.f32.mrf.mxu0
      %v1707 = vadd.f32 0.0, %v1706
      %v1708 = vpop.f32.mrf.mxu0
      %v1709 = vadd.f32 0.0, %v1708
      %1710 = vmatmul.bf16.gmra.mxu0 %v1661
      %v1711 = vpop.f32.mrf.mxu0
      %v1712 = vadd.f32 0.0, %v1711
      %v1713 = vpop.f32.mrf.mxu0
      %v1714 = vadd.f32 0.0, %v1713
      %1715 = vdwg.mxu0
      %1716 = vst.msk [vmem:[%s205] sm:$0xff] %vm1466, %v1677
      %1717 = vst.msk [vmem:[%s205 + $0x8] sm:$0xff] %vm1466, %v1679
      %1718 = vst.msk [vmem:[%s205 + $0x10] sm:$0xff] %vm1466, %v1682
      %1719 = vst.msk [vmem:[%s205 + $0x18] sm:$0xff] %vm1466, %v1684
      %1720 = vst.msk [vmem:[%s205 + $0x20] sm:$0xff] %vm1466, %v1687
      %1721 = vst.msk [vmem:[%s205 + $0x28] sm:$0xff] %vm1466, %v1689
      %1722 = vst.msk [vmem:[%s205 + $0x30] sm:$0xff] %vm1466, %v1692
      %1723 = vst.msk [vmem:[%s205 + $0x38] sm:$0xff] %vm1466, %v1694
      %1724 = vst.msk [vmem:[%s205 + $0x40] sm:$0xff] %vm1466, %v1697
      %1725 = vst.msk [vmem:[%s205 + $0x48] sm:$0xff] %vm1466, %v1699
      %1726 = vst.msk [vmem:[%s205 + $0x50] sm:$0xff] %vm1466, %v1702
      %1727 = vst.msk [vmem:[%s205 + $0x58] sm:$0xff] %vm1466, %v1704
      %1728 = vst.msk [vmem:[%s205 + $0x60] sm:$0xff] %vm1466, %v1707
      %1729 = vst.msk [vmem:[%s205 + $0x68] sm:$0xff] %vm1466, %v1709
      %1730 = vst.msk [vmem:[%s205 + $0x70] sm:$0xff] %vm1466, %v1712
      %1731 = vst.msk [vmem:[%s205 + $0x78] sm:$0xff] %vm1466, %v1714
      %v1732 = vsel %vm1466, %v1677, 0.0
      %v1733 = vsel %vm1466, %v1679, 0.0
      %v1734 = vadd.f32 %v1732, %v1733
      %v1735 = vsel %vm1466, %v1682, 0.0
      %v1736 = vadd.f32 %v1734, %v1735
      %v1737 = vsel %vm1466, %v1684, 0.0
      %v1738 = vadd.f32 %v1736, %v1737
      %v1739 = vsel %vm1466, %v1687, 0.0
      %v1740 = vadd.f32 %v1738, %v1739
      %v1741 = vsel %vm1466, %v1689, 0.0
      %v1742 = vadd.f32 %v1740, %v1741
      %v1743 = vsel %vm1466, %v1692, 0.0
      %v1744 = vadd.f32 %v1742, %v1743
      %v1745 = vsel %vm1466, %v1694, 0.0
      %v1746 = vadd.f32 %v1744, %v1745
      %v1747 = vsel %vm1466, %v1697, 0.0
      %v1748 = vadd.f32 %v1746, %v1747
      %v1749 = vsel %vm1466, %v1699, 0.0
      %v1750 = vadd.f32 %v1748, %v1749
      %v1751 = vsel %vm1466, %v1702, 0.0
      %v1752 = vadd.f32 %v1750, %v1751
      %v1753 = vsel %vm1466, %v1704, 0.0
      %v1754 = vadd.f32 %v1752, %v1753
      %v1755 = vsel %vm1466, %v1707, 0.0
      %v1756 = vadd.f32 %v1754, %v1755
      %v1757 = vsel %vm1466, %v1709, 0.0
      %v1758 = vadd.f32 %v1756, %v1757
      %v1759 = vsel %vm1466, %v1712, 0.0
      %v1760 = vadd.f32 %v1758, %v1759
      %v1761 = vsel %vm1466, %v1714, 0.0
      %v1762 = vadd.f32 %v1760, %v1761
      %v1763 = vrot.slane %v1762, 4
      %v1764 = vadd.f32 %v1762, %v1763
      %v1765 = vrot.slane %v1764, 2
      %v1766 = vadd.f32 %v1764, %v1765
      %v1767 = vrot.slane %v1766, 1
      %v1768 = vadd.f32 %v1766, %v1767
      %v1769 = vmul.f32 %v1677, %v1677
      %v1770 = vmul.f32 %v1679, %v1679
      %v1771 = vmul.f32 %v1682, %v1682
      %v1772 = vmul.f32 %v1684, %v1684
      %v1773 = vmul.f32 %v1687, %v1687
      %v1774 = vmul.f32 %v1689, %v1689
      %v1775 = vmul.f32 %v1692, %v1692
      %v1776 = vmul.f32 %v1694, %v1694
      %v1777 = vmul.f32 %v1697, %v1697
      %v1778 = vmul.f32 %v1699, %v1699
      %v1779 = vmul.f32 %v1702, %v1702
      %v1780 = vmul.f32 %v1704, %v1704
      %v1781 = vmul.f32 %v1707, %v1707
      %v1782 = vmul.f32 %v1709, %v1709
      %v1783 = vmul.f32 %v1712, %v1712
      %v1784 = vmul.f32 %v1714, %v1714
      %v1785 = vsel %vm1466, %v1769, 0.0
      %v1786 = vsel %vm1466, %v1770, 0.0
      %v1787 = vadd.f32 %v1785, %v1786
      %v1788 = vsel %vm1466, %v1771, 0.0
      %v1789 = vadd.f32 %v1787, %v1788
      %v1790 = vsel %vm1466, %v1772, 0.0
      %v1791 = vadd.f32 %v1789, %v1790
      %v1792 = vsel %vm1466, %v1773, 0.0
      %v1793 = vadd.f32 %v1791, %v1792
      %v1794 = vsel %vm1466, %v1774, 0.0
      %v1795 = vadd.f32 %v1793, %v1794
      %v1796 = vsel %vm1466, %v1775, 0.0
      %v1797 = vadd.f32 %v1795, %v1796
      %v1798 = vsel %vm1466, %v1776, 0.0
      %v1799 = vadd.f32 %v1797, %v1798
      %v1800 = vsel %vm1466, %v1777, 0.0
      %v1801 = vadd.f32 %v1799, %v1800
      %v1802 = vsel %vm1466, %v1778, 0.0
      %v1803 = vadd.f32 %v1801, %v1802
      %v1804 = vsel %vm1466, %v1779, 0.0
      %v1805 = vadd.f32 %v1803, %v1804
      %v1806 = vsel %vm1466, %v1780, 0.0
      %v1807 = vadd.f32 %v1805, %v1806
      %v1808 = vsel %vm1466, %v1781, 0.0
      %v1809 = vadd.f32 %v1807, %v1808
      %v1810 = vsel %vm1466, %v1782, 0.0
      %v1811 = vadd.f32 %v1809, %v1810
      %v1812 = vsel %vm1466, %v1783, 0.0
      %v1813 = vadd.f32 %v1811, %v1812
      %v1814 = vsel %vm1466, %v1784, 0.0
      %v1815 = vadd.f32 %v1813, %v1814
      %v1816 = vrot.slane %v1815, 4
      %v1817 = vadd.f32 %v1815, %v1816
      %v1818 = vrot.slane %v1817, 2
      %v1819 = vadd.f32 %v1817, %v1818
      %v1820 = vrot.slane %v1819, 1
      %v1821 = vadd.f32 %v1819, %v1820
      %vm1822 = vcmask 1040384
      %v1823 = vsel %vm1822, %v1768, %v1821
      %vm1824 = vcmask 58368
      %1825 = vst.msk [vmem:[%s214] sm:$0x3] %vm1824, %v1823
      %s1826 = smul.u32 16, %s20
      %p1827 = scmp.lt.s32.totalorder %s19, 1
      %s1828 = scalar_select %p1827, %s19, 1
      %p1829 = scmp.lt.s32.totalorder %s1826, 31
      %s1830 = scalar_select %p1829, %s1826, 31
      %s1831 = smul.addr %s1828, 32
      %s1832 = sadd.s32 %s1830, %s1831
      %s1833 = smul.addr %s1832, 8
      %s1834 = scalar_lea.vmem %s2, %s1833
      %p1835 = scmp.lt.s32.totalorder %s19, 1
      %s1836 = scalar_select %p1835, %s19, 1
      %p1837 = scmp.lt.s32.totalorder %s20, 1
      %s1838 = scalar_select %p1837, %s20, 1
      %s1839 = smul.addr %s1836, 2
      %s1840 = sadd.s32 %s1838, %s1839
      %s1841 = smul.addr %s1840, 2
      %s1842 = scalar_lea.vmem %s3, %s1841
      // Predicated region
      $region29: #{vnet_conv_block.6} parent=27 // pred_check
        %p1843 = pneg %p94
      $region30: #{vnet_conv_block.6} parent=27 // pred_check_branch
        %1845 = sbr.rel (%p1843) target = $region32
      $region31: #{vnet_conv_block.6} parent=27 // pred_region
        %s1846 = smul.u32 16, %s20
      $region32: #{vnet_conv_block.6} parent=27 // pred_fallthru
        _
      // Predicated region
      $region33: #{vnet_conv_block.6} parent=27 // pred_check
        %p1847 = pneg %p122
      $region34: #{vnet_conv_block.6} parent=27 // pred_check_branch
        %1849 = sbr.rel (%p1847) target = $region36
      $region35: #{vnet_conv_block.6} parent=27 // pred_region
        _
      $region36: #{vnet_conv_block.6} parent=27 // pred_fallthru
        _
    $region28: #{vnet_conv_block.6} parent=5 // pred_fallthru
      _
    %p1850 = scmp.le.s32.totalorder 2, %s10
    // Predicated region
    $region37: #{vnet_conv_block.6} parent=5 // pred_check
      %p1851 = pneg %p1850
    $region38: #{vnet_conv_block.6} parent=5 // pred_check_branch
      %1853 = sbr.rel (%p1851) target = $region40
    $region39: #{vnet_conv_block.6} parent=5 // pred_region
      %s1854 = ssub.s32 %s10, 2
      // Predicated region
      $region41: #{vnet_conv_block.6} parent=39 // pred_check
        %p1855 = pneg %p100
      $region42: #{vnet_conv_block.6} parent=39 // pred_check_branch
        %1857 = sbr.rel (%p1855) target = $region44
      $region43: #{vnet_conv_block.6} parent=39 // pred_region
        %s1858 = smul.u32 16, %s22
        %p1859 = scmp.lt.s32.totalorder %s21, 1
        %s1860 = scalar_select %p1859, %s21, 1
        %p1861 = scmp.lt.s32.totalorder %s1858, 31
        %s1862 = scalar_select %p1861, %s1858, 31
        %s1863 = smul.addr %s1860, 32
        %s1864 = sadd.s32 %s1862, %s1863
        %s1865 = smul.addr %s1864, 8
        %s1866 = scalar_lea.vmem %s2, %s1865
      $region44: #{vnet_conv_block.6} parent=39 // pred_fallthru
        _
      // Predicated region
      $region45: #{vnet_conv_block.6} parent=39 // pred_check
        %p1867 = pneg %p128
      $region46: #{vnet_conv_block.6} parent=39 // pred_check_branch
        %1869 = sbr.rel (%p1867) target = $region48
      $region47: #{vnet_conv_block.6} parent=39 // pred_region
        %p1870 = scmp.lt.s32.totalorder %s21, 1
        %s1871 = scalar_select %p1870, %s21, 1
        %p1872 = scmp.lt.s32.totalorder %s22, 1
        %s1873 = scalar_select %p1872, %s22, 1
        %s1874 = smul.addr %s1871, 2
        %s1875 = sadd.s32 %s1873, %s1874
        %s1876 = smul.addr %s1875, 2
        %s1877 = scalar_lea.vmem %s3, %s1876
      $region48: #{vnet_conv_block.6} parent=39 // pred_fallthru
        _
    $region40: #{vnet_conv_block.6} parent=5 // pred_fallthru
      _
  $region6: #{vnet_conv_block.6} parent=0 // loop_footer
    %s14 = sadd.s32 1, %s10
  $region7: #{vnet_conv_block.6} parent=0 // loop_footer_branch
    %9 = sbr.rel target = $region3
  $region8: #{vnet_conv_block.6} parent=0 // loop_exit
    _

</llo_original>
